<compile_context>
chip_gen: v7x
topology: tpu7x:2x2x1
jax: 0.10.0
libtpu: 0.0.40
codegen_flags: <defaults>
</compile_context>

<pallas_src>
import functools
import math

import jax
import jax.numpy as jnp
from jax.experimental import pallas as pl
from jax.experimental.pallas import tpu as pltpu

EPS = 1e-5
NEG_INF = -1e30


def _layernorm(x, g, b):
    mu = jnp.mean(x, axis=-1, keepdims=True)
    var = jnp.mean((x - mu) ** 2, axis=-1, keepdims=True)
    return (x - mu) * jax.lax.rsqrt(var + EPS) * g + b


# ----------------------------- Pallas kernel ------------------------------


def decoder_kernel(mask_ref, x_ref,
                   wqkv_ref, bqkv_ref, wo_ref, bo_ref,
                   ln1_g_ref, ln1_b_ref,
                   w1_ref, b1_ref, w2_ref, b2_ref,
                   ln2_g_ref, ln2_b_ref,
                   wout_ref, bout_ref,
                   o_ref, *, num_heads, num_layers):
    # One grid step = one batch element through ALL layers + output head.
    x = x_ref[0].astype(jnp.float32)                     # (S, D) residual stream, f32
    S, D = x.shape
    H = num_heads
    dh = D // H
    scale = 1.0 / math.sqrt(dh)
    mask = mask_ref[...]                                 # (S, S) additive causal bias, f32

    for l in range(num_layers):                          # static unroll (L is small)
        # ---- fused QKV projection: one batched matmul, heads on a major axis ----
        xb = jnp.broadcast_to(x.astype(jnp.bfloat16), (3 * H, S, D))          # (3H, S, D)
        qkvh = jnp.einsum('hsd,hde->hse', xb, wqkv_ref[l],
                          preferred_element_type=jnp.float32) + bqkv_ref[l]   # (3H, S, dh)
        qh = qkvh[:H].astype(jnp.bfloat16)               # leading-axis slices: no lane work
        kh = qkvh[H:2 * H].astype(jnp.bfloat16)
        vh = qkvh[2 * H:].astype(jnp.bfloat16)

        # ---- masked scaled-dot-product attention, all heads batched ----
        s = jnp.einsum('hqe,hke->hqk', qh, kh,
                       preferred_element_type=jnp.float32) * scale + mask     # (H, S, S)
        s = s - jnp.max(s, axis=-1, keepdims=True)
        p = jnp.exp(s)
        p = p * pl.reciprocal(jnp.sum(p, axis=-1, keepdims=True), approx=True)
        ah = jnp.einsum('hqk,hke->hqe', p.astype(jnp.bfloat16), vh,
                        preferred_element_type=jnp.float32)                   # (H, S, dh)

        # ---- output projection: per-head matmul + sum over the head (major) axis ----
        oh = jnp.einsum('hqe,hed->hqd', ah.astype(jnp.bfloat16), wo_ref[l],
                        preferred_element_type=jnp.float32)                   # (H, S, D)
        attn = jnp.sum(oh, axis=0) + bo_ref[l]                                # (S, D)

        x = _layernorm(x + attn, ln1_g_ref[l], ln1_b_ref[l])

        # ---- feed-forward ----
        h1 = jnp.dot(x.astype(jnp.bfloat16), w1_ref[l],
                     preferred_element_type=jnp.float32) + b1_ref[l]
        h1 = jnp.maximum(h1, 0.0)
        ff = jnp.dot(h1.astype(jnp.bfloat16), w2_ref[l],
                     preferred_element_type=jnp.float32) + b2_ref[l]
        x = _layernorm(x + ff, ln2_g_ref[l], ln2_b_ref[l])

    # ---- output head + log_softmax over a lane-dense padded vocab ----
    logits = jnp.dot(x.astype(jnp.bfloat16), wout_ref[...],
                     preferred_element_type=jnp.float32) + bout_ref[...]      # (S, Vpad)
    z = logits - jnp.max(logits, axis=-1, keepdims=True)
    lse = jnp.log(jnp.sum(jnp.exp(z), axis=-1, keepdims=True))
    o_ref[0] = (z - lse).astype(o_ref.dtype)


# ------------------------------ JAX wrapper --------------------------------


def decoder_forward(tokens, canon, kp, *, num_heads):
    # Embedding gathers stay in plain JAX (no clean Pallas equivalent worth it at this
    # size); everything downstream runs inside ONE pallas_call.
    tok = jnp.take(canon["tok_table"], tokens, axis=0)                # (B, S, D)
    B, S = tokens.shape
    x = (tok + canon["pos_table"][:S][None, :, :]).astype(jnp.float32)
    D = x.shape[-1]
    V = canon["w_out"].shape[1]
    Vpad = kp["w_out"].shape[1]
    L = kp["wqkv"].shape[0]

    # Additive causal mask, built once and kept VMEM-resident (not rebuilt per step).
    r = jnp.arange(S)
    mask = jnp.where(r[:, None] >= r[None, :], 0.0, NEG_INF).astype(jnp.float32)

    operands = (mask, x, kp["wqkv"], kp["bqkv"], kp["wo"], kp["bo"],
                kp["ln1_g"], kp["ln1_b"], kp["w1"], kp["b1"], kp["w2"], kp["b2"],
                kp["ln2_g"], kp["ln2_b"], kp["w_out"], kp["b_out"])

    def full_spec(a):
        return pl.BlockSpec(a.shape, lambda b, _n=a.ndim: (0,) * _n)

    in_specs = [full_spec(mask),
                pl.BlockSpec((1, S, D), lambda b: (b, 0, 0))]
    in_specs += [full_spec(a) for a in operands[2:]]

    out_pad = pl.pallas_call(
        functools.partial(decoder_kernel, num_heads=num_heads, num_layers=L),
        out_shape=jax.ShapeDtypeStruct((B, S, Vpad), jnp.float32),
        grid=(B,),
        in_specs=in_specs,
        out_specs=pl.BlockSpec((1, S, Vpad), lambda b: (b, 0, 0)),
        compiler_params=pltpu.CompilerParams(dimension_semantics=("parallel",)),
    )(*operands)
    return out_pad[:, :, :V]


# ------------------------- Parameter init & packing -------------------------


def init_canonical(key, dim, num_heads, num_layers, num_tokens, seq_length):
    ks = iter(jax.random.split(key, 4 + 16 * num_layers))

    def w(shape, scale=0.05):
        return (scale * jax.random.normal(next(ks), shape)).astype(jnp.float32)

    def wb(shape, scale=0.05):        # matrix weights stored bf16 (MXU-native)
        return w(shape, scale).astype(jnp.bfloat16)

    dff = 4 * dim
    layers = []
    for _ in range(num_layers):
        layers.append({
            "wq": wb((dim, dim)), "bq": w((dim,)),
            "wk": wb((dim, dim)), "bk": w((dim,)),
            "wv": wb((dim, dim)), "bv": w((dim,)),
            "wo": wb((dim, dim)), "bo": w((dim,)),
            "ln1_g": jnp.ones((dim,), jnp.float32),
            "ln1_b": jnp.zeros((dim,), jnp.float32),
            "w1": wb((dim, dff)), "b1": w((dff,)),
            "w2": wb((dff, dim)), "b2": w((dim,)),
            "ln2_g": jnp.ones((dim,), jnp.float32),
            "ln2_b": jnp.zeros((dim,), jnp.float32),
        })
    return {
        "tok_table": w((num_tokens, dim), 1.0),
        "pos_table": w((seq_length, dim), 1.0),
        "w_out": wb((dim, num_tokens)),
        "b_out": w((num_tokens,)),
        "layers": layers,
    }


def pack_params(canon, num_heads):
    """Re-layout canonical weights for the fused kernel (head-major QKV, padded vocab)."""
    D = canon["tok_table"].shape[1]
    V = canon["w_out"].shape[1]
    H = num_heads
    dh = D // H
    vpad = ((V + 127) // 128) * 128

    def heads_cols(wmat):   # (D, D) -> (H, D, dh); head h uses columns [h*dh, (h+1)*dh)
        return wmat.reshape(D, H, dh).transpose(1, 0, 2)

    def heads_bias(b):      # (D,) -> (H, 1, dh)
        return b.reshape(H, dh)[:, None, :]

    def stack(fn):
        return jnp.stack([fn(p) for p in canon["layers"]], axis=0)

    return {
        "wqkv": stack(lambda p: jnp.concatenate(
            [heads_cols(p["wq"]), heads_cols(p["wk"]), heads_cols(p["wv"])], axis=0)),
        "bqkv": stack(lambda p: jnp.concatenate(
            [heads_bias(p["bq"]), heads_bias(p["bk"]), heads_bias(p["bv"])], axis=0)),
        "wo": stack(lambda p: p["wo"].reshape(H, dh, D)),
        "bo": stack(lambda p: p["bo"][None, :]),
        "ln1_g": stack(lambda p: p["ln1_g"][None, :]),
        "ln1_b": stack(lambda p: p["ln1_b"][None, :]),
        "w1": stack(lambda p: p["w1"]),
        "b1": stack(lambda p: p["b1"][None, :]),
        "w2": stack(lambda p: p["w2"]),
        "b2": stack(lambda p: p["b2"][None, :]),
        "ln2_g": stack(lambda p: p["ln2_g"][None, :]),
        "ln2_b": stack(lambda p: p["ln2_b"][None, :]),
        "w_out": jnp.zeros((D, vpad), jnp.bfloat16).at[:, :V].set(canon["w_out"]),
        "b_out": jnp.full((1, vpad), NEG_INF, jnp.float32).at[0, :V].set(canon["b_out"]),
    }


# --------------------------- Reference (pure JAX) ----------------------------


def ref_forward(tokens, canon, *, num_heads):
    tok = jnp.take(canon["tok_table"], tokens, axis=0)
    S = tokens.shape[1]
    x = tok + canon["pos_table"][:S][None]
    B, _, D = x.shape
    H = num_heads
    dh = D // H
    for p in canon["layers"]:
        q = x @ p["wq"].astype(jnp.float32) + p["bq"]
        k = x @ p["wk"].astype(jnp.float32) + p["bk"]
        v = x @ p["wv"].astype(jnp.float32) + p["bv"]
        qh = q.reshape(B, S, H, dh).transpose(0, 2, 1, 3)
        kh = k.reshape(B, S, H, dh).transpose(0, 2, 1, 3)
        vh = v.reshape(B, S, H, dh).transpose(0, 2, 1, 3)
        s = jnp.einsum("bhqd,bhkd->bhqk", qh, kh) / math.sqrt(dh)
        causal = jnp.tril(jnp.ones((S, S), bool))
        s = jnp.where(causal[None, None], s, NEG_INF)
        a = jax.nn.softmax(s, axis=-1)
        attn = jnp.einsum("bhqk,bhkd->bhqd", a, vh).transpose(0, 2, 1, 3).reshape(B, S, D)
        attn = attn @ p["wo"].astype(jnp.float32) + p["bo"]
        x = _layernorm(x + attn, p["ln1_g"], p["ln1_b"])
        ff = jnp.maximum(x @ p["w1"].astype(jnp.float32) + p["b1"], 0.0)
        ff = ff @ p["w2"].astype(jnp.float32) + p["b2"]
        x = _layernorm(x + ff, p["ln2_g"], p["ln2_b"])
    logits = x @ canon["w_out"].astype(jnp.float32) + canon["b_out"]
    return jax.nn.log_softmax(logits, axis=-1)


if __name__ == "__main__":
    # Small config: dim_embeddings=32, num_heads=4, num_layers=2, num_tokens=16, seq_length=8
    DIM, HEADS, LAYERS, VOCAB, SEQ, BATCH = 32, 4, 2, 16, 8, 2

    key = jax.random.PRNGKey(0)
    k_tok, k_param = jax.random.split(key)
    tokens = jax.random.randint(k_tok, (BATCH, SEQ), 0, VOCAB, dtype=jnp.int32)

    canon = init_canonical(k_param, DIM, HEADS, LAYERS, VOCAB, SEQ)
    packed = pack_params(canon, HEADS)

    out = decoder_forward(tokens, canon, packed, num_heads=HEADS)
    out = jax.block_until_ready(out)

    ref = ref_forward(tokens, canon, num_heads=HEADS)
    assert out.shape == (BATCH, SEQ, VOCAB), out.shape
    max_err = float(jnp.max(jnp.abs(out - ref)))
    # Kernel uses bf16 matmul inputs with f32 accumulation; reference is pure f32 math on
    # the same (bf16-stored) weights, hence the slightly looser tolerance.
    assert jnp.allclose(out, ref, atol=3e-2, rtol=3e-2), max_err

    print("KERNEL_OK")
</pallas_src>

<mosaic_0001>
module attributes {stable_mosaic.version = 11 : i64} {
  func.func @decoder_kernel(%arg0: i32, %arg1: memref<8x8xf32, #tpu.memory_space<vmem>>, %arg2: memref<1x8x32xf32, #tpu.memory_space<vmem>>, %arg3: memref<2x12x32x8xbf16, #tpu.memory_space<vmem>>, %arg4: memref<2x12x1x8xf32, #tpu.memory_space<vmem>>, %arg5: memref<2x4x8x32xbf16, #tpu.memory_space<vmem>>, %arg6: memref<2x1x32xf32, #tpu.memory_space<vmem>>, %arg7: memref<2x1x32xf32, #tpu.memory_space<vmem>>, %arg8: memref<2x1x32xf32, #tpu.memory_space<vmem>>, %arg9: memref<2x32x128xbf16, #tpu.memory_space<vmem>>, %arg10: memref<2x1x128xf32, #tpu.memory_space<vmem>>, %arg11: memref<2x128x32xbf16, #tpu.memory_space<vmem>>, %arg12: memref<2x1x32xf32, #tpu.memory_space<vmem>>, %arg13: memref<2x1x32xf32, #tpu.memory_space<vmem>>, %arg14: memref<2x1x32xf32, #tpu.memory_space<vmem>>, %arg15: memref<32x128xbf16, #tpu.memory_space<vmem>>, %arg16: memref<1x128xf32, #tpu.memory_space<vmem>>, %arg17: memref<1x8x128xf32, #tpu.memory_space<vmem>>) attributes {dimension_semantics = [#tpu.dimension_semantics<parallel>], iteration_bounds = array<i64: 2>, scalar_prefetch = 0 : i64, scratch_operands = 0 : i64, tpu.core_type = #tpu.core_type<tc>, window_params = [{pipeline_mode = #tpu.pipeline_mode<synchronous>, transform_indices = @transform_0, window_bounds = array<i64: 8, 8>}, {transform_indices = @transform_1, window_bounds = array<i64: 1, 8, 32>}, {pipeline_mode = #tpu.pipeline_mode<synchronous>, transform_indices = @transform_2, window_bounds = array<i64: 2, 12, 32, 8>}, {pipeline_mode = #tpu.pipeline_mode<synchronous>, transform_indices = @transform_3, window_bounds = array<i64: 2, 12, 1, 8>}, {pipeline_mode = #tpu.pipeline_mode<synchronous>, transform_indices = @transform_4, window_bounds = array<i64: 2, 4, 8, 32>}, {pipeline_mode = #tpu.pipeline_mode<synchronous>, transform_indices = @transform_5, window_bounds = array<i64: 2, 1, 32>}, {pipeline_mode = #tpu.pipeline_mode<synchronous>, transform_indices = @transform_6, window_bounds = array<i64: 2, 1, 32>}, {pipeline_mode = #tpu.pipeline_mode<synchronous>, transform_indices = @transform_7, window_bounds = array<i64: 2, 1, 32>}, {pipeline_mode = #tpu.pipeline_mode<synchronous>, transform_indices = @transform_8, window_bounds = array<i64: 2, 32, 128>}, {pipeline_mode = #tpu.pipeline_mode<synchronous>, transform_indices = @transform_9, window_bounds = array<i64: 2, 1, 128>}, {pipeline_mode = #tpu.pipeline_mode<synchronous>, transform_indices = @transform_10, window_bounds = array<i64: 2, 128, 32>}, {pipeline_mode = #tpu.pipeline_mode<synchronous>, transform_indices = @transform_11, window_bounds = array<i64: 2, 1, 32>}, {pipeline_mode = #tpu.pipeline_mode<synchronous>, transform_indices = @transform_12, window_bounds = array<i64: 2, 1, 32>}, {pipeline_mode = #tpu.pipeline_mode<synchronous>, transform_indices = @transform_13, window_bounds = array<i64: 2, 1, 32>}, {pipeline_mode = #tpu.pipeline_mode<synchronous>, transform_indices = @transform_14, window_bounds = array<i64: 32, 128>}, {pipeline_mode = #tpu.pipeline_mode<synchronous>, transform_indices = @transform_15, window_bounds = array<i64: 1, 128>}, {transform_indices = @transform_16, window_bounds = array<i64: 1, 8, 128>}]} {
    %c0 = arith.constant 0 : index
    %c0_0 = arith.constant 0 : index
    %c0_1 = arith.constant 0 : index
    %0 = vector.load %arg2[%c0, %c0_0, %c0_1] : memref<1x8x32xf32, #tpu.memory_space<vmem>>, vector<1x8x32xf32>
    %1 = vector.shape_cast %0 : vector<1x8x32xf32> to vector<8x32xf32>
    %c0_2 = arith.constant 0 : index
    %c0_3 = arith.constant 0 : index
    %2 = vector.load %arg1[%c0_2, %c0_3] : memref<8x8xf32, #tpu.memory_space<vmem>>, vector<8x8xf32>
    %3 = arith.truncf %1 : vector<8x32xf32> to vector<8x32xbf16>
    %4 = vector.shape_cast %3 : vector<8x32xbf16> to vector<1x8x32xbf16>
    %5 = vector.broadcast %4 : vector<1x8x32xbf16> to vector<12x8x32xbf16>
    %c0_4 = arith.constant 0 : index
    %c0_5 = arith.constant 0 : index
    %c0_6 = arith.constant 0 : index
    %c0_7 = arith.constant 0 : index
    %6 = vector.load %arg3[%c0_4, %c0_5, %c0_6, %c0_7] : memref<2x12x32x8xbf16, #tpu.memory_space<vmem>>, vector<1x12x32x8xbf16>
    %7 = vector.shape_cast %6 : vector<1x12x32x8xbf16> to vector<12x32x8xbf16>
    "tpu.trace_start"() <{level = 10 : i32, message = "hsd,hde->hse"}> : () -> ()
    %cst = arith.constant dense<0.000000e+00> : vector<12x8x8xf32>
    %8 = tpu.matmul %5, %7, %cst {dimension_numbers = #tpu.dot_dimension_numbers<[2], [1], [1], [2], [0, 0, 0, 1, 1, 2], [0], [0]>} : vector<12x8x32xbf16>, vector<12x32x8xbf16>, vector<12x8x8xf32> -> vector<12x8x8xf32>
    "tpu.trace_stop"() : () -> ()
    %c0_8 = arith.constant 0 : index
    %c0_9 = arith.constant 0 : index
    %c0_10 = arith.constant 0 : index
    %c0_11 = arith.constant 0 : index
    %9 = vector.load %arg4[%c0_8, %c0_9, %c0_10, %c0_11] : memref<2x12x1x8xf32, #tpu.memory_space<vmem>>, vector<1x12x1x8xf32>
    %10 = vector.shape_cast %9 : vector<1x12x1x8xf32> to vector<12x1x8xf32>
    %11 = vector.broadcast %10 : vector<12x1x8xf32> to vector<12x8x8xf32>
    %12 = arith.addf %8, %11 : vector<12x8x8xf32>
    %13 = vector.extract_strided_slice %12 {offsets = [0, 0, 0], sizes = [4, 8, 8], strides = [1, 1, 1]} : vector<12x8x8xf32> to vector<4x8x8xf32>
    %14 = arith.truncf %13 : vector<4x8x8xf32> to vector<4x8x8xbf16>
    %15 = vector.extract_strided_slice %12 {offsets = [4, 0, 0], sizes = [4, 8, 8], strides = [1, 1, 1]} : vector<12x8x8xf32> to vector<4x8x8xf32>
    %16 = arith.truncf %15 : vector<4x8x8xf32> to vector<4x8x8xbf16>
    %17 = vector.extract_strided_slice %12 {offsets = [8, 0, 0], sizes = [4, 8, 8], strides = [1, 1, 1]} : vector<12x8x8xf32> to vector<4x8x8xf32>
    %18 = arith.truncf %17 : vector<4x8x8xf32> to vector<4x8x8xbf16>
    "tpu.trace_start"() <{level = 10 : i32, message = "hqe,hke->hqk"}> : () -> ()
    %cst_12 = arith.constant dense<0.000000e+00> : vector<4x8x8xf32>
    %19 = tpu.matmul %14, %16, %cst_12 {dimension_numbers = #tpu.dot_dimension_numbers<[2], [2], [1], [1], [0, 0, 0, 1, 1, 1], [0], [0]>} : vector<4x8x8xbf16>, vector<4x8x8xbf16>, vector<4x8x8xf32> -> vector<4x8x8xf32>
    "tpu.trace_stop"() : () -> ()
    %cst_13 = arith.constant 0.353553385 : f32
    %20 = vector.broadcast %cst_13 : f32 to vector<4x8x8xf32>
    %21 = arith.mulf %19, %20 : vector<4x8x8xf32>
    %22 = vector.shape_cast %2 : vector<8x8xf32> to vector<1x8x8xf32>
    %23 = vector.broadcast %22 : vector<1x8x8xf32> to vector<4x8x8xf32>
    %24 = arith.addf %21, %23 : vector<4x8x8xf32>
    %cst_14 = arith.constant dense<0xFF800000> : vector<4x8xf32>
    %25 = vector.multi_reduction <maximumf>, %24, %cst_14 [2] : vector<4x8x8xf32> to vector<4x8xf32>
    %26 = vector.shape_cast %25 : vector<4x8xf32> to vector<4x8x1xf32>
    %27 = vector.broadcast %26 : vector<4x8x1xf32> to vector<4x8x8xf32>
    %28 = arith.subf %24, %27 : vector<4x8x8xf32>
    %29 = math.exp %28 : vector<4x8x8xf32>
    %cst_15 = arith.constant dense<0.000000e+00> : vector<4x8xf32>
    %30 = vector.multi_reduction <add>, %29, %cst_15 [2] : vector<4x8x8xf32> to vector<4x8xf32>
    %31 = vector.shape_cast %30 : vector<4x8xf32> to vector<4x8x1xf32>
    %32 = tpu.reciprocal %31 {approx = true} : vector<4x8x1xf32> -> vector<4x8x1xf32>
    %33 = vector.broadcast %32 : vector<4x8x1xf32> to vector<4x8x8xf32>
    %34 = arith.mulf %29, %33 : vector<4x8x8xf32>
    %35 = arith.truncf %34 : vector<4x8x8xf32> to vector<4x8x8xbf16>
    "tpu.trace_start"() <{level = 10 : i32, message = "hqk,hke->hqe"}> : () -> ()
    %cst_16 = arith.constant dense<0.000000e+00> : vector<4x8x8xf32>
    %36 = tpu.matmul %35, %18, %cst_16 {dimension_numbers = #tpu.dot_dimension_numbers<[2], [1], [1], [2], [0, 0, 0, 1, 1, 2], [0], [0]>} : vector<4x8x8xbf16>, vector<4x8x8xbf16>, vector<4x8x8xf32> -> vector<4x8x8xf32>
    "tpu.trace_stop"() : () -> ()
    %37 = arith.truncf %36 : vector<4x8x8xf32> to vector<4x8x8xbf16>
    %c0_17 = arith.constant 0 : index
    %c0_18 = arith.constant 0 : index
    %c0_19 = arith.constant 0 : index
    %c0_20 = arith.constant 0 : index
    %38 = vector.load %arg5[%c0_17, %c0_18, %c0_19, %c0_20] : memref<2x4x8x32xbf16, #tpu.memory_space<vmem>>, vector<1x4x8x32xbf16>
    %39 = vector.shape_cast %38 : vector<1x4x8x32xbf16> to vector<4x8x32xbf16>
    "tpu.trace_start"() <{level = 10 : i32, message = "hqe,hed->hqd"}> : () -> ()
    %cst_21 = arith.constant dense<0.000000e+00> : vector<4x8x32xf32>
    %40 = tpu.matmul %37, %39, %cst_21 {dimension_numbers = #tpu.dot_dimension_numbers<[2], [1], [1], [2], [0, 0, 0, 1, 1, 2], [0], [0]>} : vector<4x8x8xbf16>, vector<4x8x32xbf16>, vector<4x8x32xf32> -> vector<4x8x32xf32>
    "tpu.trace_stop"() : () -> ()
    %cst_22 = arith.constant dense<0.000000e+00> : vector<8x32xf32>
    %41 = vector.multi_reduction <add>, %40, %cst_22 [0] : vector<4x8x32xf32> to vector<8x32xf32>
    %c0_23 = arith.constant 0 : index
    %c0_24 = arith.constant 0 : index
    %c0_25 = arith.constant 0 : index
    %42 = vector.load %arg6[%c0_23, %c0_24, %c0_25] : memref<2x1x32xf32, #tpu.memory_space<vmem>>, vector<1x1x32xf32>
    %43 = vector.shape_cast %42 : vector<1x1x32xf32> to vector<1x32xf32>
    %44 = vector.broadcast %43 : vector<1x32xf32> to vector<8x32xf32>
    %45 = arith.addf %41, %44 : vector<8x32xf32>
    %46 = arith.addf %1, %45 : vector<8x32xf32>
    %c0_26 = arith.constant 0 : index
    %c0_27 = arith.constant 0 : index
    %c0_28 = arith.constant 0 : index
    %47 = vector.load %arg7[%c0_26, %c0_27, %c0_28] : memref<2x1x32xf32, #tpu.memory_space<vmem>>, vector<1x1x32xf32>
    %48 = vector.shape_cast %47 : vector<1x1x32xf32> to vector<1x32xf32>
    %c0_29 = arith.constant 0 : index
    %c0_30 = arith.constant 0 : index
    %c0_31 = arith.constant 0 : index
    %49 = vector.load %arg8[%c0_29, %c0_30, %c0_31] : memref<2x1x32xf32, #tpu.memory_space<vmem>>, vector<1x1x32xf32>
    %50 = vector.shape_cast %49 : vector<1x1x32xf32> to vector<1x32xf32>
    %cst_32 = arith.constant dense<0.000000e+00> : vector<8xf32>
    %51 = vector.multi_reduction <add>, %46, %cst_32 [1] : vector<8x32xf32> to vector<8xf32>
    %52 = vector.shape_cast %51 : vector<8xf32> to vector<8x1xf32>
    %cst_33 = arith.constant 3.200000e+01 : f32
    %53 = vector.broadcast %cst_33 : f32 to vector<8x1xf32>
    %54 = arith.divf %52, %53 : vector<8x1xf32>
    %55 = vector.broadcast %54 : vector<8x1xf32> to vector<8x32xf32>
    %56 = arith.subf %46, %55 : vector<8x32xf32>
    %57 = arith.mulf %56, %56 : vector<8x32xf32>
    %cst_34 = arith.constant dense<0.000000e+00> : vector<8xf32>
    %58 = vector.multi_reduction <add>, %57, %cst_34 [1] : vector<8x32xf32> to vector<8xf32>
    %59 = vector.shape_cast %58 : vector<8xf32> to vector<8x1xf32>
    %cst_35 = arith.constant 3.200000e+01 : f32
    %60 = vector.broadcast %cst_35 : f32 to vector<8x1xf32>
    %61 = arith.divf %59, %60 : vector<8x1xf32>
    %62 = vector.broadcast %54 : vector<8x1xf32> to vector<8x32xf32>
    %63 = arith.subf %46, %62 : vector<8x32xf32>
    %cst_36 = arith.constant 9.99999974E-6 : f32
    %64 = vector.broadcast %cst_36 : f32 to vector<8x1xf32>
    %65 = arith.addf %61, %64 : vector<8x1xf32>
    %66 = math.rsqrt %65 : vector<8x1xf32>
    %67 = vector.broadcast %66 : vector<8x1xf32> to vector<8x32xf32>
    %68 = arith.mulf %63, %67 : vector<8x32xf32>
    %69 = vector.broadcast %48 : vector<1x32xf32> to vector<8x32xf32>
    %70 = arith.mulf %68, %69 : vector<8x32xf32>
    %71 = vector.broadcast %50 : vector<1x32xf32> to vector<8x32xf32>
    %72 = arith.addf %70, %71 : vector<8x32xf32>
    %73 = arith.truncf %72 : vector<8x32xf32> to vector<8x32xbf16>
    %c0_37 = arith.constant 0 : index
    %c0_38 = arith.constant 0 : index
    %c0_39 = arith.constant 0 : index
    %74 = vector.load %arg9[%c0_37, %c0_38, %c0_39] : memref<2x32x128xbf16, #tpu.memory_space<vmem>>, vector<1x32x128xbf16>
    %75 = vector.shape_cast %74 : vector<1x32x128xbf16> to vector<32x128xbf16>
    %cst_40 = arith.constant dense<0.000000e+00> : vector<8x128xf32>
    %76 = tpu.matmul %73, %75, %cst_40 {dimension_numbers = #tpu.dot_dimension_numbers<[1], [0], [0], [1], [0, 0, 1, 1], [], []>} : vector<8x32xbf16>, vector<32x128xbf16>, vector<8x128xf32> -> vector<8x128xf32>
    %c0_41 = arith.constant 0 : index
    %c0_42 = arith.constant 0 : index
    %c0_43 = arith.constant 0 : index
    %77 = vector.load %arg10[%c0_41, %c0_42, %c0_43] : memref<2x1x128xf32, #tpu.memory_space<vmem>>, vector<1x1x128xf32>
    %78 = vector.shape_cast %77 : vector<1x1x128xf32> to vector<1x128xf32>
    %79 = vector.broadcast %78 : vector<1x128xf32> to vector<8x128xf32>
    %80 = arith.addf %76, %79 : vector<8x128xf32>
    %cst_44 = arith.constant 0.000000e+00 : f32
    %81 = vector.broadcast %cst_44 : f32 to vector<8x128xf32>
    %82 = arith.maximumf %80, %81 : vector<8x128xf32>
    %83 = arith.truncf %82 : vector<8x128xf32> to vector<8x128xbf16>
    %c0_45 = arith.constant 0 : index
    %c0_46 = arith.constant 0 : index
    %c0_47 = arith.constant 0 : index
    %84 = vector.load %arg11[%c0_45, %c0_46, %c0_47] : memref<2x128x32xbf16, #tpu.memory_space<vmem>>, vector<1x128x32xbf16>
    %85 = vector.shape_cast %84 : vector<1x128x32xbf16> to vector<128x32xbf16>
    %cst_48 = arith.constant dense<0.000000e+00> : vector<8x32xf32>
    %86 = tpu.matmul %83, %85, %cst_48 {dimension_numbers = #tpu.dot_dimension_numbers<[1], [0], [0], [1], [0, 0, 1, 1], [], []>} : vector<8x128xbf16>, vector<128x32xbf16>, vector<8x32xf32> -> vector<8x32xf32>
    %c0_49 = arith.constant 0 : index
    %c0_50 = arith.constant 0 : index
    %c0_51 = arith.constant 0 : index
    %87 = vector.load %arg12[%c0_49, %c0_50, %c0_51] : memref<2x1x32xf32, #tpu.memory_space<vmem>>, vector<1x1x32xf32>
    %88 = vector.shape_cast %87 : vector<1x1x32xf32> to vector<1x32xf32>
    %89 = vector.broadcast %88 : vector<1x32xf32> to vector<8x32xf32>
    %90 = arith.addf %86, %89 : vector<8x32xf32>
    %91 = arith.addf %72, %90 : vector<8x32xf32>
    %c0_52 = arith.constant 0 : index
    %c0_53 = arith.constant 0 : index
    %c0_54 = arith.constant 0 : index
    %92 = vector.load %arg13[%c0_52, %c0_53, %c0_54] : memref<2x1x32xf32, #tpu.memory_space<vmem>>, vector<1x1x32xf32>
    %93 = vector.shape_cast %92 : vector<1x1x32xf32> to vector<1x32xf32>
    %c0_55 = arith.constant 0 : index
    %c0_56 = arith.constant 0 : index
    %c0_57 = arith.constant 0 : index
    %94 = vector.load %arg14[%c0_55, %c0_56, %c0_57] : memref<2x1x32xf32, #tpu.memory_space<vmem>>, vector<1x1x32xf32>
    %95 = vector.shape_cast %94 : vector<1x1x32xf32> to vector<1x32xf32>
    %cst_58 = arith.constant dense<0.000000e+00> : vector<8xf32>
    %96 = vector.multi_reduction <add>, %91, %cst_58 [1] : vector<8x32xf32> to vector<8xf32>
    %97 = vector.shape_cast %96 : vector<8xf32> to vector<8x1xf32>
    %cst_59 = arith.constant 3.200000e+01 : f32
    %98 = vector.broadcast %cst_59 : f32 to vector<8x1xf32>
    %99 = arith.divf %97, %98 : vector<8x1xf32>
    %100 = vector.broadcast %99 : vector<8x1xf32> to vector<8x32xf32>
    %101 = arith.subf %91, %100 : vector<8x32xf32>
    %102 = arith.mulf %101, %101 : vector<8x32xf32>
    %cst_60 = arith.constant dense<0.000000e+00> : vector<8xf32>
    %103 = vector.multi_reduction <add>, %102, %cst_60 [1] : vector<8x32xf32> to vector<8xf32>
    %104 = vector.shape_cast %103 : vector<8xf32> to vector<8x1xf32>
    %cst_61 = arith.constant 3.200000e+01 : f32
    %105 = vector.broadcast %cst_61 : f32 to vector<8x1xf32>
    %106 = arith.divf %104, %105 : vector<8x1xf32>
    %107 = vector.broadcast %99 : vector<8x1xf32> to vector<8x32xf32>
    %108 = arith.subf %91, %107 : vector<8x32xf32>
    %cst_62 = arith.constant 9.99999974E-6 : f32
    %109 = vector.broadcast %cst_62 : f32 to vector<8x1xf32>
    %110 = arith.addf %106, %109 : vector<8x1xf32>
    %111 = math.rsqrt %110 : vector<8x1xf32>
    %112 = vector.broadcast %111 : vector<8x1xf32> to vector<8x32xf32>
    %113 = arith.mulf %108, %112 : vector<8x32xf32>
    %114 = vector.broadcast %93 : vector<1x32xf32> to vector<8x32xf32>
    %115 = arith.mulf %113, %114 : vector<8x32xf32>
    %116 = vector.broadcast %95 : vector<1x32xf32> to vector<8x32xf32>
    %117 = arith.addf %115, %116 : vector<8x32xf32>
    %118 = arith.truncf %117 : vector<8x32xf32> to vector<8x32xbf16>
    %119 = vector.shape_cast %118 : vector<8x32xbf16> to vector<1x8x32xbf16>
    %120 = vector.broadcast %119 : vector<1x8x32xbf16> to vector<12x8x32xbf16>
    %c1 = arith.constant 1 : index
    %c0_63 = arith.constant 0 : index
    %c0_64 = arith.constant 0 : index
    %c0_65 = arith.constant 0 : index
    %121 = vector.load %arg3[%c1, %c0_63, %c0_64, %c0_65] : memref<2x12x32x8xbf16, #tpu.memory_space<vmem>>, vector<1x12x32x8xbf16>
    %122 = vector.shape_cast %121 : vector<1x12x32x8xbf16> to vector<12x32x8xbf16>
    "tpu.trace_start"() <{level = 10 : i32, message = "hsd,hde->hse"}> : () -> ()
    %cst_66 = arith.constant dense<0.000000e+00> : vector<12x8x8xf32>
    %123 = tpu.matmul %120, %122, %cst_66 {dimension_numbers = #tpu.dot_dimension_numbers<[2], [1], [1], [2], [0, 0, 0, 1, 1, 2], [0], [0]>} : vector<12x8x32xbf16>, vector<12x32x8xbf16>, vector<12x8x8xf32> -> vector<12x8x8xf32>
    "tpu.trace_stop"() : () -> ()
    %c1_67 = arith.constant 1 : index
    %c0_68 = arith.constant 0 : index
    %c0_69 = arith.constant 0 : index
    %c0_70 = arith.constant 0 : index
    %124 = vector.load %arg4[%c1_67, %c0_68, %c0_69, %c0_70] : memref<2x12x1x8xf32, #tpu.memory_space<vmem>>, vector<1x12x1x8xf32>
    %125 = vector.shape_cast %124 : vector<1x12x1x8xf32> to vector<12x1x8xf32>
    %126 = vector.broadcast %125 : vector<12x1x8xf32> to vector<12x8x8xf32>
    %127 = arith.addf %123, %126 : vector<12x8x8xf32>
    %128 = vector.extract_strided_slice %127 {offsets = [0, 0, 0], sizes = [4, 8, 8], strides = [1, 1, 1]} : vector<12x8x8xf32> to vector<4x8x8xf32>
    %129 = arith.truncf %128 : vector<4x8x8xf32> to vector<4x8x8xbf16>
    %130 = vector.extract_strided_slice %127 {offsets = [4, 0, 0], sizes = [4, 8, 8], strides = [1, 1, 1]} : vector<12x8x8xf32> to vector<4x8x8xf32>
    %131 = arith.truncf %130 : vector<4x8x8xf32> to vector<4x8x8xbf16>
    %132 = vector.extract_strided_slice %127 {offsets = [8, 0, 0], sizes = [4, 8, 8], strides = [1, 1, 1]} : vector<12x8x8xf32> to vector<4x8x8xf32>
    %133 = arith.truncf %132 : vector<4x8x8xf32> to vector<4x8x8xbf16>
    "tpu.trace_start"() <{level = 10 : i32, message = "hqe,hke->hqk"}> : () -> ()
    %cst_71 = arith.constant dense<0.000000e+00> : vector<4x8x8xf32>
    %134 = tpu.matmul %129, %131, %cst_71 {dimension_numbers = #tpu.dot_dimension_numbers<[2], [2], [1], [1], [0, 0, 0, 1, 1, 1], [0], [0]>} : vector<4x8x8xbf16>, vector<4x8x8xbf16>, vector<4x8x8xf32> -> vector<4x8x8xf32>
    "tpu.trace_stop"() : () -> ()
    %cst_72 = arith.constant 0.353553385 : f32
    %135 = vector.broadcast %cst_72 : f32 to vector<4x8x8xf32>
    %136 = arith.mulf %134, %135 : vector<4x8x8xf32>
    %137 = vector.shape_cast %2 : vector<8x8xf32> to vector<1x8x8xf32>
    %138 = vector.broadcast %137 : vector<1x8x8xf32> to vector<4x8x8xf32>
    %139 = arith.addf %136, %138 : vector<4x8x8xf32>
    %cst_73 = arith.constant dense<0xFF800000> : vector<4x8xf32>
    %140 = vector.multi_reduction <maximumf>, %139, %cst_73 [2] : vector<4x8x8xf32> to vector<4x8xf32>
    %141 = vector.shape_cast %140 : vector<4x8xf32> to vector<4x8x1xf32>
    %142 = vector.broadcast %141 : vector<4x8x1xf32> to vector<4x8x8xf32>
    %143 = arith.subf %139, %142 : vector<4x8x8xf32>
    %144 = math.exp %143 : vector<4x8x8xf32>
    %cst_74 = arith.constant dense<0.000000e+00> : vector<4x8xf32>
    %145 = vector.multi_reduction <add>, %144, %cst_74 [2] : vector<4x8x8xf32> to vector<4x8xf32>
    %146 = vector.shape_cast %145 : vector<4x8xf32> to vector<4x8x1xf32>
    %147 = tpu.reciprocal %146 {approx = true} : vector<4x8x1xf32> -> vector<4x8x1xf32>
    %148 = vector.broadcast %147 : vector<4x8x1xf32> to vector<4x8x8xf32>
    %149 = arith.mulf %144, %148 : vector<4x8x8xf32>
    %150 = arith.truncf %149 : vector<4x8x8xf32> to vector<4x8x8xbf16>
    "tpu.trace_start"() <{level = 10 : i32, message = "hqk,hke->hqe"}> : () -> ()
    %cst_75 = arith.constant dense<0.000000e+00> : vector<4x8x8xf32>
    %151 = tpu.matmul %150, %133, %cst_75 {dimension_numbers = #tpu.dot_dimension_numbers<[2], [1], [1], [2], [0, 0, 0, 1, 1, 2], [0], [0]>} : vector<4x8x8xbf16>, vector<4x8x8xbf16>, vector<4x8x8xf32> -> vector<4x8x8xf32>
    "tpu.trace_stop"() : () -> ()
    %152 = arith.truncf %151 : vector<4x8x8xf32> to vector<4x8x8xbf16>
    %c1_76 = arith.constant 1 : index
    %c0_77 = arith.constant 0 : index
    %c0_78 = arith.constant 0 : index
    %c0_79 = arith.constant 0 : index
    %153 = vector.load %arg5[%c1_76, %c0_77, %c0_78, %c0_79] : memref<2x4x8x32xbf16, #tpu.memory_space<vmem>>, vector<1x4x8x32xbf16>
    %154 = vector.shape_cast %153 : vector<1x4x8x32xbf16> to vector<4x8x32xbf16>
    "tpu.trace_start"() <{level = 10 : i32, message = "hqe,hed->hqd"}> : () -> ()
    %cst_80 = arith.constant dense<0.000000e+00> : vector<4x8x32xf32>
    %155 = tpu.matmul %152, %154, %cst_80 {dimension_numbers = #tpu.dot_dimension_numbers<[2], [1], [1], [2], [0, 0, 0, 1, 1, 2], [0], [0]>} : vector<4x8x8xbf16>, vector<4x8x32xbf16>, vector<4x8x32xf32> -> vector<4x8x32xf32>
    "tpu.trace_stop"() : () -> ()
    %cst_81 = arith.constant dense<0.000000e+00> : vector<8x32xf32>
    %156 = vector.multi_reduction <add>, %155, %cst_81 [0] : vector<4x8x32xf32> to vector<8x32xf32>
    %c1_82 = arith.constant 1 : index
    %c0_83 = arith.constant 0 : index
    %c0_84 = arith.constant 0 : index
    %157 = vector.load %arg6[%c1_82, %c0_83, %c0_84] : memref<2x1x32xf32, #tpu.memory_space<vmem>>, vector<1x1x32xf32>
    %158 = vector.shape_cast %157 : vector<1x1x32xf32> to vector<1x32xf32>
    %159 = vector.broadcast %158 : vector<1x32xf32> to vector<8x32xf32>
    %160 = arith.addf %156, %159 : vector<8x32xf32>
    %161 = arith.addf %117, %160 : vector<8x32xf32>
    %c1_85 = arith.constant 1 : index
    %c0_86 = arith.constant 0 : index
    %c0_87 = arith.constant 0 : index
    %162 = vector.load %arg7[%c1_85, %c0_86, %c0_87] : memref<2x1x32xf32, #tpu.memory_space<vmem>>, vector<1x1x32xf32>
    %163 = vector.shape_cast %162 : vector<1x1x32xf32> to vector<1x32xf32>
    %c1_88 = arith.constant 1 : index
    %c0_89 = arith.constant 0 : index
    %c0_90 = arith.constant 0 : index
    %164 = vector.load %arg8[%c1_88, %c0_89, %c0_90] : memref<2x1x32xf32, #tpu.memory_space<vmem>>, vector<1x1x32xf32>
    %165 = vector.shape_cast %164 : vector<1x1x32xf32> to vector<1x32xf32>
    %cst_91 = arith.constant dense<0.000000e+00> : vector<8xf32>
    %166 = vector.multi_reduction <add>, %161, %cst_91 [1] : vector<8x32xf32> to vector<8xf32>
    %167 = vector.shape_cast %166 : vector<8xf32> to vector<8x1xf32>
    %cst_92 = arith.constant 3.200000e+01 : f32
    %168 = vector.broadcast %cst_92 : f32 to vector<8x1xf32>
    %169 = arith.divf %167, %168 : vector<8x1xf32>
    %170 = vector.broadcast %169 : vector<8x1xf32> to vector<8x32xf32>
    %171 = arith.subf %161, %170 : vector<8x32xf32>
    %172 = arith.mulf %171, %171 : vector<8x32xf32>
    %cst_93 = arith.constant dense<0.000000e+00> : vector<8xf32>
    %173 = vector.multi_reduction <add>, %172, %cst_93 [1] : vector<8x32xf32> to vector<8xf32>
    %174 = vector.shape_cast %173 : vector<8xf32> to vector<8x1xf32>
    %cst_94 = arith.constant 3.200000e+01 : f32
    %175 = vector.broadcast %cst_94 : f32 to vector<8x1xf32>
    %176 = arith.divf %174, %175 : vector<8x1xf32>
    %177 = vector.broadcast %169 : vector<8x1xf32> to vector<8x32xf32>
    %178 = arith.subf %161, %177 : vector<8x32xf32>
    %cst_95 = arith.constant 9.99999974E-6 : f32
    %179 = vector.broadcast %cst_95 : f32 to vector<8x1xf32>
    %180 = arith.addf %176, %179 : vector<8x1xf32>
    %181 = math.rsqrt %180 : vector<8x1xf32>
    %182 = vector.broadcast %181 : vector<8x1xf32> to vector<8x32xf32>
    %183 = arith.mulf %178, %182 : vector<8x32xf32>
    %184 = vector.broadcast %163 : vector<1x32xf32> to vector<8x32xf32>
    %185 = arith.mulf %183, %184 : vector<8x32xf32>
    %186 = vector.broadcast %165 : vector<1x32xf32> to vector<8x32xf32>
    %187 = arith.addf %185, %186 : vector<8x32xf32>
    %188 = arith.truncf %187 : vector<8x32xf32> to vector<8x32xbf16>
    %c1_96 = arith.constant 1 : index
    %c0_97 = arith.constant 0 : index
    %c0_98 = arith.constant 0 : index
    %189 = vector.load %arg9[%c1_96, %c0_97, %c0_98] : memref<2x32x128xbf16, #tpu.memory_space<vmem>>, vector<1x32x128xbf16>
    %190 = vector.shape_cast %189 : vector<1x32x128xbf16> to vector<32x128xbf16>
    %cst_99 = arith.constant dense<0.000000e+00> : vector<8x128xf32>
    %191 = tpu.matmul %188, %190, %cst_99 {dimension_numbers = #tpu.dot_dimension_numbers<[1], [0], [0], [1], [0, 0, 1, 1], [], []>} : vector<8x32xbf16>, vector<32x128xbf16>, vector<8x128xf32> -> vector<8x128xf32>
    %c1_100 = arith.constant 1 : index
    %c0_101 = arith.constant 0 : index
    %c0_102 = arith.constant 0 : index
    %192 = vector.load %arg10[%c1_100, %c0_101, %c0_102] : memref<2x1x128xf32, #tpu.memory_space<vmem>>, vector<1x1x128xf32>
    %193 = vector.shape_cast %192 : vector<1x1x128xf32> to vector<1x128xf32>
    %194 = vector.broadcast %193 : vector<1x128xf32> to vector<8x128xf32>
    %195 = arith.addf %191, %194 : vector<8x128xf32>
    %cst_103 = arith.constant 0.000000e+00 : f32
    %196 = vector.broadcast %cst_103 : f32 to vector<8x128xf32>
    %197 = arith.maximumf %195, %196 : vector<8x128xf32>
    %198 = arith.truncf %197 : vector<8x128xf32> to vector<8x128xbf16>
    %c1_104 = arith.constant 1 : index
    %c0_105 = arith.constant 0 : index
    %c0_106 = arith.constant 0 : index
    %199 = vector.load %arg11[%c1_104, %c0_105, %c0_106] : memref<2x128x32xbf16, #tpu.memory_space<vmem>>, vector<1x128x32xbf16>
    %200 = vector.shape_cast %199 : vector<1x128x32xbf16> to vector<128x32xbf16>
    %cst_107 = arith.constant dense<0.000000e+00> : vector<8x32xf32>
    %201 = tpu.matmul %198, %200, %cst_107 {dimension_numbers = #tpu.dot_dimension_numbers<[1], [0], [0], [1], [0, 0, 1, 1], [], []>} : vector<8x128xbf16>, vector<128x32xbf16>, vector<8x32xf32> -> vector<8x32xf32>
    %c1_108 = arith.constant 1 : index
    %c0_109 = arith.constant 0 : index
    %c0_110 = arith.constant 0 : index
    %202 = vector.load %arg12[%c1_108, %c0_109, %c0_110] : memref<2x1x32xf32, #tpu.memory_space<vmem>>, vector<1x1x32xf32>
    %203 = vector.shape_cast %202 : vector<1x1x32xf32> to vector<1x32xf32>
    %204 = vector.broadcast %203 : vector<1x32xf32> to vector<8x32xf32>
    %205 = arith.addf %201, %204 : vector<8x32xf32>
    %206 = arith.addf %187, %205 : vector<8x32xf32>
    %c1_111 = arith.constant 1 : index
    %c0_112 = arith.constant 0 : index
    %c0_113 = arith.constant 0 : index
    %207 = vector.load %arg13[%c1_111, %c0_112, %c0_113] : memref<2x1x32xf32, #tpu.memory_space<vmem>>, vector<1x1x32xf32>
    %208 = vector.shape_cast %207 : vector<1x1x32xf32> to vector<1x32xf32>
    %c1_114 = arith.constant 1 : index
    %c0_115 = arith.constant 0 : index
    %c0_116 = arith.constant 0 : index
    %209 = vector.load %arg14[%c1_114, %c0_115, %c0_116] : memref<2x1x32xf32, #tpu.memory_space<vmem>>, vector<1x1x32xf32>
    %210 = vector.shape_cast %209 : vector<1x1x32xf32> to vector<1x32xf32>
    %cst_117 = arith.constant dense<0.000000e+00> : vector<8xf32>
    %211 = vector.multi_reduction <add>, %206, %cst_117 [1] : vector<8x32xf32> to vector<8xf32>
    %212 = vector.shape_cast %211 : vector<8xf32> to vector<8x1xf32>
    %cst_118 = arith.constant 3.200000e+01 : f32
    %213 = vector.broadcast %cst_118 : f32 to vector<8x1xf32>
    %214 = arith.divf %212, %213 : vector<8x1xf32>
    %215 = vector.broadcast %214 : vector<8x1xf32> to vector<8x32xf32>
    %216 = arith.subf %206, %215 : vector<8x32xf32>
    %217 = arith.mulf %216, %216 : vector<8x32xf32>
    %cst_119 = arith.constant dense<0.000000e+00> : vector<8xf32>
    %218 = vector.multi_reduction <add>, %217, %cst_119 [1] : vector<8x32xf32> to vector<8xf32>
    %219 = vector.shape_cast %218 : vector<8xf32> to vector<8x1xf32>
    %cst_120 = arith.constant 3.200000e+01 : f32
    %220 = vector.broadcast %cst_120 : f32 to vector<8x1xf32>
    %221 = arith.divf %219, %220 : vector<8x1xf32>
    %222 = vector.broadcast %214 : vector<8x1xf32> to vector<8x32xf32>
    %223 = arith.subf %206, %222 : vector<8x32xf32>
    %cst_121 = arith.constant 9.99999974E-6 : f32
    %224 = vector.broadcast %cst_121 : f32 to vector<8x1xf32>
    %225 = arith.addf %221, %224 : vector<8x1xf32>
    %226 = math.rsqrt %225 : vector<8x1xf32>
    %227 = vector.broadcast %226 : vector<8x1xf32> to vector<8x32xf32>
    %228 = arith.mulf %223, %227 : vector<8x32xf32>
    %229 = vector.broadcast %208 : vector<1x32xf32> to vector<8x32xf32>
    %230 = arith.mulf %228, %229 : vector<8x32xf32>
    %231 = vector.broadcast %210 : vector<1x32xf32> to vector<8x32xf32>
    %232 = arith.addf %230, %231 : vector<8x32xf32>
    %233 = arith.truncf %232 : vector<8x32xf32> to vector<8x32xbf16>
    %c0_122 = arith.constant 0 : index
    %c0_123 = arith.constant 0 : index
    %234 = vector.load %arg15[%c0_122, %c0_123] : memref<32x128xbf16, #tpu.memory_space<vmem>>, vector<32x128xbf16>
    %cst_124 = arith.constant dense<0.000000e+00> : vector<8x128xf32>
    %235 = tpu.matmul %233, %234, %cst_124 {dimension_numbers = #tpu.dot_dimension_numbers<[1], [0], [0], [1], [0, 0, 1, 1], [], []>} : vector<8x32xbf16>, vector<32x128xbf16>, vector<8x128xf32> -> vector<8x128xf32>
    %c0_125 = arith.constant 0 : index
    %c0_126 = arith.constant 0 : index
    %236 = vector.load %arg16[%c0_125, %c0_126] : memref<1x128xf32, #tpu.memory_space<vmem>>, vector<1x128xf32>
    %237 = vector.broadcast %236 : vector<1x128xf32> to vector<8x128xf32>
    %238 = arith.addf %235, %237 : vector<8x128xf32>
    %cst_127 = arith.constant dense<0xFF800000> : vector<8xf32>
    %239 = vector.multi_reduction <maximumf>, %238, %cst_127 [1] : vector<8x128xf32> to vector<8xf32>
    %240 = vector.shape_cast %239 : vector<8xf32> to vector<8x1xf32>
    %241 = vector.broadcast %240 : vector<8x1xf32> to vector<8x128xf32>
    %242 = arith.subf %238, %241 : vector<8x128xf32>
    %243 = math.exp %242 : vector<8x128xf32>
    %cst_128 = arith.constant dense<0.000000e+00> : vector<8xf32>
    %244 = vector.multi_reduction <add>, %243, %cst_128 [1] : vector<8x128xf32> to vector<8xf32>
    %245 = vector.shape_cast %244 : vector<8xf32> to vector<8x1xf32>
    %246 = math.log %245 : vector<8x1xf32>
    %247 = vector.broadcast %246 : vector<8x1xf32> to vector<8x128xf32>
    %248 = arith.subf %242, %247 : vector<8x128xf32>
    %c0_129 = arith.constant 0 : index
    %c0_130 = arith.constant 0 : index
    %c0_131 = arith.constant 0 : index
    %249 = vector.load %arg17[%c0_129, %c0_130, %c0_131] : memref<1x8x128xf32, #tpu.memory_space<vmem>>, vector<1x8x128xf32>
    %250 = vector.shape_cast %249 : vector<1x8x128xf32> to vector<8x128xf32>
    %251 = vector.shape_cast %248 : vector<8x128xf32> to vector<1x8x128xf32>
    tpu.vector_store %arg17[%c0_129, %c0_130, %c0_131], %251 {strides = array<i32>} : memref<1x8x128xf32, #tpu.memory_space<vmem>>, vector<1x8x128xf32>,
    return
  }
  func.func @transform_0(%arg0: i32) -> (i32, i32) {
    %c0_i32 = arith.constant 0 : i32
    %c0_i32_0 = arith.constant 0 : i32
    %c0_i32_1 = arith.constant 0 : i32
    return %c0_i32, %c0_i32_0 : i32, i32
  }
  func.func @transform_1(%arg0: i32) -> (i32, i32, i32) {
    %c0_i32 = arith.constant 0 : i32
    %c0_i32_0 = arith.constant 0 : i32
    %c0_i32_1 = arith.constant 0 : i32
    return %arg0, %c0_i32, %c0_i32_0 : i32, i32, i32
  }
  func.func @transform_2(%arg0: i32) -> (i32, i32, i32, i32) {
    %c0_i32 = arith.constant 0 : i32
    %c0_i32_0 = arith.constant 0 : i32
    %c0_i32_1 = arith.constant 0 : i32
    %c0_i32_2 = arith.constant 0 : i32
    %c0_i32_3 = arith.constant 0 : i32
    return %c0_i32, %c0_i32_0, %c0_i32_1, %c0_i32_2 : i32, i32, i32, i32
  }
  func.func @transform_3(%arg0: i32) -> (i32, i32, i32, i32) {
    %c0_i32 = arith.constant 0 : i32
    %c0_i32_0 = arith.constant 0 : i32
    %c0_i32_1 = arith.constant 0 : i32
    %c0_i32_2 = arith.constant 0 : i32
    %c0_i32_3 = arith.constant 0 : i32
    return %c0_i32, %c0_i32_0, %c0_i32_1, %c0_i32_2 : i32, i32, i32, i32
  }
  func.func @transform_4(%arg0: i32) -> (i32, i32, i32, i32) {
    %c0_i32 = arith.constant 0 : i32
    %c0_i32_0 = arith.constant 0 : i32
    %c0_i32_1 = arith.constant 0 : i32
    %c0_i32_2 = arith.constant 0 : i32
    %c0_i32_3 = arith.constant 0 : i32
    return %c0_i32, %c0_i32_0, %c0_i32_1, %c0_i32_2 : i32, i32, i32, i32
  }
  func.func @transform_5(%arg0: i32) -> (i32, i32, i32) {
    %c0_i32 = arith.constant 0 : i32
    %c0_i32_0 = arith.constant 0 : i32
    %c0_i32_1 = arith.constant 0 : i32
    %c0_i32_2 = arith.constant 0 : i32
    return %c0_i32, %c0_i32_0, %c0_i32_1 : i32, i32, i32
  }
  func.func @transform_6(%arg0: i32) -> (i32, i32, i32) {
    %c0_i32 = arith.constant 0 : i32
    %c0_i32_0 = arith.constant 0 : i32
    %c0_i32_1 = arith.constant 0 : i32
    %c0_i32_2 = arith.constant 0 : i32
    return %c0_i32, %c0_i32_0, %c0_i32_1 : i32, i32, i32
  }
  func.func @transform_7(%arg0: i32) -> (i32, i32, i32) {
    %c0_i32 = arith.constant 0 : i32
    %c0_i32_0 = arith.constant 0 : i32
    %c0_i32_1 = arith.constant 0 : i32
    %c0_i32_2 = arith.constant 0 : i32
    return %c0_i32, %c0_i32_0, %c0_i32_1 : i32, i32, i32
  }
  func.func @transform_8(%arg0: i32) -> (i32, i32, i32) {
    %c0_i32 = arith.constant 0 : i32
    %c0_i32_0 = arith.constant 0 : i32
    %c0_i32_1 = arith.constant 0 : i32
    %c0_i32_2 = arith.constant 0 : i32
    return %c0_i32, %c0_i32_0, %c0_i32_1 : i32, i32, i32
  }
  func.func @transform_9(%arg0: i32) -> (i32, i32, i32) {
    %c0_i32 = arith.constant 0 : i32
    %c0_i32_0 = arith.constant 0 : i32
    %c0_i32_1 = arith.constant 0 : i32
    %c0_i32_2 = arith.constant 0 : i32
    return %c0_i32, %c0_i32_0, %c0_i32_1 : i32, i32, i32
  }
  func.func @transform_10(%arg0: i32) -> (i32, i32, i32) {
    %c0_i32 = arith.constant 0 : i32
    %c0_i32_0 = arith.constant 0 : i32
    %c0_i32_1 = arith.constant 0 : i32
    %c0_i32_2 = arith.constant 0 : i32
    return %c0_i32, %c0_i32_0, %c0_i32_1 : i32, i32, i32
  }
  func.func @transform_11(%arg0: i32) -> (i32, i32, i32) {
    %c0_i32 = arith.constant 0 : i32
    %c0_i32_0 = arith.constant 0 : i32
    %c0_i32_1 = arith.constant 0 : i32
    %c0_i32_2 = arith.constant 0 : i32
    return %c0_i32, %c0_i32_0, %c0_i32_1 : i32, i32, i32
  }
  func.func @transform_12(%arg0: i32) -> (i32, i32, i32) {
    %c0_i32 = arith.constant 0 : i32
    %c0_i32_0 = arith.constant 0 : i32
    %c0_i32_1 = arith.constant 0 : i32
    %c0_i32_2 = arith.constant 0 : i32
    return %c0_i32, %c0_i32_0, %c0_i32_1 : i32, i32, i32
  }
  func.func @transform_13(%arg0: i32) -> (i32, i32, i32) {
    %c0_i32 = arith.constant 0 : i32
    %c0_i32_0 = arith.constant 0 : i32
    %c0_i32_1 = arith.constant 0 : i32
    %c0_i32_2 = arith.constant 0 : i32
    return %c0_i32, %c0_i32_0, %c0_i32_1 : i32, i32, i32
  }
  func.func @transform_14(%arg0: i32) -> (i32, i32) {
    %c0_i32 = arith.constant 0 : i32
    %c0_i32_0 = arith.constant 0 : i32
    %c0_i32_1 = arith.constant 0 : i32
    return %c0_i32, %c0_i32_0 : i32, i32
  }
  func.func @transform_15(%arg0: i32) -> (i32, i32) {
    %c0_i32 = arith.constant 0 : i32
    %c0_i32_0 = arith.constant 0 : i32
    %c0_i32_1 = arith.constant 0 : i32
    return %c0_i32, %c0_i32_0 : i32, i32
  }
  func.func @transform_16(%arg0: i32) -> (i32, i32, i32) {
    %c0_i32 = arith.constant 0 : i32
    %c0_i32_0 = arith.constant 0 : i32
    %c0_i32_1 = arith.constant 0 : i32
    return %arg0, %c0_i32, %c0_i32_0 : i32, i32, i32
  }
}

</mosaic_0001>

<llo_original>
// kernel: tpu_custom_call.1
$region0: #{tpu_custom_call.1}
  #allocation0 [shape = 'u32[]', space=smem, size = 0x4, offset = 0x4, fixed_abs, tag = 'smem constant byte address 0x4 - core index']
  #allocation1 [shape = 'u32[144,128]{1,0:T(1,128)}', space=vmem, size = 0x12000, scoped, tag = 'internal scratch']
  %s0 = inlined_call_operand.vmem [shape: f32[8,8], index: 0, kind: input, shape index: {}]
  %s1 = inlined_call_operand.vmem [shape: f32[2,8,32], index: 1, kind: input, shape index: {}]
  %s2 = inlined_call_operand.vmem [shape: bf16[2,12,32,8], index: 2, kind: input, shape index: {}]
  %s3 = inlined_call_operand.vmem [shape: f32[2,12,1,8], index: 3, kind: input, shape index: {}]
  %s4 = inlined_call_operand.vmem [shape: bf16[2,4,8,32], index: 4, kind: input, shape index: {}]
  %s5 = inlined_call_operand.vmem [shape: f32[2,1,32], index: 5, kind: input, shape index: {}]
  %s6 = inlined_call_operand.vmem [shape: f32[2,1,32], index: 6, kind: input, shape index: {}]
  %s7 = inlined_call_operand.vmem [shape: f32[2,1,32], index: 7, kind: input, shape index: {}]
  %s8 = inlined_call_operand.vmem [shape: bf16[2,32,128], index: 8, kind: input, shape index: {}]
  %s9 = inlined_call_operand.vmem [shape: f32[2,1,128], index: 9, kind: input, shape index: {}]
  %s10 = inlined_call_operand.vmem [shape: bf16[2,128,32], index: 10, kind: input, shape index: {}]
  %s11 = inlined_call_operand.vmem [shape: f32[2,1,32], index: 11, kind: input, shape index: {}]
  %s12 = inlined_call_operand.vmem [shape: f32[2,1,32], index: 12, kind: input, shape index: {}]
  %s13 = inlined_call_operand.vmem [shape: f32[2,1,32], index: 13, kind: input, shape index: {}]
  %s14 = inlined_call_operand.vmem [shape: bf16[32,128], index: 14, kind: input, shape index: {}]
  %s15 = inlined_call_operand.vmem [shape: f32[1,128], index: 15, kind: input, shape index: {}]
  %s16 = inlined_call_operand.hbm [shape: f32[2,8,128], index: 16, kind: output, shape index: {}]
  %s17 = sld [smem:[#allocation0]]
  $region97: #{tpu_custom_call.1} parent=0
    _
  %s19 = ssub.s32 1, %s17
  %s20 = scalar_select 0, %s19, %s17
  $region1: #{tpu_custom_call.1} parent=0
    #allocation2 [shape = 'u8[8192]{0}', space=vmem, size = 0x2000, scoped, tag = 'output window, operand 0']
    #allocation3 [shape = 's32[2]{0}', space=sflag, size = 0x8, scoped, tag = 'scoped memory for tpu_custom_call.1']
    %21 = vsyncpa [#allocation3], 0
    %s22 = scalar_lea.sflag [#allocation3], 1
    %23 = vsyncpa %s22, 0
    loop: start=0, step=1, limit=4
    $region2: #{tpu_custom_call.1} parent=1 // loop_pre_header
      _
    $region3: #{tpu_custom_call.1} parent=1 // loop_header
      %s25 = sphi 0, %s29
      %p26 = scmp.ge.s32.totalorder %s25, 4
      %s33 = sphi 0, %s33
      %s35 = sphi 0, %s33
      %s36 = sphi 0, %s35
      %s50 = sphi 0, %s36
      %s56 = sphi 0, %s58
      %s59 = sphi 0, %s56
      %s60 = sphi 0, %s59
      %s76 = sphi 0, %s60
      %s80 = sphi 0, %s80
      %s82 = sphi 0, %s80
      %s83 = sphi 0, %s82
      %s97 = sphi 0, %s83
      %s101 = sphi 0, %s101
      %s103 = sphi 0, %s101
      %s104 = sphi 0, %s103
      %s118 = sphi 0, %s104
      %s122 = sphi 0, %s122
      %s124 = sphi 0, %s122
      %s125 = sphi 0, %s124
      %s139 = sphi 0, %s125
      %s143 = sphi 0, %s143
      %s145 = sphi 0, %s143
      %s146 = sphi 0, %s145
      %s160 = sphi 0, %s146
      %s164 = sphi 0, %s164
      %s166 = sphi 0, %s164
      %s167 = sphi 0, %s166
      %s181 = sphi 0, %s167
      %s185 = sphi 0, %s185
      %s187 = sphi 0, %s185
      %s188 = sphi 0, %s187
      %s202 = sphi 0, %s188
      %s206 = sphi 0, %s206
      %s208 = sphi 0, %s206
      %s209 = sphi 0, %s208
      %s223 = sphi 0, %s209
      %s227 = sphi 0, %s227
      %s229 = sphi 0, %s227
      %s230 = sphi 0, %s229
      %s244 = sphi 0, %s230
      %s248 = sphi 0, %s248
      %s250 = sphi 0, %s248
      %s251 = sphi 0, %s250
      %s265 = sphi 0, %s251
      %s269 = sphi 0, %s269
      %s271 = sphi 0, %s269
      %s272 = sphi 0, %s271
      %s286 = sphi 0, %s272
      %s290 = sphi 0, %s290
      %s292 = sphi 0, %s290
      %s293 = sphi 0, %s292
      %s307 = sphi 0, %s293
      %s311 = sphi 0, %s311
      %s313 = sphi 0, %s311
      %s314 = sphi 0, %s313
      %s328 = sphi 0, %s314
      %s332 = sphi 0, %s332
      %s334 = sphi 0, %s332
      %s335 = sphi 0, %s334
      %s349 = sphi 0, %s335
      %s353 = sphi 0, %s353
      %s355 = sphi 0, %s353
      %s356 = sphi 0, %s355
      %s370 = sphi 0, %s356
      %s376 = sphi 0, %s378
      %s379 = sphi 0, %s376
      %s380 = sphi 0, %s379
      %s396 = sphi 0, %s380
    $region4: #{tpu_custom_call.1} parent=1 // loop_header_branch
      %28 = sbr.rel (%p26) target = $region8
    $region5: #{tpu_custom_call.1} parent=1 // loop_body
      %s30 = ssub.s32 %s25, 1
      %s31 = ssub.s32 %s25, 2
      %s32 = sadd.s32 %s25, 1
      %s34 = sadd.s32 %s33, 1
      %p37 = scmp.eq.s32.totalorder %s25, 1
      %p38 = scmp.ne.s32.totalorder %s33, %s35
      %p39 = scmp.eq.s32.totalorder %s25, 0
      %p40 = por %p38, %p39
      %p41 = scmp.ne.s32.totalorder %s33, %s35
      %p42 = scmp.eq.s32.totalorder %s30, 1
      %p43 = por %p41, %p42
      %p44 = scmp.ne.s32.totalorder %s35, %s36
      %p45 = scmp.eq.s32.totalorder %s30, 0
      %p46 = por %p44, %p45
      %p47 = scmp.ne.s32.totalorder %s35, %s36
      %p48 = scmp.eq.s32.totalorder %s31, 1
      %p49 = por %p47, %p48
      %p51 = scmp.ne.s32.totalorder %s36, %s50
      %p52 = scmp.eq.s32.totalorder %s31, 0
      %p53 = por %p51, %p52
      %s54 = ssub.s32 %s25, %s32
      %p55 = scmp.eq.s32.totalorder %s54, 0
      %s57 = sadd.s32 %s56, 1
      %s58 = scalar_select %p55, %s56, %s57
      %p61 = pneg %p55
      %p62 = scmp.eq.s32.totalorder %s25, 1
      %p63 = por %p61, %p62
      %p64 = scmp.ne.s32.totalorder %s56, %s59
      %p65 = scmp.eq.s32.totalorder %s25, 0
      %p66 = por %p64, %p65
      %p67 = scmp.ne.s32.totalorder %s56, %s59
      %p68 = scmp.eq.s32.totalorder %s30, 1
      %p69 = por %p67, %p68
      %p70 = scmp.ne.s32.totalorder %s59, %s60
      %p71 = scmp.eq.s32.totalorder %s30, 0
      %p72 = por %p70, %p71
      %p73 = scmp.ne.s32.totalorder %s59, %s60
      %p74 = scmp.eq.s32.totalorder %s31, 1
      %p75 = por %p73, %p74
      %p77 = scmp.ne.s32.totalorder %s60, %s76
      %p78 = scmp.eq.s32.totalorder %s31, 0
      %p79 = por %p77, %p78
      %s81 = sadd.s32 %s80, 1
      %p84 = scmp.eq.s32.totalorder %s25, 1
      %p85 = scmp.ne.s32.totalorder %s80, %s82
      %p86 = scmp.eq.s32.totalorder %s25, 0
      %p87 = por %p85, %p86
      %p88 = scmp.ne.s32.totalorder %s80, %s82
      %p89 = scmp.eq.s32.totalorder %s30, 1
      %p90 = por %p88, %p89
      %p91 = scmp.ne.s32.totalorder %s82, %s83
      %p92 = scmp.eq.s32.totalorder %s30, 0
      %p93 = por %p91, %p92
      %p94 = scmp.ne.s32.totalorder %s82, %s83
      %p95 = scmp.eq.s32.totalorder %s31, 1
      %p96 = por %p94, %p95
      %p98 = scmp.ne.s32.totalorder %s83, %s97
      %p99 = scmp.eq.s32.totalorder %s31, 0
      %p100 = por %p98, %p99
      %s102 = sadd.s32 %s101, 1
      %p105 = scmp.eq.s32.totalorder %s25, 1
      %p106 = scmp.ne.s32.totalorder %s101, %s103
      %p107 = scmp.eq.s32.totalorder %s25, 0
      %p108 = por %p106, %p107
      %p109 = scmp.ne.s32.totalorder %s101, %s103
      %p110 = scmp.eq.s32.totalorder %s30, 1
      %p111 = por %p109, %p110
      %p112 = scmp.ne.s32.totalorder %s103, %s104
      %p113 = scmp.eq.s32.totalorder %s30, 0
      %p114 = por %p112, %p113
      %p115 = scmp.ne.s32.totalorder %s103, %s104
      %p116 = scmp.eq.s32.totalorder %s31, 1
      %p117 = por %p115, %p116
      %p119 = scmp.ne.s32.totalorder %s104, %s118
      %p120 = scmp.eq.s32.totalorder %s31, 0
      %p121 = por %p119, %p120
      %s123 = sadd.s32 %s122, 1
      %p126 = scmp.eq.s32.totalorder %s25, 1
      %p127 = scmp.ne.s32.totalorder %s122, %s124
      %p128 = scmp.eq.s32.totalorder %s25, 0
      %p129 = por %p127, %p128
      %p130 = scmp.ne.s32.totalorder %s122, %s124
      %p131 = scmp.eq.s32.totalorder %s30, 1
      %p132 = por %p130, %p131
      %p133 = scmp.ne.s32.totalorder %s124, %s125
      %p134 = scmp.eq.s32.totalorder %s30, 0
      %p135 = por %p133, %p134
      %p136 = scmp.ne.s32.totalorder %s124, %s125
      %p137 = scmp.eq.s32.totalorder %s31, 1
      %p138 = por %p136, %p137
      %p140 = scmp.ne.s32.totalorder %s125, %s139
      %p141 = scmp.eq.s32.totalorder %s31, 0
      %p142 = por %p140, %p141
      %s144 = sadd.s32 %s143, 1
      %p147 = scmp.eq.s32.totalorder %s25, 1
      %p148 = scmp.ne.s32.totalorder %s143, %s145
      %p149 = scmp.eq.s32.totalorder %s25, 0
      %p150 = por %p148, %p149
      %p151 = scmp.ne.s32.totalorder %s143, %s145
      %p152 = scmp.eq.s32.totalorder %s30, 1
      %p153 = por %p151, %p152
      %p154 = scmp.ne.s32.totalorder %s145, %s146
      %p155 = scmp.eq.s32.totalorder %s30, 0
      %p156 = por %p154, %p155
      %p157 = scmp.ne.s32.totalorder %s145, %s146
      %p158 = scmp.eq.s32.totalorder %s31, 1
      %p159 = por %p157, %p158
      %p161 = scmp.ne.s32.totalorder %s146, %s160
      %p162 = scmp.eq.s32.totalorder %s31, 0
      %p163 = por %p161, %p162
      %s165 = sadd.s32 %s164, 1
      %p168 = scmp.eq.s32.totalorder %s25, 1
      %p169 = scmp.ne.s32.totalorder %s164, %s166
      %p170 = scmp.eq.s32.totalorder %s25, 0
      %p171 = por %p169, %p170
      %p172 = scmp.ne.s32.totalorder %s164, %s166
      %p173 = scmp.eq.s32.totalorder %s30, 1
      %p174 = por %p172, %p173
      %p175 = scmp.ne.s32.totalorder %s166, %s167
      %p176 = scmp.eq.s32.totalorder %s30, 0
      %p177 = por %p175, %p176
      %p178 = scmp.ne.s32.totalorder %s166, %s167
      %p179 = scmp.eq.s32.totalorder %s31, 1
      %p180 = por %p178, %p179
      %p182 = scmp.ne.s32.totalorder %s167, %s181
      %p183 = scmp.eq.s32.totalorder %s31, 0
      %p184 = por %p182, %p183
      %s186 = sadd.s32 %s185, 1
      %p189 = scmp.eq.s32.totalorder %s25, 1
      %p190 = scmp.ne.s32.totalorder %s185, %s187
      %p191 = scmp.eq.s32.totalorder %s25, 0
      %p192 = por %p190, %p191
      %p193 = scmp.ne.s32.totalorder %s185, %s187
      %p194 = scmp.eq.s32.totalorder %s30, 1
      %p195 = por %p193, %p194
      %p196 = scmp.ne.s32.totalorder %s187, %s188
      %p197 = scmp.eq.s32.totalorder %s30, 0
      %p198 = por %p196, %p197
      %p199 = scmp.ne.s32.totalorder %s187, %s188
      %p200 = scmp.eq.s32.totalorder %s31, 1
      %p201 = por %p199, %p200
      %p203 = scmp.ne.s32.totalorder %s188, %s202
      %p204 = scmp.eq.s32.totalorder %s31, 0
      %p205 = por %p203, %p204
      %s207 = sadd.s32 %s206, 1
      %p210 = scmp.eq.s32.totalorder %s25, 1
      %p211 = scmp.ne.s32.totalorder %s206, %s208
      %p212 = scmp.eq.s32.totalorder %s25, 0
      %p213 = por %p211, %p212
      %p214 = scmp.ne.s32.totalorder %s206, %s208
      %p215 = scmp.eq.s32.totalorder %s30, 1
      %p216 = por %p214, %p215
      %p217 = scmp.ne.s32.totalorder %s208, %s209
      %p218 = scmp.eq.s32.totalorder %s30, 0
      %p219 = por %p217, %p218
      %p220 = scmp.ne.s32.totalorder %s208, %s209
      %p221 = scmp.eq.s32.totalorder %s31, 1
      %p222 = por %p220, %p221
      %p224 = scmp.ne.s32.totalorder %s209, %s223
      %p225 = scmp.eq.s32.totalorder %s31, 0
      %p226 = por %p224, %p225
      %s228 = sadd.s32 %s227, 1
      %p231 = scmp.eq.s32.totalorder %s25, 1
      %p232 = scmp.ne.s32.totalorder %s227, %s229
      %p233 = scmp.eq.s32.totalorder %s25, 0
      %p234 = por %p232, %p233
      %p235 = scmp.ne.s32.totalorder %s227, %s229
      %p236 = scmp.eq.s32.totalorder %s30, 1
      %p237 = por %p235, %p236
      %p238 = scmp.ne.s32.totalorder %s229, %s230
      %p239 = scmp.eq.s32.totalorder %s30, 0
      %p240 = por %p238, %p239
      %p241 = scmp.ne.s32.totalorder %s229, %s230
      %p242 = scmp.eq.s32.totalorder %s31, 1
      %p243 = por %p241, %p242
      %p245 = scmp.ne.s32.totalorder %s230, %s244
      %p246 = scmp.eq.s32.totalorder %s31, 0
      %p247 = por %p245, %p246
      %s249 = sadd.s32 %s248, 1
      %p252 = scmp.eq.s32.totalorder %s25, 1
      %p253 = scmp.ne.s32.totalorder %s248, %s250
      %p254 = scmp.eq.s32.totalorder %s25, 0
      %p255 = por %p253, %p254
      %p256 = scmp.ne.s32.totalorder %s248, %s250
      %p257 = scmp.eq.s32.totalorder %s30, 1
      %p258 = por %p256, %p257
      %p259 = scmp.ne.s32.totalorder %s250, %s251
      %p260 = scmp.eq.s32.totalorder %s30, 0
      %p261 = por %p259, %p260
      %p262 = scmp.ne.s32.totalorder %s250, %s251
      %p263 = scmp.eq.s32.totalorder %s31, 1
      %p264 = por %p262, %p263
      %p266 = scmp.ne.s32.totalorder %s251, %s265
      %p267 = scmp.eq.s32.totalorder %s31, 0
      %p268 = por %p266, %p267
      %s270 = sadd.s32 %s269, 1
      %p273 = scmp.eq.s32.totalorder %s25, 1
      %p274 = scmp.ne.s32.totalorder %s269, %s271
      %p275 = scmp.eq.s32.totalorder %s25, 0
      %p276 = por %p274, %p275
      %p277 = scmp.ne.s32.totalorder %s269, %s271
      %p278 = scmp.eq.s32.totalorder %s30, 1
      %p279 = por %p277, %p278
      %p280 = scmp.ne.s32.totalorder %s271, %s272
      %p281 = scmp.eq.s32.totalorder %s30, 0
      %p282 = por %p280, %p281
      %p283 = scmp.ne.s32.totalorder %s271, %s272
      %p284 = scmp.eq.s32.totalorder %s31, 1
      %p285 = por %p283, %p284
      %p287 = scmp.ne.s32.totalorder %s272, %s286
      %p288 = scmp.eq.s32.totalorder %s31, 0
      %p289 = por %p287, %p288
      %s291 = sadd.s32 %s290, 1
      %p294 = scmp.eq.s32.totalorder %s25, 1
      %p295 = scmp.ne.s32.totalorder %s290, %s292
      %p296 = scmp.eq.s32.totalorder %s25, 0
      %p297 = por %p295, %p296
      %p298 = scmp.ne.s32.totalorder %s290, %s292
      %p299 = scmp.eq.s32.totalorder %s30, 1
      %p300 = por %p298, %p299
      %p301 = scmp.ne.s32.totalorder %s292, %s293
      %p302 = scmp.eq.s32.totalorder %s30, 0
      %p303 = por %p301, %p302
      %p304 = scmp.ne.s32.totalorder %s292, %s293
      %p305 = scmp.eq.s32.totalorder %s31, 1
      %p306 = por %p304, %p305
      %p308 = scmp.ne.s32.totalorder %s293, %s307
      %p309 = scmp.eq.s32.totalorder %s31, 0
      %p310 = por %p308, %p309
      %s312 = sadd.s32 %s311, 1
      %p315 = scmp.eq.s32.totalorder %s25, 1
      %p316 = scmp.ne.s32.totalorder %s311, %s313
      %p317 = scmp.eq.s32.totalorder %s25, 0
      %p318 = por %p316, %p317
      %p319 = scmp.ne.s32.totalorder %s311, %s313
      %p320 = scmp.eq.s32.totalorder %s30, 1
      %p321 = por %p319, %p320
      %p322 = scmp.ne.s32.totalorder %s313, %s314
      %p323 = scmp.eq.s32.totalorder %s30, 0
      %p324 = por %p322, %p323
      %p325 = scmp.ne.s32.totalorder %s313, %s314
      %p326 = scmp.eq.s32.totalorder %s31, 1
      %p327 = por %p325, %p326
      %p329 = scmp.ne.s32.totalorder %s314, %s328
      %p330 = scmp.eq.s32.totalorder %s31, 0
      %p331 = por %p329, %p330
      %s333 = sadd.s32 %s332, 1
      %p336 = scmp.eq.s32.totalorder %s25, 1
      %p337 = scmp.ne.s32.totalorder %s332, %s334
      %p338 = scmp.eq.s32.totalorder %s25, 0
      %p339 = por %p337, %p338
      %p340 = scmp.ne.s32.totalorder %s332, %s334
      %p341 = scmp.eq.s32.totalorder %s30, 1
      %p342 = por %p340, %p341
      %p343 = scmp.ne.s32.totalorder %s334, %s335
      %p344 = scmp.eq.s32.totalorder %s30, 0
      %p345 = por %p343, %p344
      %p346 = scmp.ne.s32.totalorder %s334, %s335
      %p347 = scmp.eq.s32.totalorder %s31, 1
      %p348 = por %p346, %p347
      %p350 = scmp.ne.s32.totalorder %s335, %s349
      %p351 = scmp.eq.s32.totalorder %s31, 0
      %p352 = por %p350, %p351
      %s354 = sadd.s32 %s353, 1
      %p357 = scmp.eq.s32.totalorder %s25, 1
      %p358 = scmp.ne.s32.totalorder %s353, %s355
      %p359 = scmp.eq.s32.totalorder %s25, 0
      %p360 = por %p358, %p359
      %p361 = scmp.ne.s32.totalorder %s353, %s355
      %p362 = scmp.eq.s32.totalorder %s30, 1
      %p363 = por %p361, %p362
      %p364 = scmp.ne.s32.totalorder %s355, %s356
      %p365 = scmp.eq.s32.totalorder %s30, 0
      %p366 = por %p364, %p365
      %p367 = scmp.ne.s32.totalorder %s355, %s356
      %p368 = scmp.eq.s32.totalorder %s31, 1
      %p369 = por %p367, %p368
      %p371 = scmp.ne.s32.totalorder %s356, %s370
      %p372 = scmp.eq.s32.totalorder %s31, 0
      %p373 = por %p371, %p372
      %s374 = ssub.s32 %s25, %s32
      %p375 = scmp.eq.s32.totalorder %s374, 0
      %s377 = sadd.s32 %s376, 1
      %s378 = scalar_select %p375, %s376, %s377
      %p381 = pneg %p375
      %p382 = scmp.eq.s32.totalorder %s25, 1
      %p383 = por %p381, %p382
      %p384 = scmp.ne.s32.totalorder %s376, %s379
      %p385 = scmp.eq.s32.totalorder %s25, 0
      %p386 = por %p384, %p385
      %p387 = scmp.ne.s32.totalorder %s376, %s379
      %p388 = scmp.eq.s32.totalorder %s30, 1
      %p389 = por %p387, %p388
      %p390 = scmp.ne.s32.totalorder %s379, %s380
      %p391 = scmp.eq.s32.totalorder %s30, 0
      %p392 = por %p390, %p391
      %p393 = scmp.ne.s32.totalorder %s379, %s380
      %p394 = scmp.eq.s32.totalorder %s31, 1
      %p395 = por %p393, %p394
      %p397 = scmp.ne.s32.totalorder %s380, %s396
      %p398 = scmp.eq.s32.totalorder %s31, 0
      %p399 = por %p397, %p398
      %p400 = scmp.le.s32.totalorder 1, %s25
      %p401 = scmp.lt.s32.totalorder %s25, 3
      %p402 = pnand %p400, %p401
      %p403 = pneg %p402
      // Predicated region
      $region9: #{tpu_custom_call.1} parent=5 // pred_check
        _
      $region10: #{tpu_custom_call.1} parent=5 // pred_check_branch
        %405 = sbr.rel (%p402) target = $region12
      $region11: #{tpu_custom_call.1} parent=5 // pred_region
        %s406 = ssub.s32 %s25, 1
        // Predicated region
        $region13: #{tpu_custom_call.1} parent=11 // pred_check
          %p407 = pneg %p46
        $region14: #{tpu_custom_call.1} parent=11 // pred_check_branch
          %409 = sbr.rel (%p407) target = $region16
        $region15: #{tpu_custom_call.1} parent=11 // pred_region
          _
        $region16: #{tpu_custom_call.1} parent=11 // pred_fallthru
          _
        // Predicated region
        $region17: #{tpu_custom_call.1} parent=11 // pred_check
          %p410 = pneg %p93
        $region18: #{tpu_custom_call.1} parent=11 // pred_check_branch
          %412 = sbr.rel (%p410) target = $region20
        $region19: #{tpu_custom_call.1} parent=11 // pred_region
          _
        $region20: #{tpu_custom_call.1} parent=11 // pred_fallthru
          _
        // Predicated region
        $region21: #{tpu_custom_call.1} parent=11 // pred_check
          %p413 = pneg %p114
        $region22: #{tpu_custom_call.1} parent=11 // pred_check_branch
          %415 = sbr.rel (%p413) target = $region24
        $region23: #{tpu_custom_call.1} parent=11 // pred_region
          _
        $region24: #{tpu_custom_call.1} parent=11 // pred_fallthru
          _
        // Predicated region
        $region25: #{tpu_custom_call.1} parent=11 // pred_check
          %p416 = pneg %p135
        $region26: #{tpu_custom_call.1} parent=11 // pred_check_branch
          %418 = sbr.rel (%p416) target = $region28
        $region27: #{tpu_custom_call.1} parent=11 // pred_region
          _
        $region28: #{tpu_custom_call.1} parent=11 // pred_fallthru
          _
        // Predicated region
        $region29: #{tpu_custom_call.1} parent=11 // pred_check
          %p419 = pneg %p156
        $region30: #{tpu_custom_call.1} parent=11 // pred_check_branch
          %421 = sbr.rel (%p419) target = $region32
        $region31: #{tpu_custom_call.1} parent=11 // pred_region
          _
        $region32: #{tpu_custom_call.1} parent=11 // pred_fallthru
          _
        // Predicated region
        $region33: #{tpu_custom_call.1} parent=11 // pred_check
          %p422 = pneg %p177
        $region34: #{tpu_custom_call.1} parent=11 // pred_check_branch
          %424 = sbr.rel (%p422) target = $region36
        $region35: #{tpu_custom_call.1} parent=11 // pred_region
          _
        $region36: #{tpu_custom_call.1} parent=11 // pred_fallthru
          _
        // Predicated region
        $region37: #{tpu_custom_call.1} parent=11 // pred_check
          %p425 = pneg %p198
        $region38: #{tpu_custom_call.1} parent=11 // pred_check_branch
          %427 = sbr.rel (%p425) target = $region40
        $region39: #{tpu_custom_call.1} parent=11 // pred_region
          _
        $region40: #{tpu_custom_call.1} parent=11 // pred_fallthru
          _
        // Predicated region
        $region41: #{tpu_custom_call.1} parent=11 // pred_check
          %p428 = pneg %p219
        $region42: #{tpu_custom_call.1} parent=11 // pred_check_branch
          %430 = sbr.rel (%p428) target = $region44
        $region43: #{tpu_custom_call.1} parent=11 // pred_region
          _
        $region44: #{tpu_custom_call.1} parent=11 // pred_fallthru
          _
        // Predicated region
        $region45: #{tpu_custom_call.1} parent=11 // pred_check
          %p431 = pneg %p240
        $region46: #{tpu_custom_call.1} parent=11 // pred_check_branch
          %433 = sbr.rel (%p431) target = $region48
        $region47: #{tpu_custom_call.1} parent=11 // pred_region
          _
        $region48: #{tpu_custom_call.1} parent=11 // pred_fallthru
          _
        // Predicated region
        $region49: #{tpu_custom_call.1} parent=11 // pred_check
          %p434 = pneg %p261
        $region50: #{tpu_custom_call.1} parent=11 // pred_check_branch
          %436 = sbr.rel (%p434) target = $region52
        $region51: #{tpu_custom_call.1} parent=11 // pred_region
          _
        $region52: #{tpu_custom_call.1} parent=11 // pred_fallthru
          _
        // Predicated region
        $region53: #{tpu_custom_call.1} parent=11 // pred_check
          %p437 = pneg %p282
        $region54: #{tpu_custom_call.1} parent=11 // pred_check_branch
          %439 = sbr.rel (%p437) target = $region56
        $region55: #{tpu_custom_call.1} parent=11 // pred_region
          _
        $region56: #{tpu_custom_call.1} parent=11 // pred_fallthru
          _
        // Predicated region
        $region57: #{tpu_custom_call.1} parent=11 // pred_check
          %p440 = pneg %p303
        $region58: #{tpu_custom_call.1} parent=11 // pred_check_branch
          %442 = sbr.rel (%p440) target = $region60
        $region59: #{tpu_custom_call.1} parent=11 // pred_region
          _
        $region60: #{tpu_custom_call.1} parent=11 // pred_fallthru
          _
        // Predicated region
        $region61: #{tpu_custom_call.1} parent=11 // pred_check
          %p443 = pneg %p324
        $region62: #{tpu_custom_call.1} parent=11 // pred_check_branch
          %445 = sbr.rel (%p443) target = $region64
        $region63: #{tpu_custom_call.1} parent=11 // pred_region
          _
        $region64: #{tpu_custom_call.1} parent=11 // pred_fallthru
          _
        // Predicated region
        $region65: #{tpu_custom_call.1} parent=11 // pred_check
          %p446 = pneg %p345
        $region66: #{tpu_custom_call.1} parent=11 // pred_check_branch
          %448 = sbr.rel (%p446) target = $region68
        $region67: #{tpu_custom_call.1} parent=11 // pred_region
          _
        $region68: #{tpu_custom_call.1} parent=11 // pred_fallthru
          _
        // Predicated region
        $region69: #{tpu_custom_call.1} parent=11 // pred_check
          %p449 = pneg %p366
        $region70: #{tpu_custom_call.1} parent=11 // pred_check_branch
          %451 = sbr.rel (%p449) target = $region72
        $region71: #{tpu_custom_call.1} parent=11 // pred_region
          _
        $region72: #{tpu_custom_call.1} parent=11 // pred_fallthru
          _
      $region12: #{tpu_custom_call.1} parent=5 // pred_fallthru
        _
      %p452 = scmp.lt.s32.totalorder %s25, 2
      // Predicated region
      $region73: #{tpu_custom_call.1} parent=5 // pred_check
        %p453 = pneg %p452
      $region74: #{tpu_custom_call.1} parent=5 // pred_check_branch
        %455 = sbr.rel (%p453) target = $region76
      $region75: #{tpu_custom_call.1} parent=5 // pred_region
        // Predicated region
        $region77: #{tpu_custom_call.1} parent=75 // pred_check
          %p456 = pneg %p66
        $region78: #{tpu_custom_call.1} parent=75 // pred_check_branch
          %458 = sbr.rel (%p456) target = $region80
        $region79: #{tpu_custom_call.1} parent=75 // pred_region
          %p459 = scmp.lt.s32.totalorder %s25, 1
          %s460 = scalar_select %p459, %s25, 1
          %s461 = smul.addr %s460, 8
          %s462 = scalar_lea.vmem %s1, %s461
        $region80: #{tpu_custom_call.1} parent=75 // pred_fallthru
          _
      $region76: #{tpu_custom_call.1} parent=5 // pred_fallthru
        _
      %p463 = scmp.le.s32.totalorder 1, %s25
      %p464 = scmp.lt.s32.totalorder %s25, 3
      %p465 = pnand %p463, %p464
      %p466 = pneg %p465
      // Predicated region
      $region81: #{tpu_custom_call.1} parent=5 // pred_check
        _
      $region82: #{tpu_custom_call.1} parent=5 // pred_check_branch
        %468 = sbr.rel (%p465) target = $region84
      $region83: #{tpu_custom_call.1} parent=5 // pred_region
        %s469 = ssub.s32 %s25, 1
        %p470 = pneg %p46
        %p471 = pneg %p43
        %p472 = scmp.lt.s32.totalorder %s30, 1
        %s473 = scalar_select %p472, %s30, 1
        %s474 = smul.addr %s473, 8
        %s475 = scalar_lea.vmem %s1, %s474
        %p476 = pneg %p72
        %p477 = pneg %p69
        %p478 = pneg %p93
        %p479 = pneg %p90
        %p480 = pneg %p114
        %p481 = pneg %p111
        %p482 = pneg %p135
        %p483 = pneg %p132
        %p484 = pneg %p156
        %p485 = pneg %p153
        %p486 = pneg %p177
        %p487 = pneg %p174
        %p488 = pneg %p198
        %p489 = pneg %p195
        %p490 = pneg %p219
        %p491 = pneg %p216
        %p492 = pneg %p240
        %p493 = pneg %p237
        %p494 = pneg %p261
        %p495 = pneg %p258
        %p496 = pneg %p282
        %p497 = pneg %p279
        %p498 = pneg %p303
        %p499 = pneg %p300
        %p500 = pneg %p324
        %p501 = pneg %p321
        %p502 = pneg %p345
        %p503 = pneg %p342
        %p504 = pneg %p366
        %p505 = pneg %p363
        %p506 = pneg %p392
        %p507 = pneg %p389
        %s508 = sand.u32 %s379, 1
        %s509 = scalar_lea.sflag [#allocation3], %s508
        %s510 = sand.u32 %s379, 1
        %s511 = smul.addr %s510, 8
        %s512 = scalar_lea.vmem [#allocation2], %s511
        %p513 = scmp.lt.s32.totalorder %s30, 1
        %s514 = scalar_select %p513, %s30, 1
        %s515 = smul.addr %s514, 8
        %s516 = scalar_lea.vmem %s1, %s515
        %v518 = vld [vmem:[%s516] sm:$0xff]
        %v519 = vld [vmem:[%s0] sm:$0xff]
        %v520 = vpack.c.bf16 %v518, %v518
        %v521 = vld [vmem:[%s2] sm:$0xf]
        %v522 = vld [vmem:[%s2 + $0x4] sm:$0xf]
        %v523 = vld [vmem:[%s2 + $0x8] sm:$0xf]
        %v524 = vld [vmem:[%s2 + $0xc] sm:$0xf]
        %v525 = vld [vmem:[%s2 + $0x10] sm:$0xf]
        %v526 = vld [vmem:[%s2 + $0x14] sm:$0xf]
        %v527 = vld [vmem:[%s2 + $0x18] sm:$0xf]
        %v528 = vld [vmem:[%s2 + $0x1c] sm:$0xf]
        %v529 = vld [vmem:[%s2 + $0x20] sm:$0xf]
        %v530 = vld [vmem:[%s2 + $0x24] sm:$0xf]
        %v531 = vld [vmem:[%s2 + $0x28] sm:$0xf]
        %v532 = vld [vmem:[%s2 + $0x2c] sm:$0xf]
        %v533 = vld [vmem:[%s2 + $0x30] sm:$0xf]
        %v534 = vld [vmem:[%s2 + $0x34] sm:$0xf]
        %v535 = vld [vmem:[%s2 + $0x38] sm:$0xf]
        %v536 = vld [vmem:[%s2 + $0x3c] sm:$0xf]
        %v537 = vld [vmem:[%s2 + $0x40] sm:$0xf]
        %v538 = vld [vmem:[%s2 + $0x44] sm:$0xf]
        %v539 = vld [vmem:[%s2 + $0x48] sm:$0xf]
        %v540 = vld [vmem:[%s2 + $0x4c] sm:$0xf]
        %v541 = vld [vmem:[%s2 + $0x50] sm:$0xf]
        %v542 = vld [vmem:[%s2 + $0x54] sm:$0xf]
        %v543 = vld [vmem:[%s2 + $0x58] sm:$0xf]
        %v544 = vld [vmem:[%s2 + $0x5c] sm:$0xf]
        %v545 = vld [vmem:[%s2 + $0x60] sm:$0xf]
        %v546 = vld [vmem:[%s2 + $0x64] sm:$0xf]
        %v547 = vld [vmem:[%s2 + $0x68] sm:$0xf]
        %v548 = vld [vmem:[%s2 + $0x6c] sm:$0xf]
        %v549 = vld [vmem:[%s2 + $0x70] sm:$0xf]
        %v550 = vld [vmem:[%s2 + $0x74] sm:$0xf]
        %v551 = vld [vmem:[%s2 + $0x78] sm:$0xf]
        %v552 = vld [vmem:[%s2 + $0x7c] sm:$0xf]
        %v553 = vld [vmem:[%s2 + $0x80] sm:$0xf]
        %v554 = vld [vmem:[%s2 + $0x84] sm:$0xf]
        %v555 = vld [vmem:[%s2 + $0x88] sm:$0xf]
        %v556 = vld [vmem:[%s2 + $0x8c] sm:$0xf]
        %v557 = vld [vmem:[%s2 + $0x90] sm:$0xf]
        %v558 = vld [vmem:[%s2 + $0x94] sm:$0xf]
        %v559 = vld [vmem:[%s2 + $0x98] sm:$0xf]
        %v560 = vld [vmem:[%s2 + $0x9c] sm:$0xf]
        %v561 = vld [vmem:[%s2 + $0xa0] sm:$0xf]
        %v562 = vld [vmem:[%s2 + $0xa4] sm:$0xf]
        %v563 = vld [vmem:[%s2 + $0xa8] sm:$0xf]
        %v564 = vld [vmem:[%s2 + $0xac] sm:$0xf]
        %v565 = vld [vmem:[%s2 + $0xb0] sm:$0xf]
        %v566 = vld [vmem:[%s2 + $0xb4] sm:$0xf]
        %v567 = vld [vmem:[%s2 + $0xb8] sm:$0xf]
        %v568 = vld [vmem:[%s2 + $0xbc] sm:$0xf]
        %v569 = vld [vmem:[%s3] sm:$0x1]
        %v570 = vld [vmem:[%s3 + $0x1] sm:$0x1]
        %v571 = vld [vmem:[%s3 + $0x2] sm:$0x1]
        %v572 = vld [vmem:[%s3 + $0x3] sm:$0x1]
        %v573 = vld [vmem:[%s3 + $0x4] sm:$0x1]
        %v574 = vld [vmem:[%s3 + $0x5] sm:$0x1]
        %v575 = vld [vmem:[%s3 + $0x6] sm:$0x1]
        %v576 = vld [vmem:[%s3 + $0x7] sm:$0x1]
        %v577 = vld [vmem:[%s3 + $0x8] sm:$0x1]
        %v578 = vld [vmem:[%s3 + $0x9] sm:$0x1]
        %v579 = vld [vmem:[%s3 + $0xa] sm:$0x1]
        %v580 = vld [vmem:[%s3 + $0xb] sm:$0x1]
        %v593 = vlaneseq
        %v594 = vshrl.u32 %v593, 7
        %v595 = vsub.s32 0, %v594
        %v596 = vrot.slane %v569, %v595
        %v597 = vlaneseq
        %v598 = vshrl.u32 %v597, 7
        %v599 = vsub.s32 0, %v598
        %v600 = vrot.slane %v570, %v599
        %v601 = vlaneseq
        %v602 = vshrl.u32 %v601, 7
        %v603 = vsub.s32 0, %v602
        %v604 = vrot.slane %v571, %v603
        %v605 = vlaneseq
        %v606 = vshrl.u32 %v605, 7
        %v607 = vsub.s32 0, %v606
        %v608 = vrot.slane %v572, %v607
        %v609 = vlaneseq
        %v610 = vshrl.u32 %v609, 7
        %v611 = vsub.s32 0, %v610
        %v612 = vrot.slane %v573, %v611
        %v613 = vlaneseq
        %v614 = vshrl.u32 %v613, 7
        %v615 = vsub.s32 0, %v614
        %v616 = vrot.slane %v574, %v615
        %v617 = vlaneseq
        %v618 = vshrl.u32 %v617, 7
        %v619 = vsub.s32 0, %v618
        %v620 = vrot.slane %v575, %v619
        %v621 = vlaneseq
        %v622 = vshrl.u32 %v621, 7
        %v623 = vsub.s32 0, %v622
        %v624 = vrot.slane %v576, %v623
        %v625 = vlaneseq
        %v626 = vshrl.u32 %v625, 7
        %v627 = vsub.s32 0, %v626
        %v628 = vrot.slane %v577, %v627
        %v629 = vlaneseq
        %v630 = vshrl.u32 %v629, 7
        %v631 = vsub.s32 0, %v630
        %v632 = vrot.slane %v578, %v631
        %v633 = vlaneseq
        %v634 = vshrl.u32 %v633, 7
        %v635 = vsub.s32 0, %v634
        %v636 = vrot.slane %v579, %v635
        %v637 = vlaneseq
        %v638 = vshrl.u32 %v637, 7
        %v639 = vsub.s32 0, %v638
        %v640 = vrot.slane %v580, %v639
        %v657 = vunpack.c.l.b16 %v521
        %v658 = vunpack.c.l.b16 %v522
        %v659 = vunpack.c.l.b16 %v523
        %v660 = vunpack.c.l.b16 %v524
        %v661 = vpack.c.b16 %v658, %v657
        %v662 = vpack.c.b16 %v660, %v659
        %vm665 = vcmask 261120
        %v667 = vsel %vm665, %v520, 0
        %669 = vmatprep.subr.bf16.mxu0 0
        %670 = vmatpush1.bf16.msra.mxu0 %v661
        %671 = vmatprep.subr.bf16.mxu0 0
        %672 = vmatpush1.bf16.msra.mxu0 %v662
        %673 = vmatprep.subr.bf16.mxu0 0
        %674 = vmatpush1.bf16.msra.mxu0 0
        %675 = vmatprep.subr.bf16.mxu0 0
        %676 = vmatpush1.bf16.msra.mxu0 0
        %677 = vmatprep.subr.bf16.mxu0 0
        %678 = vmatpush1.bf16.msra.mxu0 0
        %679 = vmatprep.subr.bf16.mxu0 0
        %680 = vmatpush1.bf16.msra.mxu0 0
        %681 = vmatprep.subr.bf16.mxu0 0
        %682 = vmatpush1.bf16.msra.mxu0 0
        %683 = vmatprep.subr.bf16.mxu0 0
        %684 = vmatpush1.bf16.msra.mxu0 0
        %685 = vmatprep.subr.bf16.mxu0 0
        %686 = vmatpush1.bf16.msra.mxu0 0
        %687 = vmatprep.subr.bf16.mxu0 0
        %688 = vmatpush1.bf16.msra.mxu0 0
        %689 = vmatprep.subr.bf16.mxu0 0
        %690 = vmatpush1.bf16.msra.mxu0 0
        %691 = vmatprep.subr.bf16.mxu0 0
        %692 = vmatpush1.bf16.msra.mxu0 0
        %693 = vmatprep.subr.bf16.mxu0 0
        %694 = vmatpush1.bf16.msra.mxu0 0
        %695 = vmatprep.subr.bf16.mxu0 0
        %696 = vmatpush1.bf16.msra.mxu0 0
        %697 = vmatprep.subr.bf16.mxu0 0
        %698 = vmatpush1.bf16.msra.mxu0 0
        %699 = vmatprep.subr.bf16.mxu0 0
        %700 = vmatpush1.bf16.msra.mxu0 0
        %701 = vmatprep.mubr.bf16.mxu0 0
        %702 = vmatmul.mubr.bf16.gmra.mrb[0].mxu0 %v667
        %v703 = vpop.f32.mrb[0].mxu0
        %v704 = vadd.f32 %v596, %v703
        %v705 = vpop.f32.mrb[0].mxu0
        %v706 = vpop.f32.mrb[0].mxu0
        %v707 = vpop.f32.mrb[0].mxu0
        %708 = vdwg.mxu0
        %v713 = vunpack.c.l.b16 %v525
        %v714 = vunpack.c.l.b16 %v526
        %v715 = vunpack.c.l.b16 %v527
        %v716 = vunpack.c.l.b16 %v528
        %v717 = vpack.c.b16 %v714, %v713
        %v718 = vpack.c.b16 %v716, %v715
        %721 = vmatprep.subr.bf16.mxu0 0
        %722 = vmatpush1.bf16.msra.mxu0 %v717
        %723 = vmatprep.subr.bf16.mxu0 0
        %724 = vmatpush1.bf16.msra.mxu0 %v718
        %725 = vmatprep.subr.bf16.mxu0 0
        %726 = vmatpush1.bf16.msra.mxu0 0
        %727 = vmatprep.subr.bf16.mxu0 0
        %728 = vmatpush1.bf16.msra.mxu0 0
        %729 = vmatprep.subr.bf16.mxu0 0
        %730 = vmatpush1.bf16.msra.mxu0 0
        %731 = vmatprep.subr.bf16.mxu0 0
        %732 = vmatpush1.bf16.msra.mxu0 0
        %733 = vmatprep.subr.bf16.mxu0 0
        %734 = vmatpush1.bf16.msra.mxu0 0
        %735 = vmatprep.subr.bf16.mxu0 0
        %736 = vmatpush1.bf16.msra.mxu0 0
        %737 = vmatprep.subr.bf16.mxu0 0
        %738 = vmatpush1.bf16.msra.mxu0 0
        %739 = vmatprep.subr.bf16.mxu0 0
        %740 = vmatpush1.bf16.msra.mxu0 0
        %741 = vmatprep.subr.bf16.mxu0 0
        %742 = vmatpush1.bf16.msra.mxu0 0
        %743 = vmatprep.subr.bf16.mxu0 0
        %744 = vmatpush1.bf16.msra.mxu0 0
        %745 = vmatprep.subr.bf16.mxu0 0
        %746 = vmatpush1.bf16.msra.mxu0 0
        %747 = vmatprep.subr.bf16.mxu0 0
        %748 = vmatpush1.bf16.msra.mxu0 0
        %749 = vmatprep.subr.bf16.mxu0 0
        %750 = vmatpush1.bf16.msra.mxu0 0
        %751 = vmatprep.subr.bf16.mxu0 0
        %752 = vmatpush1.bf16.msra.mxu0 0
        %753 = vmatprep.mubr.bf16.mxu0 0
        %754 = vmatmul.mubr.bf16.gmra.mrb[0].mxu0 %v667
        %v755 = vpop.f32.mrb[0].mxu0
        %v756 = vadd.f32 %v600, %v755
        %v757 = vpop.f32.mrb[0].mxu0
        %v758 = vpop.f32.mrb[0].mxu0
        %v759 = vpop.f32.mrb[0].mxu0
        %760 = vdwg.mxu0
        %v765 = vunpack.c.l.b16 %v529
        %v766 = vunpack.c.l.b16 %v530
        %v767 = vunpack.c.l.b16 %v531
        %v768 = vunpack.c.l.b16 %v532
        %v769 = vpack.c.b16 %v766, %v765
        %v770 = vpack.c.b16 %v768, %v767
        %773 = vmatprep.subr.bf16.mxu0 0
        %774 = vmatpush1.bf16.msra.mxu0 %v769
        %775 = vmatprep.subr.bf16.mxu0 0
        %776 = vmatpush1.bf16.msra.mxu0 %v770
        %777 = vmatprep.subr.bf16.mxu0 0
        %778 = vmatpush1.bf16.msra.mxu0 0
        %779 = vmatprep.subr.bf16.mxu0 0
        %780 = vmatpush1.bf16.msra.mxu0 0
        %781 = vmatprep.subr.bf16.mxu0 0
        %782 = vmatpush1.bf16.msra.mxu0 0
        %783 = vmatprep.subr.bf16.mxu0 0
        %784 = vmatpush1.bf16.msra.mxu0 0
        %785 = vmatprep.subr.bf16.mxu0 0
        %786 = vmatpush1.bf16.msra.mxu0 0
        %787 = vmatprep.subr.bf16.mxu0 0
        %788 = vmatpush1.bf16.msra.mxu0 0
        %789 = vmatprep.subr.bf16.mxu0 0
        %790 = vmatpush1.bf16.msra.mxu0 0
        %791 = vmatprep.subr.bf16.mxu0 0
        %792 = vmatpush1.bf16.msra.mxu0 0
        %793 = vmatprep.subr.bf16.mxu0 0
        %794 = vmatpush1.bf16.msra.mxu0 0
        %795 = vmatprep.subr.bf16.mxu0 0
        %796 = vmatpush1.bf16.msra.mxu0 0
        %797 = vmatprep.subr.bf16.mxu0 0
        %798 = vmatpush1.bf16.msra.mxu0 0
        %799 = vmatprep.subr.bf16.mxu0 0
        %800 = vmatpush1.bf16.msra.mxu0 0
        %801 = vmatprep.subr.bf16.mxu0 0
        %802 = vmatpush1.bf16.msra.mxu0 0
        %803 = vmatprep.subr.bf16.mxu0 0
        %804 = vmatpush1.bf16.msra.mxu0 0
        %805 = vmatprep.mubr.bf16.mxu0 0
        %806 = vmatmul.mubr.bf16.gmra.mrb[0].mxu0 %v667
        %v807 = vpop.f32.mrb[0].mxu0
        %v808 = vadd.f32 %v604, %v807
        %v809 = vpop.f32.mrb[0].mxu0
        %v810 = vpop.f32.mrb[0].mxu0
        %v811 = vpop.f32.mrb[0].mxu0
        %812 = vdwg.mxu0
        %v817 = vunpack.c.l.b16 %v533
        %v818 = vunpack.c.l.b16 %v534
        %v819 = vunpack.c.l.b16 %v535
        %v820 = vunpack.c.l.b16 %v536
        %v821 = vpack.c.b16 %v818, %v817
        %v822 = vpack.c.b16 %v820, %v819
        %825 = vmatprep.subr.bf16.mxu0 0
        %826 = vmatpush1.bf16.msra.mxu0 %v821
        %827 = vmatprep.subr.bf16.mxu0 0
        %828 = vmatpush1.bf16.msra.mxu0 %v822
        %829 = vmatprep.subr.bf16.mxu0 0
        %830 = vmatpush1.bf16.msra.mxu0 0
        %831 = vmatprep.subr.bf16.mxu0 0
        %832 = vmatpush1.bf16.msra.mxu0 0
        %833 = vmatprep.subr.bf16.mxu0 0
        %834 = vmatpush1.bf16.msra.mxu0 0
        %835 = vmatprep.subr.bf16.mxu0 0
        %836 = vmatpush1.bf16.msra.mxu0 0
        %837 = vmatprep.subr.bf16.mxu0 0
        %838 = vmatpush1.bf16.msra.mxu0 0
        %839 = vmatprep.subr.bf16.mxu0 0
        %840 = vmatpush1.bf16.msra.mxu0 0
        %841 = vmatprep.subr.bf16.mxu0 0
        %842 = vmatpush1.bf16.msra.mxu0 0
        %843 = vmatprep.subr.bf16.mxu0 0
        %844 = vmatpush1.bf16.msra.mxu0 0
        %845 = vmatprep.subr.bf16.mxu0 0
        %846 = vmatpush1.bf16.msra.mxu0 0
        %847 = vmatprep.subr.bf16.mxu0 0
        %848 = vmatpush1.bf16.msra.mxu0 0
        %849 = vmatprep.subr.bf16.mxu0 0
        %850 = vmatpush1.bf16.msra.mxu0 0
        %851 = vmatprep.subr.bf16.mxu0 0
        %852 = vmatpush1.bf16.msra.mxu0 0
        %853 = vmatprep.subr.bf16.mxu0 0
        %854 = vmatpush1.bf16.msra.mxu0 0
        %855 = vmatprep.subr.bf16.mxu0 0
        %856 = vmatpush1.bf16.msra.mxu0 0
        %857 = vmatprep.mubr.bf16.mxu0 0
        %858 = vmatmul.mubr.bf16.gmra.mrb[0].mxu0 %v667
        %v859 = vpop.f32.mrb[0].mxu0
        %v860 = vadd.f32 %v608, %v859
        %v861 = vpop.f32.mrb[0].mxu0
        %v862 = vpop.f32.mrb[0].mxu0
        %v863 = vpop.f32.mrb[0].mxu0
        %864 = vdwg.mxu0
        %v869 = vunpack.c.l.b16 %v537
        %v870 = vunpack.c.l.b16 %v538
        %v871 = vunpack.c.l.b16 %v539
        %v872 = vunpack.c.l.b16 %v540
        %v873 = vpack.c.b16 %v870, %v869
        %v874 = vpack.c.b16 %v872, %v871
        %877 = vmatprep.subr.bf16.mxu0 0
        %878 = vmatpush1.bf16.msra.mxu0 %v873
        %879 = vmatprep.subr.bf16.mxu0 0
        %880 = vmatpush1.bf16.msra.mxu0 %v874
        %881 = vmatprep.subr.bf16.mxu0 0
        %882 = vmatpush1.bf16.msra.mxu0 0
        %883 = vmatprep.subr.bf16.mxu0 0
        %884 = vmatpush1.bf16.msra.mxu0 0
        %885 = vmatprep.subr.bf16.mxu0 0
        %886 = vmatpush1.bf16.msra.mxu0 0
        %887 = vmatprep.subr.bf16.mxu0 0
        %888 = vmatpush1.bf16.msra.mxu0 0
        %889 = vmatprep.subr.bf16.mxu0 0
        %890 = vmatpush1.bf16.msra.mxu0 0
        %891 = vmatprep.subr.bf16.mxu0 0
        %892 = vmatpush1.bf16.msra.mxu0 0
        %893 = vmatprep.subr.bf16.mxu0 0
        %894 = vmatpush1.bf16.msra.mxu0 0
        %895 = vmatprep.subr.bf16.mxu0 0
        %896 = vmatpush1.bf16.msra.mxu0 0
        %897 = vmatprep.subr.bf16.mxu0 0
        %898 = vmatpush1.bf16.msra.mxu0 0
        %899 = vmatprep.subr.bf16.mxu0 0
        %900 = vmatpush1.bf16.msra.mxu0 0
        %901 = vmatprep.subr.bf16.mxu0 0
        %902 = vmatpush1.bf16.msra.mxu0 0
        %903 = vmatprep.subr.bf16.mxu0 0
        %904 = vmatpush1.bf16.msra.mxu0 0
        %905 = vmatprep.subr.bf16.mxu0 0
        %906 = vmatpush1.bf16.msra.mxu0 0
        %907 = vmatprep.subr.bf16.mxu0 0
        %908 = vmatpush1.bf16.msra.mxu0 0
        %909 = vmatprep.mubr.bf16.mxu0 0
        %910 = vmatmul.mubr.bf16.gmra.mrb[0].mxu0 %v667
        %v911 = vpop.f32.mrb[0].mxu0
        %v912 = vadd.f32 %v612, %v911
        %v913 = vpop.f32.mrb[0].mxu0
        %v914 = vpop.f32.mrb[0].mxu0
        %v915 = vpop.f32.mrb[0].mxu0
        %916 = vdwg.mxu0
        %v921 = vunpack.c.l.b16 %v541
        %v922 = vunpack.c.l.b16 %v542
        %v923 = vunpack.c.l.b16 %v543
        %v924 = vunpack.c.l.b16 %v544
        %v925 = vpack.c.b16 %v922, %v921
        %v926 = vpack.c.b16 %v924, %v923
        %929 = vmatprep.subr.bf16.mxu0 0
        %930 = vmatpush1.bf16.msra.mxu0 %v925
        %931 = vmatprep.subr.bf16.mxu0 0
        %932 = vmatpush1.bf16.msra.mxu0 %v926
        %933 = vmatprep.subr.bf16.mxu0 0
        %934 = vmatpush1.bf16.msra.mxu0 0
        %935 = vmatprep.subr.bf16.mxu0 0
        %936 = vmatpush1.bf16.msra.mxu0 0
        %937 = vmatprep.subr.bf16.mxu0 0
        %938 = vmatpush1.bf16.msra.mxu0 0
        %939 = vmatprep.subr.bf16.mxu0 0
        %940 = vmatpush1.bf16.msra.mxu0 0
        %941 = vmatprep.subr.bf16.mxu0 0
        %942 = vmatpush1.bf16.msra.mxu0 0
        %943 = vmatprep.subr.bf16.mxu0 0
        %944 = vmatpush1.bf16.msra.mxu0 0
        %945 = vmatprep.subr.bf16.mxu0 0
        %946 = vmatpush1.bf16.msra.mxu0 0
        %947 = vmatprep.subr.bf16.mxu0 0
        %948 = vmatpush1.bf16.msra.mxu0 0
        %949 = vmatprep.subr.bf16.mxu0 0
        %950 = vmatpush1.bf16.msra.mxu0 0
        %951 = vmatprep.subr.bf16.mxu0 0
        %952 = vmatpush1.bf16.msra.mxu0 0
        %953 = vmatprep.subr.bf16.mxu0 0
        %954 = vmatpush1.bf16.msra.mxu0 0
        %955 = vmatprep.subr.bf16.mxu0 0
        %956 = vmatpush1.bf16.msra.mxu0 0
        %957 = vmatprep.subr.bf16.mxu0 0
        %958 = vmatpush1.bf16.msra.mxu0 0
        %959 = vmatprep.subr.bf16.mxu0 0
        %960 = vmatpush1.bf16.msra.mxu0 0
        %961 = vmatprep.mubr.bf16.mxu0 0
        %962 = vmatmul.mubr.bf16.gmra.mrb[0].mxu0 %v667
        %v963 = vpop.f32.mrb[0].mxu0
        %v964 = vadd.f32 %v616, %v963
        %v965 = vpop.f32.mrb[0].mxu0
        %v966 = vpop.f32.mrb[0].mxu0
        %v967 = vpop.f32.mrb[0].mxu0
        %968 = vdwg.mxu0
        %v973 = vunpack.c.l.b16 %v545
        %v974 = vunpack.c.l.b16 %v546
        %v975 = vunpack.c.l.b16 %v547
        %v976 = vunpack.c.l.b16 %v548
        %v977 = vpack.c.b16 %v974, %v973
        %v978 = vpack.c.b16 %v976, %v975
        %981 = vmatprep.subr.bf16.mxu0 0
        %982 = vmatpush1.bf16.msra.mxu0 %v977
        %983 = vmatprep.subr.bf16.mxu0 0
        %984 = vmatpush1.bf16.msra.mxu0 %v978
        %985 = vmatprep.subr.bf16.mxu0 0
        %986 = vmatpush1.bf16.msra.mxu0 0
        %987 = vmatprep.subr.bf16.mxu0 0
        %988 = vmatpush1.bf16.msra.mxu0 0
        %989 = vmatprep.subr.bf16.mxu0 0
        %990 = vmatpush1.bf16.msra.mxu0 0
        %991 = vmatprep.subr.bf16.mxu0 0
        %992 = vmatpush1.bf16.msra.mxu0 0
        %993 = vmatprep.subr.bf16.mxu0 0
        %994 = vmatpush1.bf16.msra.mxu0 0
        %995 = vmatprep.subr.bf16.mxu0 0
        %996 = vmatpush1.bf16.msra.mxu0 0
        %997 = vmatprep.subr.bf16.mxu0 0
        %998 = vmatpush1.bf16.msra.mxu0 0
        %999 = vmatprep.subr.bf16.mxu0 0
        %1000 = vmatpush1.bf16.msra.mxu0 0
        %1001 = vmatprep.subr.bf16.mxu0 0
        %1002 = vmatpush1.bf16.msra.mxu0 0
        %1003 = vmatprep.subr.bf16.mxu0 0
        %1004 = vmatpush1.bf16.msra.mxu0 0
        %1005 = vmatprep.subr.bf16.mxu0 0
        %1006 = vmatpush1.bf16.msra.mxu0 0
        %1007 = vmatprep.subr.bf16.mxu0 0
        %1008 = vmatpush1.bf16.msra.mxu0 0
        %1009 = vmatprep.subr.bf16.mxu0 0
        %1010 = vmatpush1.bf16.msra.mxu0 0
        %1011 = vmatprep.subr.bf16.mxu0 0
        %1012 = vmatpush1.bf16.msra.mxu0 0
        %1013 = vmatprep.mubr.bf16.mxu0 0
        %1014 = vmatmul.mubr.bf16.gmra.mrb[0].mxu0 %v667
        %v1015 = vpop.f32.mrb[0].mxu0
        %v1016 = vadd.f32 %v620, %v1015
        %v1017 = vpop.f32.mrb[0].mxu0
        %v1018 = vpop.f32.mrb[0].mxu0
        %v1019 = vpop.f32.mrb[0].mxu0
        %1020 = vdwg.mxu0
        %v1025 = vunpack.c.l.b16 %v549
        %v1026 = vunpack.c.l.b16 %v550
        %v1027 = vunpack.c.l.b16 %v551
        %v1028 = vunpack.c.l.b16 %v552
        %v1029 = vpack.c.b16 %v1026, %v1025
        %v1030 = vpack.c.b16 %v1028, %v1027
        %1033 = vmatprep.subr.bf16.mxu0 0
        %1034 = vmatpush1.bf16.msra.mxu0 %v1029
        %1035 = vmatprep.subr.bf16.mxu0 0
        %1036 = vmatpush1.bf16.msra.mxu0 %v1030
        %1037 = vmatprep.subr.bf16.mxu0 0
        %1038 = vmatpush1.bf16.msra.mxu0 0
        %1039 = vmatprep.subr.bf16.mxu0 0
        %1040 = vmatpush1.bf16.msra.mxu0 0
        %1041 = vmatprep.subr.bf16.mxu0 0
        %1042 = vmatpush1.bf16.msra.mxu0 0
        %1043 = vmatprep.subr.bf16.mxu0 0
        %1044 = vmatpush1.bf16.msra.mxu0 0
        %1045 = vmatprep.subr.bf16.mxu0 0
        %1046 = vmatpush1.bf16.msra.mxu0 0
        %1047 = vmatprep.subr.bf16.mxu0 0
        %1048 = vmatpush1.bf16.msra.mxu0 0
        %1049 = vmatprep.subr.bf16.mxu0 0
        %1050 = vmatpush1.bf16.msra.mxu0 0
        %1051 = vmatprep.subr.bf16.mxu0 0
        %1052 = vmatpush1.bf16.msra.mxu0 0
        %1053 = vmatprep.subr.bf16.mxu0 0
        %1054 = vmatpush1.bf16.msra.mxu0 0
        %1055 = vmatprep.subr.bf16.mxu0 0
        %1056 = vmatpush1.bf16.msra.mxu0 0
        %1057 = vmatprep.subr.bf16.mxu0 0
        %1058 = vmatpush1.bf16.msra.mxu0 0
        %1059 = vmatprep.subr.bf16.mxu0 0
        %1060 = vmatpush1.bf16.msra.mxu0 0
        %1061 = vmatprep.subr.bf16.mxu0 0
        %1062 = vmatpush1.bf16.msra.mxu0 0
        %1063 = vmatprep.subr.bf16.mxu0 0
        %1064 = vmatpush1.bf16.msra.mxu0 0
        %1065 = vmatprep.mubr.bf16.mxu0 0
        %1066 = vmatmul.mubr.bf16.gmra.mrb[0].mxu0 %v667
        %v1067 = vpop.f32.mrb[0].mxu0
        %v1068 = vadd.f32 %v624, %v1067
        %v1069 = vpop.f32.mrb[0].mxu0
        %v1070 = vpop.f32.mrb[0].mxu0
        %v1071 = vpop.f32.mrb[0].mxu0
        %1072 = vdwg.mxu0
        %v1077 = vunpack.c.l.b16 %v553
        %v1078 = vunpack.c.l.b16 %v554
        %v1079 = vunpack.c.l.b16 %v555
        %v1080 = vunpack.c.l.b16 %v556
        %v1081 = vpack.c.b16 %v1078, %v1077
        %v1082 = vpack.c.b16 %v1080, %v1079
        %1085 = vmatprep.subr.bf16.mxu0 0
        %1086 = vmatpush1.bf16.msra.mxu0 %v1081
        %1087 = vmatprep.subr.bf16.mxu0 0
        %1088 = vmatpush1.bf16.msra.mxu0 %v1082
        %1089 = vmatprep.subr.bf16.mxu0 0
        %1090 = vmatpush1.bf16.msra.mxu0 0
        %1091 = vmatprep.subr.bf16.mxu0 0
        %1092 = vmatpush1.bf16.msra.mxu0 0
        %1093 = vmatprep.subr.bf16.mxu0 0
        %1094 = vmatpush1.bf16.msra.mxu0 0
        %1095 = vmatprep.subr.bf16.mxu0 0
        %1096 = vmatpush1.bf16.msra.mxu0 0
        %1097 = vmatprep.subr.bf16.mxu0 0
        %1098 = vmatpush1.bf16.msra.mxu0 0
        %1099 = vmatprep.subr.bf16.mxu0 0
        %1100 = vmatpush1.bf16.msra.mxu0 0
        %1101 = vmatprep.subr.bf16.mxu0 0
        %1102 = vmatpush1.bf16.msra.mxu0 0
        %1103 = vmatprep.subr.bf16.mxu0 0
        %1104 = vmatpush1.bf16.msra.mxu0 0
        %1105 = vmatprep.subr.bf16.mxu0 0
        %1106 = vmatpush1.bf16.msra.mxu0 0
        %1107 = vmatprep.subr.bf16.mxu0 0
        %1108 = vmatpush1.bf16.msra.mxu0 0
        %1109 = vmatprep.subr.bf16.mxu0 0
        %1110 = vmatpush1.bf16.msra.mxu0 0
        %1111 = vmatprep.subr.bf16.mxu0 0
        %1112 = vmatpush1.bf16.msra.mxu0 0
        %1113 = vmatprep.subr.bf16.mxu0 0
        %1114 = vmatpush1.bf16.msra.mxu0 0
        %1115 = vmatprep.subr.bf16.mxu0 0
        %1116 = vmatpush1.bf16.msra.mxu0 0
        %1117 = vmatprep.mubr.bf16.mxu0 0
        %1118 = vmatmul.mubr.bf16.gmra.mrb[0].mxu0 %v667
        %v1119 = vpop.f32.mrb[0].mxu0
        %v1120 = vadd.f32 %v628, %v1119
        %v1121 = vpop.f32.mrb[0].mxu0
        %v1122 = vpop.f32.mrb[0].mxu0
        %v1123 = vpop.f32.mrb[0].mxu0
        %1124 = vdwg.mxu0
        %v1129 = vunpack.c.l.b16 %v557
        %v1130 = vunpack.c.l.b16 %v558
        %v1131 = vunpack.c.l.b16 %v559
        %v1132 = vunpack.c.l.b16 %v560
        %v1133 = vpack.c.b16 %v1130, %v1129
        %v1134 = vpack.c.b16 %v1132, %v1131
        %1137 = vmatprep.subr.bf16.mxu0 0
        %1138 = vmatpush1.bf16.msra.mxu0 %v1133
        %1139 = vmatprep.subr.bf16.mxu0 0
        %1140 = vmatpush1.bf16.msra.mxu0 %v1134
        %1141 = vmatprep.subr.bf16.mxu0 0
        %1142 = vmatpush1.bf16.msra.mxu0 0
        %1143 = vmatprep.subr.bf16.mxu0 0
        %1144 = vmatpush1.bf16.msra.mxu0 0
        %1145 = vmatprep.subr.bf16.mxu0 0
        %1146 = vmatpush1.bf16.msra.mxu0 0
        %1147 = vmatprep.subr.bf16.mxu0 0
        %1148 = vmatpush1.bf16.msra.mxu0 0
        %1149 = vmatprep.subr.bf16.mxu0 0
        %1150 = vmatpush1.bf16.msra.mxu0 0
        %1151 = vmatprep.subr.bf16.mxu0 0
        %1152 = vmatpush1.bf16.msra.mxu0 0
        %1153 = vmatprep.subr.bf16.mxu0 0
        %1154 = vmatpush1.bf16.msra.mxu0 0
        %1155 = vmatprep.subr.bf16.mxu0 0
        %1156 = vmatpush1.bf16.msra.mxu0 0
        %1157 = vmatprep.subr.bf16.mxu0 0
        %1158 = vmatpush1.bf16.msra.mxu0 0
        %1159 = vmatprep.subr.bf16.mxu0 0
        %1160 = vmatpush1.bf16.msra.mxu0 0
        %1161 = vmatprep.subr.bf16.mxu0 0
        %1162 = vmatpush1.bf16.msra.mxu0 0
        %1163 = vmatprep.subr.bf16.mxu0 0
        %1164 = vmatpush1.bf16.msra.mxu0 0
        %1165 = vmatprep.subr.bf16.mxu0 0
        %1166 = vmatpush1.bf16.msra.mxu0 0
        %1167 = vmatprep.subr.bf16.mxu0 0
        %1168 = vmatpush1.bf16.msra.mxu0 0
        %1169 = vmatprep.mubr.bf16.mxu0 0
        %1170 = vmatmul.mubr.bf16.gmra.mrb[0].mxu0 %v667
        %v1171 = vpop.f32.mrb[0].mxu0
        %v1172 = vadd.f32 %v632, %v1171
        %v1173 = vpop.f32.mrb[0].mxu0
        %v1174 = vpop.f32.mrb[0].mxu0
        %v1175 = vpop.f32.mrb[0].mxu0
        %1176 = vdwg.mxu0
        %v1181 = vunpack.c.l.b16 %v561
        %v1182 = vunpack.c.l.b16 %v562
        %v1183 = vunpack.c.l.b16 %v563
        %v1184 = vunpack.c.l.b16 %v564
        %v1185 = vpack.c.b16 %v1182, %v1181
        %v1186 = vpack.c.b16 %v1184, %v1183
        %1189 = vmatprep.subr.bf16.mxu0 0
        %1190 = vmatpush1.bf16.msra.mxu0 %v1185
        %1191 = vmatprep.subr.bf16.mxu0 0
        %1192 = vmatpush1.bf16.msra.mxu0 %v1186
        %1193 = vmatprep.subr.bf16.mxu0 0
        %1194 = vmatpush1.bf16.msra.mxu0 0
        %1195 = vmatprep.subr.bf16.mxu0 0
        %1196 = vmatpush1.bf16.msra.mxu0 0
        %1197 = vmatprep.subr.bf16.mxu0 0
        %1198 = vmatpush1.bf16.msra.mxu0 0
        %1199 = vmatprep.subr.bf16.mxu0 0
        %1200 = vmatpush1.bf16.msra.mxu0 0
        %1201 = vmatprep.subr.bf16.mxu0 0
        %1202 = vmatpush1.bf16.msra.mxu0 0
        %1203 = vmatprep.subr.bf16.mxu0 0
        %1204 = vmatpush1.bf16.msra.mxu0 0
        %1205 = vmatprep.subr.bf16.mxu0 0
        %1206 = vmatpush1.bf16.msra.mxu0 0
        %1207 = vmatprep.subr.bf16.mxu0 0
        %1208 = vmatpush1.bf16.msra.mxu0 0
        %1209 = vmatprep.subr.bf16.mxu0 0
        %1210 = vmatpush1.bf16.msra.mxu0 0
        %1211 = vmatprep.subr.bf16.mxu0 0
        %1212 = vmatpush1.bf16.msra.mxu0 0
        %1213 = vmatprep.subr.bf16.mxu0 0
        %1214 = vmatpush1.bf16.msra.mxu0 0
        %1215 = vmatprep.subr.bf16.mxu0 0
        %1216 = vmatpush1.bf16.msra.mxu0 0
        %1217 = vmatprep.subr.bf16.mxu0 0
        %1218 = vmatpush1.bf16.msra.mxu0 0
        %1219 = vmatprep.subr.bf16.mxu0 0
        %1220 = vmatpush1.bf16.msra.mxu0 0
        %1221 = vmatprep.mubr.bf16.mxu0 0
        %1222 = vmatmul.mubr.bf16.gmra.mrb[0].mxu0 %v667
        %v1223 = vpop.f32.mrb[0].mxu0
        %v1224 = vadd.f32 %v636, %v1223
        %v1225 = vpop.f32.mrb[0].mxu0
        %v1226 = vpop.f32.mrb[0].mxu0
        %v1227 = vpop.f32.mrb[0].mxu0
        %1228 = vdwg.mxu0
        %v1233 = vunpack.c.l.b16 %v565
        %v1234 = vunpack.c.l.b16 %v566
        %v1235 = vunpack.c.l.b16 %v567
        %v1236 = vunpack.c.l.b16 %v568
        %v1237 = vpack.c.b16 %v1234, %v1233
        %v1238 = vpack.c.b16 %v1236, %v1235
        %1241 = vmatprep.subr.bf16.mxu0 0
        %1242 = vmatpush1.bf16.msra.mxu0 %v1237
        %1243 = vmatprep.subr.bf16.mxu0 0
        %1244 = vmatpush1.bf16.msra.mxu0 %v1238
        %1245 = vmatprep.subr.bf16.mxu0 0
        %1246 = vmatpush1.bf16.msra.mxu0 0
        %1247 = vmatprep.subr.bf16.mxu0 0
        %1248 = vmatpush1.bf16.msra.mxu0 0
        %1249 = vmatprep.subr.bf16.mxu0 0
        %1250 = vmatpush1.bf16.msra.mxu0 0
        %1251 = vmatprep.subr.bf16.mxu0 0
        %1252 = vmatpush1.bf16.msra.mxu0 0
        %1253 = vmatprep.subr.bf16.mxu0 0
        %1254 = vmatpush1.bf16.msra.mxu0 0
        %1255 = vmatprep.subr.bf16.mxu0 0
        %1256 = vmatpush1.bf16.msra.mxu0 0
        %1257 = vmatprep.subr.bf16.mxu0 0
        %1258 = vmatpush1.bf16.msra.mxu0 0
        %1259 = vmatprep.subr.bf16.mxu0 0
        %1260 = vmatpush1.bf16.msra.mxu0 0
        %1261 = vmatprep.subr.bf16.mxu0 0
        %1262 = vmatpush1.bf16.msra.mxu0 0
        %1263 = vmatprep.subr.bf16.mxu0 0
        %1264 = vmatpush1.bf16.msra.mxu0 0
        %1265 = vmatprep.subr.bf16.mxu0 0
        %1266 = vmatpush1.bf16.msra.mxu0 0
        %1267 = vmatprep.subr.bf16.mxu0 0
        %1268 = vmatpush1.bf16.msra.mxu0 0
        %1269 = vmatprep.subr.bf16.mxu0 0
        %1270 = vmatpush1.bf16.msra.mxu0 0
        %1271 = vmatprep.subr.bf16.mxu0 0
        %1272 = vmatpush1.bf16.msra.mxu0 0
        %1273 = vmatprep.mubr.bf16.mxu0 0
        %1274 = vmatmul.mubr.bf16.gmra.mrb[0].mxu0 %v667
        %v1275 = vpop.f32.mrb[0].mxu0
        %v1276 = vadd.f32 %v640, %v1275
        %v1277 = vpop.f32.mrb[0].mxu0
        %v1278 = vpop.f32.mrb[0].mxu0
        %v1279 = vpop.f32.mrb[0].mxu0
        %1280 = vdwg.mxu0
        %v1281 = vpack.c.bf16 %v704, %v704
        %v1282 = vpack.c.bf16 %v756, %v756
        %v1283 = vpack.c.bf16 %v808, %v808
        %v1284 = vpack.c.bf16 %v860, %v860
        %v1285 = vpack.c.bf16 %v912, %v912
        %v1286 = vpack.c.bf16 %v964, %v964
        %v1287 = vpack.c.bf16 %v1016, %v1016
        %v1288 = vpack.c.bf16 %v1068, %v1068
        %v1289 = vpack.c.bf16 %v1120, %v1120
        %v1290 = vpack.c.bf16 %v1172, %v1172
        %v1291 = vpack.c.bf16 %v1224, %v1224
        %v1292 = vpack.c.bf16 %v1276, %v1276
        %vm1293 = vcmask 64512
        %v1295 = vsel %vm1293, %v1281, 0
        %v1298 = vsel %vm1293, %v1285, 0
        %1300 = vmatprep.subr.bf16.mxu0 0
        %1301 = vmatpush1.bf16.xpose.msra.mxu0 %v1298
        %1302 = vmatprep.subr.bf16.mxu0 0
        %1303 = vmatpush1.bf16.xpose.msra.mxu0 0
        %1304 = vmatprep.subr.bf16.mxu0 0
        %1305 = vmatpush1.bf16.xpose.msra.mxu0 0
        %1306 = vmatprep.subr.bf16.mxu0 0
        %1307 = vmatpush1.bf16.xpose.msra.mxu0 0
        %1308 = vmatprep.subr.bf16.mxu0 0
        %1309 = vmatpush1.bf16.xpose.msra.mxu0 0
        %1310 = vmatprep.subr.bf16.mxu0 0
        %1311 = vmatpush1.bf16.xpose.msra.mxu0 0
        %1312 = vmatprep.subr.bf16.mxu0 0
        %1313 = vmatpush1.bf16.xpose.msra.mxu0 0
        %1314 = vmatprep.subr.bf16.mxu0 0
        %1315 = vmatpush1.bf16.xpose.msra.mxu0 0
        %1316 = vmatprep.subr.bf16.mxu0 0
        %1317 = vmatpush1.bf16.xpose.msra.mxu0 0
        %1318 = vmatprep.subr.bf16.mxu0 0
        %1319 = vmatpush1.bf16.xpose.msra.mxu0 0
        %1320 = vmatprep.subr.bf16.mxu0 0
        %1321 = vmatpush1.bf16.xpose.msra.mxu0 0
        %1322 = vmatprep.subr.bf16.mxu0 0
        %1323 = vmatpush1.bf16.xpose.msra.mxu0 0
        %1324 = vmatprep.subr.bf16.mxu0 0
        %1325 = vmatpush1.bf16.xpose.msra.mxu0 0
        %1326 = vmatprep.subr.bf16.mxu0 0
        %1327 = vmatpush1.bf16.xpose.msra.mxu0 0
        %1328 = vmatprep.subr.bf16.mxu0 0
        %1329 = vmatpush1.bf16.xpose.msra.mxu0 0
        %1330 = vmatprep.subr.bf16.mxu0 0
        %1331 = vmatpush1.bf16.xpose.msra.mxu0 0
        %1332 = vmatprep.mubr.bf16.mxu0 0
        %1333 = vmatmul.mubr.bf16.gmra.mrb[0].mxu0 %v1295
        %v1334 = vpop.f32.mrb[0].mxu0
        %v1335 = vadd.f32 0.0, %v1334
        %v1336 = vpop.f32.mrb[0].mxu0
        %v1337 = vpop.f32.mrb[0].mxu0
        %v1338 = vpop.f32.mrb[0].mxu0
        %1339 = vdwg.mxu0
        %v1341 = vsel %vm1293, %v1282, 0
        %v1344 = vsel %vm1293, %v1286, 0
        %1346 = vmatprep.subr.bf16.mxu0 0
        %1347 = vmatpush1.bf16.xpose.msra.mxu0 %v1344
        %1348 = vmatprep.subr.bf16.mxu0 0
        %1349 = vmatpush1.bf16.xpose.msra.mxu0 0
        %1350 = vmatprep.subr.bf16.mxu0 0
        %1351 = vmatpush1.bf16.xpose.msra.mxu0 0
        %1352 = vmatprep.subr.bf16.mxu0 0
        %1353 = vmatpush1.bf16.xpose.msra.mxu0 0
        %1354 = vmatprep.subr.bf16.mxu0 0
        %1355 = vmatpush1.bf16.xpose.msra.mxu0 0
        %1356 = vmatprep.subr.bf16.mxu0 0
        %1357 = vmatpush1.bf16.xpose.msra.mxu0 0
        %1358 = vmatprep.subr.bf16.mxu0 0
        %1359 = vmatpush1.bf16.xpose.msra.mxu0 0
        %1360 = vmatprep.subr.bf16.mxu0 0
        %1361 = vmatpush1.bf16.xpose.msra.mxu0 0
        %1362 = vmatprep.subr.bf16.mxu0 0
        %1363 = vmatpush1.bf16.xpose.msra.mxu0 0
        %1364 = vmatprep.subr.bf16.mxu0 0
        %1365 = vmatpush1.bf16.xpose.msra.mxu0 0
        %1366 = vmatprep.subr.bf16.mxu0 0
        %1367 = vmatpush1.bf16.xpose.msra.mxu0 0
        %1368 = vmatprep.subr.bf16.mxu0 0
        %1369 = vmatpush1.bf16.xpose.msra.mxu0 0
        %1370 = vmatprep.subr.bf16.mxu0 0
        %1371 = vmatpush1.bf16.xpose.msra.mxu0 0
        %1372 = vmatprep.subr.bf16.mxu0 0
        %1373 = vmatpush1.bf16.xpose.msra.mxu0 0
        %1374 = vmatprep.subr.bf16.mxu0 0
        %1375 = vmatpush1.bf16.xpose.msra.mxu0 0
        %1376 = vmatprep.subr.bf16.mxu0 0
        %1377 = vmatpush1.bf16.xpose.msra.mxu0 0
        %1378 = vmatprep.mubr.bf16.mxu0 0
        %1379 = vmatmul.mubr.bf16.gmra.mrb[0].mxu0 %v1341
        %v1380 = vpop.f32.mrb[0].mxu0
        %v1381 = vadd.f32 0.0, %v1380
        %v1382 = vpop.f32.mrb[0].mxu0
        %v1383 = vpop.f32.mrb[0].mxu0
        %v1384 = vpop.f32.mrb[0].mxu0
        %1385 = vdwg.mxu0
        %v1387 = vsel %vm1293, %v1283, 0
        %v1390 = vsel %vm1293, %v1287, 0
        %1392 = vmatprep.subr.bf16.mxu0 0
        %1393 = vmatpush1.bf16.xpose.msra.mxu0 %v1390
        %1394 = vmatprep.subr.bf16.mxu0 0
        %1395 = vmatpush1.bf16.xpose.msra.mxu0 0
        %1396 = vmatprep.subr.bf16.mxu0 0
        %1397 = vmatpush1.bf16.xpose.msra.mxu0 0
        %1398 = vmatprep.subr.bf16.mxu0 0
        %1399 = vmatpush1.bf16.xpose.msra.mxu0 0
        %1400 = vmatprep.subr.bf16.mxu0 0
        %1401 = vmatpush1.bf16.xpose.msra.mxu0 0
        %1402 = vmatprep.subr.bf16.mxu0 0
        %1403 = vmatpush1.bf16.xpose.msra.mxu0 0
        %1404 = vmatprep.subr.bf16.mxu0 0
        %1405 = vmatpush1.bf16.xpose.msra.mxu0 0
        %1406 = vmatprep.subr.bf16.mxu0 0
        %1407 = vmatpush1.bf16.xpose.msra.mxu0 0
        %1408 = vmatprep.subr.bf16.mxu0 0
        %1409 = vmatpush1.bf16.xpose.msra.mxu0 0
        %1410 = vmatprep.subr.bf16.mxu0 0
        %1411 = vmatpush1.bf16.xpose.msra.mxu0 0
        %1412 = vmatprep.subr.bf16.mxu0 0
        %1413 = vmatpush1.bf16.xpose.msra.mxu0 0
        %1414 = vmatprep.subr.bf16.mxu0 0
        %1415 = vmatpush1.bf16.xpose.msra.mxu0 0
        %1416 = vmatprep.subr.bf16.mxu0 0
        %1417 = vmatpush1.bf16.xpose.msra.mxu0 0
        %1418 = vmatprep.subr.bf16.mxu0 0
        %1419 = vmatpush1.bf16.xpose.msra.mxu0 0
        %1420 = vmatprep.subr.bf16.mxu0 0
        %1421 = vmatpush1.bf16.xpose.msra.mxu0 0
        %1422 = vmatprep.subr.bf16.mxu0 0
        %1423 = vmatpush1.bf16.xpose.msra.mxu0 0
        %1424 = vmatprep.mubr.bf16.mxu0 0
        %1425 = vmatmul.mubr.bf16.gmra.mrb[0].mxu0 %v1387
        %v1426 = vpop.f32.mrb[0].mxu0
        %v1427 = vadd.f32 0.0, %v1426
        %v1428 = vpop.f32.mrb[0].mxu0
        %v1429 = vpop.f32.mrb[0].mxu0
        %v1430 = vpop.f32.mrb[0].mxu0
        %1431 = vdwg.mxu0
        %v1433 = vsel %vm1293, %v1284, 0
        %v1436 = vsel %vm1293, %v1288, 0
        %1438 = vmatprep.subr.bf16.mxu0 0
        %1439 = vmatpush1.bf16.xpose.msra.mxu0 %v1436
        %1440 = vmatprep.subr.bf16.mxu0 0
        %1441 = vmatpush1.bf16.xpose.msra.mxu0 0
        %1442 = vmatprep.subr.bf16.mxu0 0
        %1443 = vmatpush1.bf16.xpose.msra.mxu0 0
        %1444 = vmatprep.subr.bf16.mxu0 0
        %1445 = vmatpush1.bf16.xpose.msra.mxu0 0
        %1446 = vmatprep.subr.bf16.mxu0 0
        %1447 = vmatpush1.bf16.xpose.msra.mxu0 0
        %1448 = vmatprep.subr.bf16.mxu0 0
        %1449 = vmatpush1.bf16.xpose.msra.mxu0 0
        %1450 = vmatprep.subr.bf16.mxu0 0
        %1451 = vmatpush1.bf16.xpose.msra.mxu0 0
        %1452 = vmatprep.subr.bf16.mxu0 0
        %1453 = vmatpush1.bf16.xpose.msra.mxu0 0
        %1454 = vmatprep.subr.bf16.mxu0 0
        %1455 = vmatpush1.bf16.xpose.msra.mxu0 0
        %1456 = vmatprep.subr.bf16.mxu0 0
        %1457 = vmatpush1.bf16.xpose.msra.mxu0 0
        %1458 = vmatprep.subr.bf16.mxu0 0
        %1459 = vmatpush1.bf16.xpose.msra.mxu0 0
        %1460 = vmatprep.subr.bf16.mxu0 0
        %1461 = vmatpush1.bf16.xpose.msra.mxu0 0
        %1462 = vmatprep.subr.bf16.mxu0 0
        %1463 = vmatpush1.bf16.xpose.msra.mxu0 0
        %1464 = vmatprep.subr.bf16.mxu0 0
        %1465 = vmatpush1.bf16.xpose.msra.mxu0 0
        %1466 = vmatprep.subr.bf16.mxu0 0
        %1467 = vmatpush1.bf16.xpose.msra.mxu0 0
        %1468 = vmatprep.subr.bf16.mxu0 0
        %1469 = vmatpush1.bf16.xpose.msra.mxu0 0
        %1470 = vmatprep.mubr.bf16.mxu0 0
        %1471 = vmatmul.mubr.bf16.gmra.mrb[0].mxu0 %v1433
        %v1472 = vpop.f32.mrb[0].mxu0
        %v1473 = vadd.f32 0.0, %v1472
        %v1474 = vpop.f32.mrb[0].mxu0
        %v1475 = vpop.f32.mrb[0].mxu0
        %v1476 = vpop.f32.mrb[0].mxu0
        %1477 = vdwg.mxu0
        %v1478 = vmul.f32 %v1335, 0.35355338
        %v1479 = vmul.f32 %v1381, 0.35355338
        %v1480 = vmul.f32 %v1427, 0.35355338
        %v1481 = vmul.f32 %v1473, 0.35355338
        %v1482 = vadd.f32 %v1478, %v519
        %v1483 = vadd.f32 %v1479, %v519
        %v1484 = vadd.f32 %v1480, %v519
        %v1485 = vadd.f32 %v1481, %v519
        %v1486 = vsel %vm1293, %v1482, -inf
        %1487 = vmax.xlane.f32.xlu0 %v1486
        %v1488 = vpop.xlane.xlu0 %1487
        %v1489 = vsel %vm1293, %v1483, -inf
        %1490 = vmax.xlane.f32.xlu0 %v1489
        %v1491 = vpop.xlane.xlu0 %1490
        %v1492 = vsel %vm1293, %v1484, -inf
        %1493 = vmax.xlane.f32.xlu0 %v1492
        %v1494 = vpop.xlane.xlu0 %1493
        %v1495 = vsel %vm1293, %v1485, -inf
        %1496 = vmax.xlane.f32.xlu0 %v1495
        %v1497 = vpop.xlane.xlu0 %1496
        %v1498 = vsub.f32 %v1482, %v1488
        %v1499 = vsub.f32 %v1483, %v1491
        %v1500 = vsub.f32 %v1484, %v1494
        %v1501 = vsub.f32 %v1485, %v1497
        %v1502 = vmul.f32 %v1498, 1.442695
        %v1503 = vpow.pop %v1502
        %v1504 = vmul.f32 %v1499, 1.442695
        %v1505 = vpow.pop %v1504
        %v1506 = vmul.f32 %v1500, 1.442695
        %v1507 = vpow.pop %v1506
        %v1508 = vmul.f32 %v1501, 1.442695
        %v1509 = vpow.pop %v1508
        %v1510 = vsel %vm1293, %v1503, 0.0
        %1511 = vadd.xlane.f32.xlu0 %v1510
        %v1512 = vpop.xlane.xlu0 %1511
        %v1513 = vsel %vm1293, %v1505, 0.0
        %1514 = vadd.xlane.f32.xlu0 %v1513
        %v1515 = vpop.xlane.xlu0 %1514
        %v1516 = vsel %vm1293, %v1507, 0.0
        %1517 = vadd.xlane.f32.xlu0 %v1516
        %v1518 = vpop.xlane.xlu0 %1517
        %v1519 = vsel %vm1293, %v1509, 0.0
        %1520 = vadd.xlane.f32.xlu0 %v1519
        %v1521 = vpop.xlane.xlu0 %1520
        %v1522 = vrcp.pop %v1512
        %v1523 = vrcp.pop %v1515
        %v1524 = vrcp.pop %v1518
        %v1525 = vrcp.pop %v1521
        %v1526 = vmul.f32 %v1503, %v1522
        %v1527 = vmul.f32 %v1505, %v1523
        %v1528 = vmul.f32 %v1507, %v1524
        %v1529 = vmul.f32 %v1509, %v1525
        %v1530 = vpack.c.bf16 %v1526, %v1526
        %v1531 = vpack.c.bf16 %v1527, %v1527
        %v1532 = vpack.c.bf16 %v1528, %v1528
        %v1533 = vpack.c.bf16 %v1529, %v1529
        %v1535 = vsel %vm1293, %v1530, 0
        %vm1537 = vcmask 1043456
        %v1539 = vsel %vm1537, %v1289, 0
        %1541 = vmatprep.subr.bf16.mxu0 0
        %1542 = vmatpush1.bf16.msra.mxu0 %v1539
        %1543 = vmatprep.subr.bf16.mxu0 0
        %1544 = vmatpush1.bf16.msra.mxu0 0
        %1545 = vmatprep.subr.bf16.mxu0 0
        %1546 = vmatpush1.bf16.msra.mxu0 0
        %1547 = vmatprep.subr.bf16.mxu0 0
        %1548 = vmatpush1.bf16.msra.mxu0 0
        %1549 = vmatprep.subr.bf16.mxu0 0
        %1550 = vmatpush1.bf16.msra.mxu0 0
        %1551 = vmatprep.subr.bf16.mxu0 0
        %1552 = vmatpush1.bf16.msra.mxu0 0
        %1553 = vmatprep.subr.bf16.mxu0 0
        %1554 = vmatpush1.bf16.msra.mxu0 0
        %1555 = vmatprep.subr.bf16.mxu0 0
        %1556 = vmatpush1.bf16.msra.mxu0 0
        %1557 = vmatprep.subr.bf16.mxu0 0
        %1558 = vmatpush1.bf16.msra.mxu0 0
        %1559 = vmatprep.subr.bf16.mxu0 0
        %1560 = vmatpush1.bf16.msra.mxu0 0
        %1561 = vmatprep.subr.bf16.mxu0 0
        %1562 = vmatpush1.bf16.msra.mxu0 0
        %1563 = vmatprep.subr.bf16.mxu0 0
        %1564 = vmatpush1.bf16.msra.mxu0 0
        %1565 = vmatprep.subr.bf16.mxu0 0
        %1566 = vmatpush1.bf16.msra.mxu0 0
        %1567 = vmatprep.subr.bf16.mxu0 0
        %1568 = vmatpush1.bf16.msra.mxu0 0
        %1569 = vmatprep.subr.bf16.mxu0 0
        %1570 = vmatpush1.bf16.msra.mxu0 0
        %1571 = vmatprep.subr.bf16.mxu0 0
        %1572 = vmatpush1.bf16.msra.mxu0 0
        %1573 = vmatprep.mubr.bf16.mxu0 0
        %1574 = vmatmul.mubr.bf16.gmra.mrb[0].mxu0 %v1535
        %v1575 = vpop.f32.mrb[0].mxu0
        %v1576 = vadd.f32 0.0, %v1575
        %v1577 = vpop.f32.mrb[0].mxu0
        %v1578 = vpop.f32.mrb[0].mxu0
        %v1579 = vpop.f32.mrb[0].mxu0
        %1580 = vdwg.mxu0
        %v1582 = vsel %vm1293, %v1531, 0
        %v1585 = vsel %vm1537, %v1290, 0
        %1587 = vmatprep.subr.bf16.mxu0 0
        %1588 = vmatpush1.bf16.msra.mxu0 %v1585
        %1589 = vmatprep.subr.bf16.mxu0 0
        %1590 = vmatpush1.bf16.msra.mxu0 0
        %1591 = vmatprep.subr.bf16.mxu0 0
        %1592 = vmatpush1.bf16.msra.mxu0 0
        %1593 = vmatprep.subr.bf16.mxu0 0
        %1594 = vmatpush1.bf16.msra.mxu0 0
        %1595 = vmatprep.subr.bf16.mxu0 0
        %1596 = vmatpush1.bf16.msra.mxu0 0
        %1597 = vmatprep.subr.bf16.mxu0 0
        %1598 = vmatpush1.bf16.msra.mxu0 0
        %1599 = vmatprep.subr.bf16.mxu0 0
        %1600 = vmatpush1.bf16.msra.mxu0 0
        %1601 = vmatprep.subr.bf16.mxu0 0
        %1602 = vmatpush1.bf16.msra.mxu0 0
        %1603 = vmatprep.subr.bf16.mxu0 0
        %1604 = vmatpush1.bf16.msra.mxu0 0
        %1605 = vmatprep.subr.bf16.mxu0 0
        %1606 = vmatpush1.bf16.msra.mxu0 0
        %1607 = vmatprep.subr.bf16.mxu0 0
        %1608 = vmatpush1.bf16.msra.mxu0 0
        %1609 = vmatprep.subr.bf16.mxu0 0
        %1610 = vmatpush1.bf16.msra.mxu0 0
        %1611 = vmatprep.subr.bf16.mxu0 0
        %1612 = vmatpush1.bf16.msra.mxu0 0
        %1613 = vmatprep.subr.bf16.mxu0 0
        %1614 = vmatpush1.bf16.msra.mxu0 0
        %1615 = vmatprep.subr.bf16.mxu0 0
        %1616 = vmatpush1.bf16.msra.mxu0 0
        %1617 = vmatprep.subr.bf16.mxu0 0
        %1618 = vmatpush1.bf16.msra.mxu0 0
        %1619 = vmatprep.mubr.bf16.mxu0 0
        %1620 = vmatmul.mubr.bf16.gmra.mrb[0].mxu0 %v1582
        %v1621 = vpop.f32.mrb[0].mxu0
        %v1622 = vadd.f32 0.0, %v1621
        %v1623 = vpop.f32.mrb[0].mxu0
        %v1624 = vpop.f32.mrb[0].mxu0
        %v1625 = vpop.f32.mrb[0].mxu0
        %1626 = vdwg.mxu0
        %v1628 = vsel %vm1293, %v1532, 0
        %v1631 = vsel %vm1537, %v1291, 0
        %1633 = vmatprep.subr.bf16.mxu0 0
        %1634 = vmatpush1.bf16.msra.mxu0 %v1631
        %1635 = vmatprep.subr.bf16.mxu0 0
        %1636 = vmatpush1.bf16.msra.mxu0 0
        %1637 = vmatprep.subr.bf16.mxu0 0
        %1638 = vmatpush1.bf16.msra.mxu0 0
        %1639 = vmatprep.subr.bf16.mxu0 0
        %1640 = vmatpush1.bf16.msra.mxu0 0
        %1641 = vmatprep.subr.bf16.mxu0 0
        %1642 = vmatpush1.bf16.msra.mxu0 0
        %1643 = vmatprep.subr.bf16.mxu0 0
        %1644 = vmatpush1.bf16.msra.mxu0 0
        %1645 = vmatprep.subr.bf16.mxu0 0
        %1646 = vmatpush1.bf16.msra.mxu0 0
        %1647 = vmatprep.subr.bf16.mxu0 0
        %1648 = vmatpush1.bf16.msra.mxu0 0
        %1649 = vmatprep.subr.bf16.mxu0 0
        %1650 = vmatpush1.bf16.msra.mxu0 0
        %1651 = vmatprep.subr.bf16.mxu0 0
        %1652 = vmatpush1.bf16.msra.mxu0 0
        %1653 = vmatprep.subr.bf16.mxu0 0
        %1654 = vmatpush1.bf16.msra.mxu0 0
        %1655 = vmatprep.subr.bf16.mxu0 0
        %1656 = vmatpush1.bf16.msra.mxu0 0
        %1657 = vmatprep.subr.bf16.mxu0 0
        %1658 = vmatpush1.bf16.msra.mxu0 0
        %1659 = vmatprep.subr.bf16.mxu0 0
        %1660 = vmatpush1.bf16.msra.mxu0 0
        %1661 = vmatprep.subr.bf16.mxu0 0
        %1662 = vmatpush1.bf16.msra.mxu0 0
        %1663 = vmatprep.subr.bf16.mxu0 0
        %1664 = vmatpush1.bf16.msra.mxu0 0
        %1665 = vmatprep.mubr.bf16.mxu0 0
        %1666 = vmatmul.mubr.bf16.gmra.mrb[0].mxu0 %v1628
        %v1667 = vpop.f32.mrb[0].mxu0
        %v1668 = vadd.f32 0.0, %v1667
        %v1669 = vpop.f32.mrb[0].mxu0
        %v1670 = vpop.f32.mrb[0].mxu0
        %v1671 = vpop.f32.mrb[0].mxu0
        %1672 = vdwg.mxu0
        %v1674 = vsel %vm1293, %v1533, 0
        %v1677 = vsel %vm1537, %v1292, 0
        %1679 = vmatprep.subr.bf16.mxu0 0
        %1680 = vmatpush1.bf16.msra.mxu0 %v1677
        %1681 = vmatprep.subr.bf16.mxu0 0
        %1682 = vmatpush1.bf16.msra.mxu0 0
        %1683 = vmatprep.subr.bf16.mxu0 0
        %1684 = vmatpush1.bf16.msra.mxu0 0
        %1685 = vmatprep.subr.bf16.mxu0 0
        %1686 = vmatpush1.bf16.msra.mxu0 0
        %1687 = vmatprep.subr.bf16.mxu0 0
        %1688 = vmatpush1.bf16.msra.mxu0 0
        %1689 = vmatprep.subr.bf16.mxu0 0
        %1690 = vmatpush1.bf16.msra.mxu0 0
        %1691 = vmatprep.subr.bf16.mxu0 0
        %1692 = vmatpush1.bf16.msra.mxu0 0
        %1693 = vmatprep.subr.bf16.mxu0 0
        %1694 = vmatpush1.bf16.msra.mxu0 0
        %1695 = vmatprep.subr.bf16.mxu0 0
        %1696 = vmatpush1.bf16.msra.mxu0 0
        %1697 = vmatprep.subr.bf16.mxu0 0
        %1698 = vmatpush1.bf16.msra.mxu0 0
        %1699 = vmatprep.subr.bf16.mxu0 0
        %1700 = vmatpush1.bf16.msra.mxu0 0
        %1701 = vmatprep.subr.bf16.mxu0 0
        %1702 = vmatpush1.bf16.msra.mxu0 0
        %1703 = vmatprep.subr.bf16.mxu0 0
        %1704 = vmatpush1.bf16.msra.mxu0 0
        %1705 = vmatprep.subr.bf16.mxu0 0
        %1706 = vmatpush1.bf16.msra.mxu0 0
        %1707 = vmatprep.subr.bf16.mxu0 0
        %1708 = vmatpush1.bf16.msra.mxu0 0
        %1709 = vmatprep.subr.bf16.mxu0 0
        %1710 = vmatpush1.bf16.msra.mxu0 0
        %1711 = vmatprep.mubr.bf16.mxu0 0
        %1712 = vmatmul.mubr.bf16.gmra.mrb[0].mxu0 %v1674
        %v1713 = vpop.f32.mrb[0].mxu0
        %v1714 = vadd.f32 0.0, %v1713
        %v1715 = vpop.f32.mrb[0].mxu0
        %v1716 = vpop.f32.mrb[0].mxu0
        %v1717 = vpop.f32.mrb[0].mxu0
        %1718 = vdwg.mxu0
        %v1719 = vpack.c.bf16 %v1576, %v1576
        %v1720 = vpack.c.bf16 %v1622, %v1622
        %v1721 = vpack.c.bf16 %v1668, %v1668
        %v1722 = vpack.c.bf16 %v1714, %v1714
        %v1723 = vld [vmem:[%s4] sm:$0xf]
        %v1724 = vld [vmem:[%s4 + $0x4] sm:$0xf]
        %v1725 = vld [vmem:[%s4 + $0x8] sm:$0xf]
        %v1726 = vld [vmem:[%s4 + $0xc] sm:$0xf]
        %v1728 = vsel %vm1293, %v1719, 0
        %v1731 = vsel %vm1537, %v1723, 0
        %1733 = vmatprep.subr.bf16.mxu0 0
        %1734 = vmatpush1.bf16.msra.mxu0 %v1731
        %1735 = vmatprep.subr.bf16.mxu0 0
        %1736 = vmatpush1.bf16.msra.mxu0 0
        %1737 = vmatprep.subr.bf16.mxu0 0
        %1738 = vmatpush1.bf16.msra.mxu0 0
        %1739 = vmatprep.subr.bf16.mxu0 0
        %1740 = vmatpush1.bf16.msra.mxu0 0
        %1741 = vmatprep.subr.bf16.mxu0 0
        %1742 = vmatpush1.bf16.msra.mxu0 0
        %1743 = vmatprep.subr.bf16.mxu0 0
        %1744 = vmatpush1.bf16.msra.mxu0 0
        %1745 = vmatprep.subr.bf16.mxu0 0
        %1746 = vmatpush1.bf16.msra.mxu0 0
        %1747 = vmatprep.subr.bf16.mxu0 0
        %1748 = vmatpush1.bf16.msra.mxu0 0
        %1749 = vmatprep.subr.bf16.mxu0 0
        %1750 = vmatpush1.bf16.msra.mxu0 0
        %1751 = vmatprep.subr.bf16.mxu0 0
        %1752 = vmatpush1.bf16.msra.mxu0 0
        %1753 = vmatprep.subr.bf16.mxu0 0
        %1754 = vmatpush1.bf16.msra.mxu0 0
        %1755 = vmatprep.subr.bf16.mxu0 0
        %1756 = vmatpush1.bf16.msra.mxu0 0
        %1757 = vmatprep.subr.bf16.mxu0 0
        %1758 = vmatpush1.bf16.msra.mxu0 0
        %1759 = vmatprep.subr.bf16.mxu0 0
        %1760 = vmatpush1.bf16.msra.mxu0 0
        %1761 = vmatprep.subr.bf16.mxu0 0
        %1762 = vmatpush1.bf16.msra.mxu0 0
        %1763 = vmatprep.subr.bf16.mxu0 0
        %1764 = vmatpush1.bf16.msra.mxu0 0
        %1765 = vmatprep.mubr.bf16.mxu0 0
        %1766 = vmatmul.mubr.bf16.gmra.mrb[0].mxu0 %v1728
        %v1767 = vpop.f32.mrb[0].mxu0
        %v1768 = vadd.f32 0.0, %v1767
        %v1769 = vpop.f32.mrb[0].mxu0
        %v1770 = vpop.f32.mrb[0].mxu0
        %v1771 = vpop.f32.mrb[0].mxu0
        %1772 = vdwg.mxu0
        %v1774 = vsel %vm1293, %v1720, 0
        %v1777 = vsel %vm1537, %v1724, 0
        %1779 = vmatprep.subr.bf16.mxu0 0
        %1780 = vmatpush1.bf16.msra.mxu0 %v1777
        %1781 = vmatprep.subr.bf16.mxu0 0
        %1782 = vmatpush1.bf16.msra.mxu0 0
        %1783 = vmatprep.subr.bf16.mxu0 0
        %1784 = vmatpush1.bf16.msra.mxu0 0
        %1785 = vmatprep.subr.bf16.mxu0 0
        %1786 = vmatpush1.bf16.msra.mxu0 0
        %1787 = vmatprep.subr.bf16.mxu0 0
        %1788 = vmatpush1.bf16.msra.mxu0 0
        %1789 = vmatprep.subr.bf16.mxu0 0
        %1790 = vmatpush1.bf16.msra.mxu0 0
        %1791 = vmatprep.subr.bf16.mxu0 0
        %1792 = vmatpush1.bf16.msra.mxu0 0
        %1793 = vmatprep.subr.bf16.mxu0 0
        %1794 = vmatpush1.bf16.msra.mxu0 0
        %1795 = vmatprep.subr.bf16.mxu0 0
        %1796 = vmatpush1.bf16.msra.mxu0 0
        %1797 = vmatprep.subr.bf16.mxu0 0
        %1798 = vmatpush1.bf16.msra.mxu0 0
        %1799 = vmatprep.subr.bf16.mxu0 0
        %1800 = vmatpush1.bf16.msra.mxu0 0
        %1801 = vmatprep.subr.bf16.mxu0 0
        %1802 = vmatpush1.bf16.msra.mxu0 0
        %1803 = vmatprep.subr.bf16.mxu0 0
        %1804 = vmatpush1.bf16.msra.mxu0 0
        %1805 = vmatprep.subr.bf16.mxu0 0
        %1806 = vmatpush1.bf16.msra.mxu0 0
        %1807 = vmatprep.subr.bf16.mxu0 0
        %1808 = vmatpush1.bf16.msra.mxu0 0
        %1809 = vmatprep.subr.bf16.mxu0 0
        %1810 = vmatpush1.bf16.msra.mxu0 0
        %1811 = vmatprep.mubr.bf16.mxu0 0
        %1812 = vmatmul.mubr.bf16.gmra.mrb[0].mxu0 %v1774
        %v1813 = vpop.f32.mrb[0].mxu0
        %v1814 = vadd.f32 0.0, %v1813
        %v1815 = vpop.f32.mrb[0].mxu0
        %v1816 = vpop.f32.mrb[0].mxu0
        %v1817 = vpop.f32.mrb[0].mxu0
        %1818 = vdwg.mxu0
        %v1820 = vsel %vm1293, %v1721, 0
        %v1823 = vsel %vm1537, %v1725, 0
        %1825 = vmatprep.subr.bf16.mxu0 0
        %1826 = vmatpush1.bf16.msra.mxu0 %v1823
        %1827 = vmatprep.subr.bf16.mxu0 0
        %1828 = vmatpush1.bf16.msra.mxu0 0
        %1829 = vmatprep.subr.bf16.mxu0 0
        %1830 = vmatpush1.bf16.msra.mxu0 0
        %1831 = vmatprep.subr.bf16.mxu0 0
        %1832 = vmatpush1.bf16.msra.mxu0 0
        %1833 = vmatprep.subr.bf16.mxu0 0
        %1834 = vmatpush1.bf16.msra.mxu0 0
        %1835 = vmatprep.subr.bf16.mxu0 0
        %1836 = vmatpush1.bf16.msra.mxu0 0
        %1837 = vmatprep.subr.bf16.mxu0 0
        %1838 = vmatpush1.bf16.msra.mxu0 0
        %1839 = vmatprep.subr.bf16.mxu0 0
        %1840 = vmatpush1.bf16.msra.mxu0 0
        %1841 = vmatprep.subr.bf16.mxu0 0
        %1842 = vmatpush1.bf16.msra.mxu0 0
        %1843 = vmatprep.subr.bf16.mxu0 0
        %1844 = vmatpush1.bf16.msra.mxu0 0
        %1845 = vmatprep.subr.bf16.mxu0 0
        %1846 = vmatpush1.bf16.msra.mxu0 0
        %1847 = vmatprep.subr.bf16.mxu0 0
        %1848 = vmatpush1.bf16.msra.mxu0 0
        %1849 = vmatprep.subr.bf16.mxu0 0
        %1850 = vmatpush1.bf16.msra.mxu0 0
        %1851 = vmatprep.subr.bf16.mxu0 0
        %1852 = vmatpush1.bf16.msra.mxu0 0
        %1853 = vmatprep.subr.bf16.mxu0 0
        %1854 = vmatpush1.bf16.msra.mxu0 0
        %1855 = vmatprep.subr.bf16.mxu0 0
        %1856 = vmatpush1.bf16.msra.mxu0 0
        %1857 = vmatprep.mubr.bf16.mxu0 0
        %1858 = vmatmul.mubr.bf16.gmra.mrb[0].mxu0 %v1820
        %v1859 = vpop.f32.mrb[0].mxu0
        %v1860 = vadd.f32 0.0, %v1859
        %v1861 = vpop.f32.mrb[0].mxu0
        %v1862 = vpop.f32.mrb[0].mxu0
        %v1863 = vpop.f32.mrb[0].mxu0
        %1864 = vdwg.mxu0
        %v1866 = vsel %vm1293, %v1722, 0
        %v1869 = vsel %vm1537, %v1726, 0
        %1871 = vmatprep.subr.bf16.mxu0 0
        %1872 = vmatpush1.bf16.msra.mxu0 %v1869
        %1873 = vmatprep.subr.bf16.mxu0 0
        %1874 = vmatpush1.bf16.msra.mxu0 0
        %1875 = vmatprep.subr.bf16.mxu0 0
        %1876 = vmatpush1.bf16.msra.mxu0 0
        %1877 = vmatprep.subr.bf16.mxu0 0
        %1878 = vmatpush1.bf16.msra.mxu0 0
        %1879 = vmatprep.subr.bf16.mxu0 0
        %1880 = vmatpush1.bf16.msra.mxu0 0
        %1881 = vmatprep.subr.bf16.mxu0 0
        %1882 = vmatpush1.bf16.msra.mxu0 0
        %1883 = vmatprep.subr.bf16.mxu0 0
        %1884 = vmatpush1.bf16.msra.mxu0 0
        %1885 = vmatprep.subr.bf16.mxu0 0
        %1886 = vmatpush1.bf16.msra.mxu0 0
        %1887 = vmatprep.subr.bf16.mxu0 0
        %1888 = vmatpush1.bf16.msra.mxu0 0
        %1889 = vmatprep.subr.bf16.mxu0 0
        %1890 = vmatpush1.bf16.msra.mxu0 0
        %1891 = vmatprep.subr.bf16.mxu0 0
        %1892 = vmatpush1.bf16.msra.mxu0 0
        %1893 = vmatprep.subr.bf16.mxu0 0
        %1894 = vmatpush1.bf16.msra.mxu0 0
        %1895 = vmatprep.subr.bf16.mxu0 0
        %1896 = vmatpush1.bf16.msra.mxu0 0
        %1897 = vmatprep.subr.bf16.mxu0 0
        %1898 = vmatpush1.bf16.msra.mxu0 0
        %1899 = vmatprep.subr.bf16.mxu0 0
        %1900 = vmatpush1.bf16.msra.mxu0 0
        %1901 = vmatprep.subr.bf16.mxu0 0
        %1902 = vmatpush1.bf16.msra.mxu0 0
        %1903 = vmatprep.mubr.bf16.mxu0 0
        %1904 = vmatmul.mubr.bf16.gmra.mrb[0].mxu0 %v1866
        %v1905 = vpop.f32.mrb[0].mxu0
        %v1906 = vadd.f32 0.0, %v1905
        %v1907 = vpop.f32.mrb[0].mxu0
        %v1908 = vpop.f32.mrb[0].mxu0
        %v1909 = vpop.f32.mrb[0].mxu0
        %1910 = vdwg.mxu0
        %v1911 = vsel %vm665, %v1768, 0.0
        %v1912 = vsel %vm665, %v1814, 0.0
        %v1913 = vadd.f32 %v1911, %v1912
        %v1914 = vsel %vm665, %v1860, 0.0
        %v1915 = vadd.f32 %v1913, %v1914
        %v1916 = vsel %vm665, %v1906, 0.0
        %v1917 = vadd.f32 %v1915, %v1916
        %v1918 = vld [vmem:[%s5] sm:$0x1]
        %v1920 = vlaneseq
        %v1921 = vshrl.u32 %v1920, 7
        %v1922 = vsub.s32 0, %v1921
        %v1923 = vrot.slane %v1918, %v1922
        %v1925 = vadd.f32 %v1917, %v1923
        %v1926 = vadd.f32 %v518, %v1925
        %v1927 = vld [vmem:[%s6] sm:$0x1]
        %v1928 = vld [vmem:[%s7] sm:$0x1]
        %v1929 = vsel %vm665, %v1926, 0.0
        %1930 = vadd.xlane.f32.xlu0 %v1929
        %v1931 = vpop.xlane.xlu0 %1930
        %v1932 = vrcp.pop 32.0
        %v1933 = vmul.f32 %v1931, %v1932
        %v1934 = vsub.f32 %v1926, %v1933
        %v1935 = vmul.f32 %v1934, %v1934
        %v1936 = vsel %vm665, %v1935, 0.0
        %1937 = vadd.xlane.f32.xlu0 %v1936
        %v1938 = vpop.xlane.xlu0 %1937
        %v1939 = vmul.f32 %v1938, %v1932
        %v1940 = vadd.f32 %v1939, 1e-05
        %v1941 = vrsqrt.pop %v1940
        %v1942 = vmul.f32 %v1934, %v1941
        %v1944 = vlaneseq
        %v1945 = vshrl.u32 %v1944, 7
        %v1946 = vsub.s32 0, %v1945
        %v1947 = vrot.slane %v1927, %v1946
        %v1949 = vmul.f32 %v1942, %v1947
        %v1951 = vlaneseq
        %v1952 = vshrl.u32 %v1951, 7
        %v1953 = vsub.s32 0, %v1952
        %v1954 = vrot.slane %v1928, %v1953
        %v1956 = vadd.f32 %v1949, %v1954
        %v1957 = vpack.c.bf16 %v1956, %v1956
        %v1958 = vld [vmem:[%s8] sm:$0xf]
        %v1959 = vld [vmem:[%s8 + $0x4] sm:$0xf]
        %v1960 = vld [vmem:[%s8 + $0x8] sm:$0xf]
        %v1961 = vld [vmem:[%s8 + $0xc] sm:$0xf]
        %v1962 = vld [vmem:[%s9] sm:$0x1]
        %v1964 = vlaneseq
        %v1965 = vshrl.u32 %v1964, 7
        %v1966 = vsub.s32 0, %v1965
        %v1967 = vrot.slane %v1962, %v1966
        %v1973 = vunpack.c.l.b16 %v1958
        %v1974 = vunpack.c.l.b16 %v1959
        %v1975 = vunpack.c.l.b16 %v1960
        %v1976 = vunpack.c.l.b16 %v1961
        %v1977 = vpack.c.b16 %v1974, %v1973
        %v1978 = vpack.c.b16 %v1976, %v1975
        %v1982 = vsel %vm665, %v1957, 0
        %1984 = vmatprep.subr.bf16.mxu0 0
        %1985 = vmatpush1.bf16.msra.mxu0 %v1977
        %1986 = vmatprep.subr.bf16.mxu0 0
        %1987 = vmatpush1.bf16.msra.mxu0 %v1978
        %1988 = vmatprep.subr.bf16.mxu0 0
        %1989 = vmatpush1.bf16.msra.mxu0 0
        %1990 = vmatprep.subr.bf16.mxu0 0
        %1991 = vmatpush1.bf16.msra.mxu0 0
        %1992 = vmatprep.subr.bf16.mxu0 0
        %1993 = vmatpush1.bf16.msra.mxu0 0
        %1994 = vmatprep.subr.bf16.mxu0 0
        %1995 = vmatpush1.bf16.msra.mxu0 0
        %1996 = vmatprep.subr.bf16.mxu0 0
        %1997 = vmatpush1.bf16.msra.mxu0 0
        %1998 = vmatprep.subr.bf16.mxu0 0
        %1999 = vmatpush1.bf16.msra.mxu0 0
        %2000 = vmatprep.subr.bf16.mxu0 0
        %2001 = vmatpush1.bf16.msra.mxu0 0
        %2002 = vmatprep.subr.bf16.mxu0 0
        %2003 = vmatpush1.bf16.msra.mxu0 0
        %2004 = vmatprep.subr.bf16.mxu0 0
        %2005 = vmatpush1.bf16.msra.mxu0 0
        %2006 = vmatprep.subr.bf16.mxu0 0
        %2007 = vmatpush1.bf16.msra.mxu0 0
        %2008 = vmatprep.subr.bf16.mxu0 0
        %2009 = vmatpush1.bf16.msra.mxu0 0
        %2010 = vmatprep.subr.bf16.mxu0 0
        %2011 = vmatpush1.bf16.msra.mxu0 0
        %2012 = vmatprep.subr.bf16.mxu0 0
        %2013 = vmatpush1.bf16.msra.mxu0 0
        %2014 = vmatprep.subr.bf16.mxu0 0
        %2015 = vmatpush1.bf16.msra.mxu0 0
        %2016 = vmatprep.mubr.bf16.mxu0 0
        %2017 = vmatmul.mubr.bf16.gmra.mrb[0].mxu0 %v1982
        %v2018 = vpop.f32.mrb[0].mxu0
        %v2019 = vadd.f32 %v1967, %v2018
        %v2020 = vpop.f32.mrb[0].mxu0
        %v2021 = vpop.f32.mrb[0].mxu0
        %v2022 = vpop.f32.mrb[0].mxu0
        %2023 = vdwg.mxu0
        %v2024 = vmax.f32 %v2019, 0.0
        %v2025 = vpack.c.bf16 %v2024, %v2024
        %v2026 = vld [vmem:[%s10] sm:$0xf]
        %v2027 = vld [vmem:[%s10 + $0x4] sm:$0xf]
        %v2028 = vld [vmem:[%s10 + $0x8] sm:$0xf]
        %v2029 = vld [vmem:[%s10 + $0xc] sm:$0xf]
        %v2030 = vld [vmem:[%s10 + $0x10] sm:$0xf]
        %v2031 = vld [vmem:[%s10 + $0x14] sm:$0xf]
        %v2032 = vld [vmem:[%s10 + $0x18] sm:$0xf]
        %v2033 = vld [vmem:[%s10 + $0x1c] sm:$0xf]
        %v2034 = vld [vmem:[%s10 + $0x20] sm:$0xf]
        %v2035 = vld [vmem:[%s10 + $0x24] sm:$0xf]
        %v2036 = vld [vmem:[%s10 + $0x28] sm:$0xf]
        %v2037 = vld [vmem:[%s10 + $0x2c] sm:$0xf]
        %v2038 = vld [vmem:[%s10 + $0x30] sm:$0xf]
        %v2039 = vld [vmem:[%s10 + $0x34] sm:$0xf]
        %v2040 = vld [vmem:[%s10 + $0x38] sm:$0xf]
        %v2041 = vld [vmem:[%s10 + $0x3c] sm:$0xf]
        %v2042 = vld [vmem:[%s11] sm:$0x1]
        %v2044 = vlaneseq
        %v2045 = vshrl.u32 %v2044, 7
        %v2046 = vsub.s32 0, %v2045
        %v2047 = vrot.slane %v2042, %v2046
        %v2065 = vunpack.c.l.b16 %v2026
        %v2066 = vunpack.c.l.b16 %v2027
        %v2067 = vunpack.c.l.b16 %v2028
        %v2068 = vunpack.c.l.b16 %v2029
        %v2069 = vunpack.c.l.b16 %v2030
        %v2070 = vunpack.c.l.b16 %v2031
        %v2071 = vunpack.c.l.b16 %v2032
        %v2072 = vunpack.c.l.b16 %v2033
        %v2073 = vunpack.c.l.b16 %v2034
        %v2074 = vunpack.c.l.b16 %v2035
        %v2075 = vunpack.c.l.b16 %v2036
        %v2076 = vunpack.c.l.b16 %v2037
        %v2077 = vunpack.c.l.b16 %v2038
        %v2078 = vunpack.c.l.b16 %v2039
        %v2079 = vunpack.c.l.b16 %v2040
        %v2080 = vunpack.c.l.b16 %v2041
        %v2081 = vpack.c.b16 %v2066, %v2065
        %v2082 = vpack.c.b16 %v2068, %v2067
        %v2083 = vpack.c.b16 %v2070, %v2069
        %v2084 = vpack.c.b16 %v2072, %v2071
        %v2085 = vpack.c.b16 %v2074, %v2073
        %v2086 = vpack.c.b16 %v2076, %v2075
        %v2087 = vpack.c.b16 %v2078, %v2077
        %v2088 = vpack.c.b16 %v2080, %v2079
        %2097 = vmatprep.subr.bf16.mxu0 0
        %2098 = vmatpush1.bf16.msra.mxu0 %v2081
        %2099 = vmatprep.subr.bf16.mxu0 0
        %2100 = vmatpush1.bf16.msra.mxu0 %v2082
        %2101 = vmatprep.subr.bf16.mxu0 0
        %2102 = vmatpush1.bf16.msra.mxu0 %v2083
        %2103 = vmatprep.subr.bf16.mxu0 0
        %2104 = vmatpush1.bf16.msra.mxu0 %v2084
        %2105 = vmatprep.subr.bf16.mxu0 0
        %2106 = vmatpush1.bf16.msra.mxu0 %v2085
        %2107 = vmatprep.subr.bf16.mxu0 0
        %2108 = vmatpush1.bf16.msra.mxu0 %v2086
        %2109 = vmatprep.subr.bf16.mxu0 0
        %2110 = vmatpush1.bf16.msra.mxu0 %v2087
        %2111 = vmatprep.subr.bf16.mxu0 0
        %2112 = vmatpush1.bf16.msra.mxu0 %v2088
        %2113 = vmatprep.subr.bf16.mxu0 0
        %2114 = vmatpush1.bf16.msra.mxu0 0
        %2115 = vmatprep.subr.bf16.mxu0 0
        %2116 = vmatpush1.bf16.msra.mxu0 0
        %2117 = vmatprep.subr.bf16.mxu0 0
        %2118 = vmatpush1.bf16.msra.mxu0 0
        %2119 = vmatprep.subr.bf16.mxu0 0
        %2120 = vmatpush1.bf16.msra.mxu0 0
        %2121 = vmatprep.subr.bf16.mxu0 0
        %2122 = vmatpush1.bf16.msra.mxu0 0
        %2123 = vmatprep.subr.bf16.mxu0 0
        %2124 = vmatpush1.bf16.msra.mxu0 0
        %2125 = vmatprep.subr.bf16.mxu0 0
        %2126 = vmatpush1.bf16.msra.mxu0 0
        %2127 = vmatprep.subr.bf16.mxu0 0
        %2128 = vmatpush1.bf16.msra.mxu0 0
        %2129 = vmatprep.mubr.bf16.mxu0 0
        %2130 = vmatmul.mubr.bf16.gmra.mrb[0].mxu0 %v2025
        %v2131 = vpop.f32.mrb[0].mxu0
        %v2132 = vadd.f32 %v2047, %v2131
        %v2133 = vpop.f32.mrb[0].mxu0
        %v2134 = vpop.f32.mrb[0].mxu0
        %v2135 = vpop.f32.mrb[0].mxu0
        %2136 = vdwg.mxu0
        %v2137 = vadd.f32 %v1956, %v2132
        %v2138 = vld [vmem:[%s12] sm:$0x1]
        %v2139 = vld [vmem:[%s13] sm:$0x1]
        %v2140 = vsel %vm665, %v2137, 0.0
        %2141 = vadd.xlane.f32.xlu0 %v2140
        %v2142 = vpop.xlane.xlu0 %2141
        %v2143 = vmul.f32 %v2142, %v1932
        %v2144 = vsub.f32 %v2137, %v2143
        %v2145 = vmul.f32 %v2144, %v2144
        %v2146 = vsel %vm665, %v2145, 0.0
        %2147 = vadd.xlane.f32.xlu0 %v2146
        %v2148 = vpop.xlane.xlu0 %2147
        %v2149 = vmul.f32 %v2148, %v1932
        %v2150 = vadd.f32 %v2149, 1e-05
        %v2151 = vrsqrt.pop %v2150
        %v2152 = vmul.f32 %v2144, %v2151
        %v2154 = vlaneseq
        %v2155 = vshrl.u32 %v2154, 7
        %v2156 = vsub.s32 0, %v2155
        %v2157 = vrot.slane %v2138, %v2156
        %v2159 = vmul.f32 %v2152, %v2157
        %v2161 = vlaneseq
        %v2162 = vshrl.u32 %v2161, 7
        %v2163 = vsub.s32 0, %v2162
        %v2164 = vrot.slane %v2139, %v2163
        %v2166 = vadd.f32 %v2159, %v2164
        %v2167 = vpack.c.bf16 %v2166, %v2166
        %s2168 = scalar_lea.vmem %s2, 192
        %v2169 = vld [vmem:[%s2168] sm:$0xf]
        %v2170 = vld [vmem:[%s2168 + $0x4] sm:$0xf]
        %v2171 = vld [vmem:[%s2168 + $0x8] sm:$0xf]
        %v2172 = vld [vmem:[%s2168 + $0xc] sm:$0xf]
        %v2173 = vld [vmem:[%s2168 + $0x10] sm:$0xf]
        %v2174 = vld [vmem:[%s2168 + $0x14] sm:$0xf]
        %v2175 = vld [vmem:[%s2168 + $0x18] sm:$0xf]
        %v2176 = vld [vmem:[%s2168 + $0x1c] sm:$0xf]
        %v2177 = vld [vmem:[%s2168 + $0x20] sm:$0xf]
        %v2178 = vld [vmem:[%s2168 + $0x24] sm:$0xf]
        %v2179 = vld [vmem:[%s2168 + $0x28] sm:$0xf]
        %v2180 = vld [vmem:[%s2168 + $0x2c] sm:$0xf]
        %v2181 = vld [vmem:[%s2168 + $0x30] sm:$0xf]
        %v2182 = vld [vmem:[%s2168 + $0x34] sm:$0xf]
        %v2183 = vld [vmem:[%s2168 + $0x38] sm:$0xf]
        %v2184 = vld [vmem:[%s2168 + $0x3c] sm:$0xf]
        %v2185 = vld [vmem:[%s2168 + $0x40] sm:$0xf]
        %v2186 = vld [vmem:[%s2168 + $0x44] sm:$0xf]
        %v2187 = vld [vmem:[%s2168 + $0x48] sm:$0xf]
        %v2188 = vld [vmem:[%s2168 + $0x4c] sm:$0xf]
        %v2189 = vld [vmem:[%s2168 + $0x50] sm:$0xf]
        %v2190 = vld [vmem:[%s2168 + $0x54] sm:$0xf]
        %v2191 = vld [vmem:[%s2168 + $0x58] sm:$0xf]
        %v2192 = vld [vmem:[%s2168 + $0x5c] sm:$0xf]
        %v2193 = vld [vmem:[%s2168 + $0x60] sm:$0xf]
        %v2194 = vld [vmem:[%s2168 + $0x64] sm:$0xf]
        %v2195 = vld [vmem:[%s2168 + $0x68] sm:$0xf]
        %v2196 = vld [vmem:[%s2168 + $0x6c] sm:$0xf]
        %v2197 = vld [vmem:[%s2168 + $0x70] sm:$0xf]
        %v2198 = vld [vmem:[%s2168 + $0x74] sm:$0xf]
        %v2199 = vld [vmem:[%s2168 + $0x78] sm:$0xf]
        %v2200 = vld [vmem:[%s2168 + $0x7c] sm:$0xf]
        %v2201 = vld [vmem:[%s2168 + $0x80] sm:$0xf]
        %v2202 = vld [vmem:[%s2168 + $0x84] sm:$0xf]
        %v2203 = vld [vmem:[%s2168 + $0x88] sm:$0xf]
        %v2204 = vld [vmem:[%s2168 + $0x8c] sm:$0xf]
        %v2205 = vld [vmem:[%s2168 + $0x90] sm:$0xf]
        %v2206 = vld [vmem:[%s2168 + $0x94] sm:$0xf]
        %v2207 = vld [vmem:[%s2168 + $0x98] sm:$0xf]
        %v2208 = vld [vmem:[%s2168 + $0x9c] sm:$0xf]
        %v2209 = vld [vmem:[%s2168 + $0xa0] sm:$0xf]
        %v2210 = vld [vmem:[%s2168 + $0xa4] sm:$0xf]
        %v2211 = vld [vmem:[%s2168 + $0xa8] sm:$0xf]
        %v2212 = vld [vmem:[%s2168 + $0xac] sm:$0xf]
        %v2213 = vld [vmem:[%s2168 + $0xb0] sm:$0xf]
        %v2214 = vld [vmem:[%s2168 + $0xb4] sm:$0xf]
        %v2215 = vld [vmem:[%s2168 + $0xb8] sm:$0xf]
        %v2216 = vld [vmem:[%s2168 + $0xbc] sm:$0xf]
        %s2217 = scalar_lea.vmem %s3, 12
        %v2218 = vld [vmem:[%s2217] sm:$0x1]
        %v2219 = vld [vmem:[%s2217 + $0x1] sm:$0x1]
        %v2220 = vld [vmem:[%s2217 + $0x2] sm:$0x1]
        %v2221 = vld [vmem:[%s2217 + $0x3] sm:$0x1]
        %v2222 = vld [vmem:[%s2217 + $0x4] sm:$0x1]
        %v2223 = vld [vmem:[%s2217 + $0x5] sm:$0x1]
        %v2224 = vld [vmem:[%s2217 + $0x6] sm:$0x1]
        %v2225 = vld [vmem:[%s2217 + $0x7] sm:$0x1]
        %v2226 = vld [vmem:[%s2217 + $0x8] sm:$0x1]
        %v2227 = vld [vmem:[%s2217 + $0x9] sm:$0x1]
        %v2228 = vld [vmem:[%s2217 + $0xa] sm:$0x1]
        %v2229 = vld [vmem:[%s2217 + $0xb] sm:$0x1]
        %v2242 = vlaneseq
        %v2243 = vshrl.u32 %v2242, 7
        %v2244 = vsub.s32 0, %v2243
        %v2245 = vrot.slane %v2218, %v2244
        %v2246 = vlaneseq
        %v2247 = vshrl.u32 %v2246, 7
        %v2248 = vsub.s32 0, %v2247
        %v2249 = vrot.slane %v2219, %v2248
        %v2250 = vlaneseq
        %v2251 = vshrl.u32 %v2250, 7
        %v2252 = vsub.s32 0, %v2251
        %v2253 = vrot.slane %v2220, %v2252
        %v2254 = vlaneseq
        %v2255 = vshrl.u32 %v2254, 7
        %v2256 = vsub.s32 0, %v2255
        %v2257 = vrot.slane %v2221, %v2256
        %v2258 = vlaneseq
        %v2259 = vshrl.u32 %v2258, 7
        %v2260 = vsub.s32 0, %v2259
        %v2261 = vrot.slane %v2222, %v2260
        %v2262 = vlaneseq
        %v2263 = vshrl.u32 %v2262, 7
        %v2264 = vsub.s32 0, %v2263
        %v2265 = vrot.slane %v2223, %v2264
        %v2266 = vlaneseq
        %v2267 = vshrl.u32 %v2266, 7
        %v2268 = vsub.s32 0, %v2267
        %v2269 = vrot.slane %v2224, %v2268
        %v2270 = vlaneseq
        %v2271 = vshrl.u32 %v2270, 7
        %v2272 = vsub.s32 0, %v2271
        %v2273 = vrot.slane %v2225, %v2272
        %v2274 = vlaneseq
        %v2275 = vshrl.u32 %v2274, 7
        %v2276 = vsub.s32 0, %v2275
        %v2277 = vrot.slane %v2226, %v2276
        %v2278 = vlaneseq
        %v2279 = vshrl.u32 %v2278, 7
        %v2280 = vsub.s32 0, %v2279
        %v2281 = vrot.slane %v2227, %v2280
        %v2282 = vlaneseq
        %v2283 = vshrl.u32 %v2282, 7
        %v2284 = vsub.s32 0, %v2283
        %v2285 = vrot.slane %v2228, %v2284
        %v2286 = vlaneseq
        %v2287 = vshrl.u32 %v2286, 7
        %v2288 = vsub.s32 0, %v2287
        %v2289 = vrot.slane %v2229, %v2288
        %v2306 = vunpack.c.l.b16 %v2169
        %v2307 = vunpack.c.l.b16 %v2170
        %v2308 = vunpack.c.l.b16 %v2171
        %v2309 = vunpack.c.l.b16 %v2172
        %v2310 = vpack.c.b16 %v2307, %v2306
        %v2311 = vpack.c.b16 %v2309, %v2308
        %v2315 = vsel %vm665, %v2167, 0
        %2317 = vmatprep.subr.bf16.mxu0 0
        %2318 = vmatpush1.bf16.msra.mxu0 %v2310
        %2319 = vmatprep.subr.bf16.mxu0 0
        %2320 = vmatpush1.bf16.msra.mxu0 %v2311
        %2321 = vmatprep.subr.bf16.mxu0 0
        %2322 = vmatpush1.bf16.msra.mxu0 0
        %2323 = vmatprep.subr.bf16.mxu0 0
        %2324 = vmatpush1.bf16.msra.mxu0 0
        %2325 = vmatprep.subr.bf16.mxu0 0
        %2326 = vmatpush1.bf16.msra.mxu0 0
        %2327 = vmatprep.subr.bf16.mxu0 0
        %2328 = vmatpush1.bf16.msra.mxu0 0
        %2329 = vmatprep.subr.bf16.mxu0 0
        %2330 = vmatpush1.bf16.msra.mxu0 0
        %2331 = vmatprep.subr.bf16.mxu0 0
        %2332 = vmatpush1.bf16.msra.mxu0 0
        %2333 = vmatprep.subr.bf16.mxu0 0
        %2334 = vmatpush1.bf16.msra.mxu0 0
        %2335 = vmatprep.subr.bf16.mxu0 0
        %2336 = vmatpush1.bf16.msra.mxu0 0
        %2337 = vmatprep.subr.bf16.mxu0 0
        %2338 = vmatpush1.bf16.msra.mxu0 0
        %2339 = vmatprep.subr.bf16.mxu0 0
        %2340 = vmatpush1.bf16.msra.mxu0 0
        %2341 = vmatprep.subr.bf16.mxu0 0
        %2342 = vmatpush1.bf16.msra.mxu0 0
        %2343 = vmatprep.subr.bf16.mxu0 0
        %2344 = vmatpush1.bf16.msra.mxu0 0
        %2345 = vmatprep.subr.bf16.mxu0 0
        %2346 = vmatpush1.bf16.msra.mxu0 0
        %2347 = vmatprep.subr.bf16.mxu0 0
        %2348 = vmatpush1.bf16.msra.mxu0 0
        %2349 = vmatprep.mubr.bf16.mxu0 0
        %2350 = vmatmul.mubr.bf16.gmra.mrb[0].mxu0 %v2315
        %v2351 = vpop.f32.mrb[0].mxu0
        %v2352 = vadd.f32 %v2245, %v2351
        %v2353 = vpop.f32.mrb[0].mxu0
        %v2354 = vpop.f32.mrb[0].mxu0
        %v2355 = vpop.f32.mrb[0].mxu0
        %2356 = vdwg.mxu0
        %v2361 = vunpack.c.l.b16 %v2173
        %v2362 = vunpack.c.l.b16 %v2174
        %v2363 = vunpack.c.l.b16 %v2175
        %v2364 = vunpack.c.l.b16 %v2176
        %v2365 = vpack.c.b16 %v2362, %v2361
        %v2366 = vpack.c.b16 %v2364, %v2363
        %2369 = vmatprep.subr.bf16.mxu0 0
        %2370 = vmatpush1.bf16.msra.mxu0 %v2365
        %2371 = vmatprep.subr.bf16.mxu0 0
        %2372 = vmatpush1.bf16.msra.mxu0 %v2366
        %2373 = vmatprep.subr.bf16.mxu0 0
        %2374 = vmatpush1.bf16.msra.mxu0 0
        %2375 = vmatprep.subr.bf16.mxu0 0
        %2376 = vmatpush1.bf16.msra.mxu0 0
        %2377 = vmatprep.subr.bf16.mxu0 0
        %2378 = vmatpush1.bf16.msra.mxu0 0
        %2379 = vmatprep.subr.bf16.mxu0 0
        %2380 = vmatpush1.bf16.msra.mxu0 0
        %2381 = vmatprep.subr.bf16.mxu0 0
        %2382 = vmatpush1.bf16.msra.mxu0 0
        %2383 = vmatprep.subr.bf16.mxu0 0
        %2384 = vmatpush1.bf16.msra.mxu0 0
        %2385 = vmatprep.subr.bf16.mxu0 0
        %2386 = vmatpush1.bf16.msra.mxu0 0
        %2387 = vmatprep.subr.bf16.mxu0 0
        %2388 = vmatpush1.bf16.msra.mxu0 0
        %2389 = vmatprep.subr.bf16.mxu0 0
        %2390 = vmatpush1.bf16.msra.mxu0 0
        %2391 = vmatprep.subr.bf16.mxu0 0
        %2392 = vmatpush1.bf16.msra.mxu0 0
        %2393 = vmatprep.subr.bf16.mxu0 0
        %2394 = vmatpush1.bf16.msra.mxu0 0
        %2395 = vmatprep.subr.bf16.mxu0 0
        %2396 = vmatpush1.bf16.msra.mxu0 0
        %2397 = vmatprep.subr.bf16.mxu0 0
        %2398 = vmatpush1.bf16.msra.mxu0 0
        %2399 = vmatprep.subr.bf16.mxu0 0
        %2400 = vmatpush1.bf16.msra.mxu0 0
        %2401 = vmatprep.mubr.bf16.mxu0 0
        %2402 = vmatmul.mubr.bf16.gmra.mrb[0].mxu0 %v2315
        %v2403 = vpop.f32.mrb[0].mxu0
        %v2404 = vadd.f32 %v2249, %v2403
        %v2405 = vpop.f32.mrb[0].mxu0
        %v2406 = vpop.f32.mrb[0].mxu0
        %v2407 = vpop.f32.mrb[0].mxu0
        %2408 = vdwg.mxu0
        %v2413 = vunpack.c.l.b16 %v2177
        %v2414 = vunpack.c.l.b16 %v2178
        %v2415 = vunpack.c.l.b16 %v2179
        %v2416 = vunpack.c.l.b16 %v2180
        %v2417 = vpack.c.b16 %v2414, %v2413
        %v2418 = vpack.c.b16 %v2416, %v2415
        %2421 = vmatprep.subr.bf16.mxu0 0
        %2422 = vmatpush1.bf16.msra.mxu0 %v2417
        %2423 = vmatprep.subr.bf16.mxu0 0
        %2424 = vmatpush1.bf16.msra.mxu0 %v2418
        %2425 = vmatprep.subr.bf16.mxu0 0
        %2426 = vmatpush1.bf16.msra.mxu0 0
        %2427 = vmatprep.subr.bf16.mxu0 0
        %2428 = vmatpush1.bf16.msra.mxu0 0
        %2429 = vmatprep.subr.bf16.mxu0 0
        %2430 = vmatpush1.bf16.msra.mxu0 0
        %2431 = vmatprep.subr.bf16.mxu0 0
        %2432 = vmatpush1.bf16.msra.mxu0 0
        %2433 = vmatprep.subr.bf16.mxu0 0
        %2434 = vmatpush1.bf16.msra.mxu0 0
        %2435 = vmatprep.subr.bf16.mxu0 0
        %2436 = vmatpush1.bf16.msra.mxu0 0
        %2437 = vmatprep.subr.bf16.mxu0 0
        %2438 = vmatpush1.bf16.msra.mxu0 0
        %2439 = vmatprep.subr.bf16.mxu0 0
        %2440 = vmatpush1.bf16.msra.mxu0 0
        %2441 = vmatprep.subr.bf16.mxu0 0
        %2442 = vmatpush1.bf16.msra.mxu0 0
        %2443 = vmatprep.subr.bf16.mxu0 0
        %2444 = vmatpush1.bf16.msra.mxu0 0
        %2445 = vmatprep.subr.bf16.mxu0 0
        %2446 = vmatpush1.bf16.msra.mxu0 0
        %2447 = vmatprep.subr.bf16.mxu0 0
        %2448 = vmatpush1.bf16.msra.mxu0 0
        %2449 = vmatprep.subr.bf16.mxu0 0
        %2450 = vmatpush1.bf16.msra.mxu0 0
        %2451 = vmatprep.subr.bf16.mxu0 0
        %2452 = vmatpush1.bf16.msra.mxu0 0
        %2453 = vmatprep.mubr.bf16.mxu0 0
        %2454 = vmatmul.mubr.bf16.gmra.mrb[0].mxu0 %v2315
        %v2455 = vpop.f32.mrb[0].mxu0
        %v2456 = vadd.f32 %v2253, %v2455
        %v2457 = vpop.f32.mrb[0].mxu0
        %v2458 = vpop.f32.mrb[0].mxu0
        %v2459 = vpop.f32.mrb[0].mxu0
        %2460 = vdwg.mxu0
        %v2465 = vunpack.c.l.b16 %v2181
        %v2466 = vunpack.c.l.b16 %v2182
        %v2467 = vunpack.c.l.b16 %v2183
        %v2468 = vunpack.c.l.b16 %v2184
        %v2469 = vpack.c.b16 %v2466, %v2465
        %v2470 = vpack.c.b16 %v2468, %v2467
        %2473 = vmatprep.subr.bf16.mxu0 0
        %2474 = vmatpush1.bf16.msra.mxu0 %v2469
        %2475 = vmatprep.subr.bf16.mxu0 0
        %2476 = vmatpush1.bf16.msra.mxu0 %v2470
        %2477 = vmatprep.subr.bf16.mxu0 0
        %2478 = vmatpush1.bf16.msra.mxu0 0
        %2479 = vmatprep.subr.bf16.mxu0 0
        %2480 = vmatpush1.bf16.msra.mxu0 0
        %2481 = vmatprep.subr.bf16.mxu0 0
        %2482 = vmatpush1.bf16.msra.mxu0 0
        %2483 = vmatprep.subr.bf16.mxu0 0
        %2484 = vmatpush1.bf16.msra.mxu0 0
        %2485 = vmatprep.subr.bf16.mxu0 0
        %2486 = vmatpush1.bf16.msra.mxu0 0
        %2487 = vmatprep.subr.bf16.mxu0 0
        %2488 = vmatpush1.bf16.msra.mxu0 0
        %2489 = vmatprep.subr.bf16.mxu0 0
        %2490 = vmatpush1.bf16.msra.mxu0 0
        %2491 = vmatprep.subr.bf16.mxu0 0
        %2492 = vmatpush1.bf16.msra.mxu0 0
        %2493 = vmatprep.subr.bf16.mxu0 0
        %2494 = vmatpush1.bf16.msra.mxu0 0
        %2495 = vmatprep.subr.bf16.mxu0 0
        %2496 = vmatpush1.bf16.msra.mxu0 0
        %2497 = vmatprep.subr.bf16.mxu0 0
        %2498 = vmatpush1.bf16.msra.mxu0 0
        %2499 = vmatprep.subr.bf16.mxu0 0
        %2500 = vmatpush1.bf16.msra.mxu0 0
        %2501 = vmatprep.subr.bf16.mxu0 0
        %2502 = vmatpush1.bf16.msra.mxu0 0
        %2503 = vmatprep.subr.bf16.mxu0 0
        %2504 = vmatpush1.bf16.msra.mxu0 0
        %2505 = vmatprep.mubr.bf16.mxu0 0
        %2506 = vmatmul.mubr.bf16.gmra.mrb[0].mxu0 %v2315
        %v2507 = vpop.f32.mrb[0].mxu0
        %v2508 = vadd.f32 %v2257, %v2507
        %v2509 = vpop.f32.mrb[0].mxu0
        %v2510 = vpop.f32.mrb[0].mxu0
        %v2511 = vpop.f32.mrb[0].mxu0
        %2512 = vdwg.mxu0
        %v2517 = vunpack.c.l.b16 %v2185
        %v2518 = vunpack.c.l.b16 %v2186
        %v2519 = vunpack.c.l.b16 %v2187
        %v2520 = vunpack.c.l.b16 %v2188
        %v2521 = vpack.c.b16 %v2518, %v2517
        %v2522 = vpack.c.b16 %v2520, %v2519
        %2525 = vmatprep.subr.bf16.mxu0 0
        %2526 = vmatpush1.bf16.msra.mxu0 %v2521
        %2527 = vmatprep.subr.bf16.mxu0 0
        %2528 = vmatpush1.bf16.msra.mxu0 %v2522
        %2529 = vmatprep.subr.bf16.mxu0 0
        %2530 = vmatpush1.bf16.msra.mxu0 0
        %2531 = vmatprep.subr.bf16.mxu0 0
        %2532 = vmatpush1.bf16.msra.mxu0 0
        %2533 = vmatprep.subr.bf16.mxu0 0
        %2534 = vmatpush1.bf16.msra.mxu0 0
        %2535 = vmatprep.subr.bf16.mxu0 0
        %2536 = vmatpush1.bf16.msra.mxu0 0
        %2537 = vmatprep.subr.bf16.mxu0 0
        %2538 = vmatpush1.bf16.msra.mxu0 0
        %2539 = vmatprep.subr.bf16.mxu0 0
        %2540 = vmatpush1.bf16.msra.mxu0 0
        %2541 = vmatprep.subr.bf16.mxu0 0
        %2542 = vmatpush1.bf16.msra.mxu0 0
        %2543 = vmatprep.subr.bf16.mxu0 0
        %2544 = vmatpush1.bf16.msra.mxu0 0
        %2545 = vmatprep.subr.bf16.mxu0 0
        %2546 = vmatpush1.bf16.msra.mxu0 0
        %2547 = vmatprep.subr.bf16.mxu0 0
        %2548 = vmatpush1.bf16.msra.mxu0 0
        %2549 = vmatprep.subr.bf16.mxu0 0
        %2550 = vmatpush1.bf16.msra.mxu0 0
        %2551 = vmatprep.subr.bf16.mxu0 0
        %2552 = vmatpush1.bf16.msra.mxu0 0
        %2553 = vmatprep.subr.bf16.mxu0 0
        %2554 = vmatpush1.bf16.msra.mxu0 0
        %2555 = vmatprep.subr.bf16.mxu0 0
        %2556 = vmatpush1.bf16.msra.mxu0 0
        %2557 = vmatprep.mubr.bf16.mxu0 0
        %2558 = vmatmul.mubr.bf16.gmra.mrb[0].mxu0 %v2315
        %v2559 = vpop.f32.mrb[0].mxu0
        %v2560 = vadd.f32 %v2261, %v2559
        %v2561 = vpop.f32.mrb[0].mxu0
        %v2562 = vpop.f32.mrb[0].mxu0
        %v2563 = vpop.f32.mrb[0].mxu0
        %2564 = vdwg.mxu0
        %v2569 = vunpack.c.l.b16 %v2189
        %v2570 = vunpack.c.l.b16 %v2190
        %v2571 = vunpack.c.l.b16 %v2191
        %v2572 = vunpack.c.l.b16 %v2192
        %v2573 = vpack.c.b16 %v2570, %v2569
        %v2574 = vpack.c.b16 %v2572, %v2571
        %2577 = vmatprep.subr.bf16.mxu0 0
        %2578 = vmatpush1.bf16.msra.mxu0 %v2573
        %2579 = vmatprep.subr.bf16.mxu0 0
        %2580 = vmatpush1.bf16.msra.mxu0 %v2574
        %2581 = vmatprep.subr.bf16.mxu0 0
        %2582 = vmatpush1.bf16.msra.mxu0 0
        %2583 = vmatprep.subr.bf16.mxu0 0
        %2584 = vmatpush1.bf16.msra.mxu0 0
        %2585 = vmatprep.subr.bf16.mxu0 0
        %2586 = vmatpush1.bf16.msra.mxu0 0
        %2587 = vmatprep.subr.bf16.mxu0 0
        %2588 = vmatpush1.bf16.msra.mxu0 0
        %2589 = vmatprep.subr.bf16.mxu0 0
        %2590 = vmatpush1.bf16.msra.mxu0 0
        %2591 = vmatprep.subr.bf16.mxu0 0
        %2592 = vmatpush1.bf16.msra.mxu0 0
        %2593 = vmatprep.subr.bf16.mxu0 0
        %2594 = vmatpush1.bf16.msra.mxu0 0
        %2595 = vmatprep.subr.bf16.mxu0 0
        %2596 = vmatpush1.bf16.msra.mxu0 0
        %2597 = vmatprep.subr.bf16.mxu0 0
        %2598 = vmatpush1.bf16.msra.mxu0 0
        %2599 = vmatprep.subr.bf16.mxu0 0
        %2600 = vmatpush1.bf16.msra.mxu0 0
        %2601 = vmatprep.subr.bf16.mxu0 0
        %2602 = vmatpush1.bf16.msra.mxu0 0
        %2603 = vmatprep.subr.bf16.mxu0 0
        %2604 = vmatpush1.bf16.msra.mxu0 0
        %2605 = vmatprep.subr.bf16.mxu0 0
        %2606 = vmatpush1.bf16.msra.mxu0 0
        %2607 = vmatprep.subr.bf16.mxu0 0
        %2608 = vmatpush1.bf16.msra.mxu0 0
        %2609 = vmatprep.mubr.bf16.mxu0 0
        %2610 = vmatmul.mubr.bf16.gmra.mrb[0].mxu0 %v2315
        %v2611 = vpop.f32.mrb[0].mxu0
        %v2612 = vadd.f32 %v2265, %v2611
        %v2613 = vpop.f32.mrb[0].mxu0
        %v2614 = vpop.f32.mrb[0].mxu0
        %v2615 = vpop.f32.mrb[0].mxu0
        %2616 = vdwg.mxu0
        %v2621 = vunpack.c.l.b16 %v2193
        %v2622 = vunpack.c.l.b16 %v2194
        %v2623 = vunpack.c.l.b16 %v2195
        %v2624 = vunpack.c.l.b16 %v2196
        %v2625 = vpack.c.b16 %v2622, %v2621
        %v2626 = vpack.c.b16 %v2624, %v2623
        %2629 = vmatprep.subr.bf16.mxu0 0
        %2630 = vmatpush1.bf16.msra.mxu0 %v2625
        %2631 = vmatprep.subr.bf16.mxu0 0
        %2632 = vmatpush1.bf16.msra.mxu0 %v2626
        %2633 = vmatprep.subr.bf16.mxu0 0
        %2634 = vmatpush1.bf16.msra.mxu0 0
        %2635 = vmatprep.subr.bf16.mxu0 0
        %2636 = vmatpush1.bf16.msra.mxu0 0
        %2637 = vmatprep.subr.bf16.mxu0 0
        %2638 = vmatpush1.bf16.msra.mxu0 0
        %2639 = vmatprep.subr.bf16.mxu0 0
        %2640 = vmatpush1.bf16.msra.mxu0 0
        %2641 = vmatprep.subr.bf16.mxu0 0
        %2642 = vmatpush1.bf16.msra.mxu0 0
        %2643 = vmatprep.subr.bf16.mxu0 0
        %2644 = vmatpush1.bf16.msra.mxu0 0
        %2645 = vmatprep.subr.bf16.mxu0 0
        %2646 = vmatpush1.bf16.msra.mxu0 0
        %2647 = vmatprep.subr.bf16.mxu0 0
        %2648 = vmatpush1.bf16.msra.mxu0 0
        %2649 = vmatprep.subr.bf16.mxu0 0
        %2650 = vmatpush1.bf16.msra.mxu0 0
        %2651 = vmatprep.subr.bf16.mxu0 0
        %2652 = vmatpush1.bf16.msra.mxu0 0
        %2653 = vmatprep.subr.bf16.mxu0 0
        %2654 = vmatpush1.bf16.msra.mxu0 0
        %2655 = vmatprep.subr.bf16.mxu0 0
        %2656 = vmatpush1.bf16.msra.mxu0 0
        %2657 = vmatprep.subr.bf16.mxu0 0
        %2658 = vmatpush1.bf16.msra.mxu0 0
        %2659 = vmatprep.subr.bf16.mxu0 0
        %2660 = vmatpush1.bf16.msra.mxu0 0
        %2661 = vmatprep.mubr.bf16.mxu0 0
        %2662 = vmatmul.mubr.bf16.gmra.mrb[0].mxu0 %v2315
        %v2663 = vpop.f32.mrb[0].mxu0
        %v2664 = vadd.f32 %v2269, %v2663
        %v2665 = vpop.f32.mrb[0].mxu0
        %v2666 = vpop.f32.mrb[0].mxu0
        %v2667 = vpop.f32.mrb[0].mxu0
        %2668 = vdwg.mxu0
        %v2673 = vunpack.c.l.b16 %v2197
        %v2674 = vunpack.c.l.b16 %v2198
        %v2675 = vunpack.c.l.b16 %v2199
        %v2676 = vunpack.c.l.b16 %v2200
        %v2677 = vpack.c.b16 %v2674, %v2673
        %v2678 = vpack.c.b16 %v2676, %v2675
        %2681 = vmatprep.subr.bf16.mxu0 0
        %2682 = vmatpush1.bf16.msra.mxu0 %v2677
        %2683 = vmatprep.subr.bf16.mxu0 0
        %2684 = vmatpush1.bf16.msra.mxu0 %v2678
        %2685 = vmatprep.subr.bf16.mxu0 0
        %2686 = vmatpush1.bf16.msra.mxu0 0
        %2687 = vmatprep.subr.bf16.mxu0 0
        %2688 = vmatpush1.bf16.msra.mxu0 0
        %2689 = vmatprep.subr.bf16.mxu0 0
        %2690 = vmatpush1.bf16.msra.mxu0 0
        %2691 = vmatprep.subr.bf16.mxu0 0
        %2692 = vmatpush1.bf16.msra.mxu0 0
        %2693 = vmatprep.subr.bf16.mxu0 0
        %2694 = vmatpush1.bf16.msra.mxu0 0
        %2695 = vmatprep.subr.bf16.mxu0 0
        %2696 = vmatpush1.bf16.msra.mxu0 0
        %2697 = vmatprep.subr.bf16.mxu0 0
        %2698 = vmatpush1.bf16.msra.mxu0 0
        %2699 = vmatprep.subr.bf16.mxu0 0
        %2700 = vmatpush1.bf16.msra.mxu0 0
        %2701 = vmatprep.subr.bf16.mxu0 0
        %2702 = vmatpush1.bf16.msra.mxu0 0
        %2703 = vmatprep.subr.bf16.mxu0 0
        %2704 = vmatpush1.bf16.msra.mxu0 0
        %2705 = vmatprep.subr.bf16.mxu0 0
        %2706 = vmatpush1.bf16.msra.mxu0 0
        %2707 = vmatprep.subr.bf16.mxu0 0
        %2708 = vmatpush1.bf16.msra.mxu0 0
        %2709 = vmatprep.subr.bf16.mxu0 0
        %2710 = vmatpush1.bf16.msra.mxu0 0
        %2711 = vmatprep.subr.bf16.mxu0 0
        %2712 = vmatpush1.bf16.msra.mxu0 0
        %2713 = vmatprep.mubr.bf16.mxu0 0
        %2714 = vmatmul.mubr.bf16.gmra.mrb[0].mxu0 %v2315
        %v2715 = vpop.f32.mrb[0].mxu0
        %v2716 = vadd.f32 %v2273, %v2715
        %v2717 = vpop.f32.mrb[0].mxu0
        %v2718 = vpop.f32.mrb[0].mxu0
        %v2719 = vpop.f32.mrb[0].mxu0
        %2720 = vdwg.mxu0
        %v2725 = vunpack.c.l.b16 %v2201
        %v2726 = vunpack.c.l.b16 %v2202
        %v2727 = vunpack.c.l.b16 %v2203
        %v2728 = vunpack.c.l.b16 %v2204
        %v2729 = vpack.c.b16 %v2726, %v2725
        %v2730 = vpack.c.b16 %v2728, %v2727
        %2733 = vmatprep.subr.bf16.mxu0 0
        %2734 = vmatpush1.bf16.msra.mxu0 %v2729
        %2735 = vmatprep.subr.bf16.mxu0 0
        %2736 = vmatpush1.bf16.msra.mxu0 %v2730
        %2737 = vmatprep.subr.bf16.mxu0 0
        %2738 = vmatpush1.bf16.msra.mxu0 0
        %2739 = vmatprep.subr.bf16.mxu0 0
        %2740 = vmatpush1.bf16.msra.mxu0 0
        %2741 = vmatprep.subr.bf16.mxu0 0
        %2742 = vmatpush1.bf16.msra.mxu0 0
        %2743 = vmatprep.subr.bf16.mxu0 0
        %2744 = vmatpush1.bf16.msra.mxu0 0
        %2745 = vmatprep.subr.bf16.mxu0 0
        %2746 = vmatpush1.bf16.msra.mxu0 0
        %2747 = vmatprep.subr.bf16.mxu0 0
        %2748 = vmatpush1.bf16.msra.mxu0 0
        %2749 = vmatprep.subr.bf16.mxu0 0
        %2750 = vmatpush1.bf16.msra.mxu0 0
        %2751 = vmatprep.subr.bf16.mxu0 0
        %2752 = vmatpush1.bf16.msra.mxu0 0
        %2753 = vmatprep.subr.bf16.mxu0 0
        %2754 = vmatpush1.bf16.msra.mxu0 0
        %2755 = vmatprep.subr.bf16.mxu0 0
        %2756 = vmatpush1.bf16.msra.mxu0 0
        %2757 = vmatprep.subr.bf16.mxu0 0
        %2758 = vmatpush1.bf16.msra.mxu0 0
        %2759 = vmatprep.subr.bf16.mxu0 0
        %2760 = vmatpush1.bf16.msra.mxu0 0
        %2761 = vmatprep.subr.bf16.mxu0 0
        %2762 = vmatpush1.bf16.msra.mxu0 0
        %2763 = vmatprep.subr.bf16.mxu0 0
        %2764 = vmatpush1.bf16.msra.mxu0 0
        %2765 = vmatprep.mubr.bf16.mxu0 0
        %2766 = vmatmul.mubr.bf16.gmra.mrb[0].mxu0 %v2315
        %v2767 = vpop.f32.mrb[0].mxu0
        %v2768 = vadd.f32 %v2277, %v2767
        %v2769 = vpop.f32.mrb[0].mxu0
        %v2770 = vpop.f32.mrb[0].mxu0
        %v2771 = vpop.f32.mrb[0].mxu0
        %2772 = vdwg.mxu0
        %v2777 = vunpack.c.l.b16 %v2205
        %v2778 = vunpack.c.l.b16 %v2206
        %v2779 = vunpack.c.l.b16 %v2207
        %v2780 = vunpack.c.l.b16 %v2208
        %v2781 = vpack.c.b16 %v2778, %v2777
        %v2782 = vpack.c.b16 %v2780, %v2779
        %2785 = vmatprep.subr.bf16.mxu0 0
        %2786 = vmatpush1.bf16.msra.mxu0 %v2781
        %2787 = vmatprep.subr.bf16.mxu0 0
        %2788 = vmatpush1.bf16.msra.mxu0 %v2782
        %2789 = vmatprep.subr.bf16.mxu0 0
        %2790 = vmatpush1.bf16.msra.mxu0 0
        %2791 = vmatprep.subr.bf16.mxu0 0
        %2792 = vmatpush1.bf16.msra.mxu0 0
        %2793 = vmatprep.subr.bf16.mxu0 0
        %2794 = vmatpush1.bf16.msra.mxu0 0
        %2795 = vmatprep.subr.bf16.mxu0 0
        %2796 = vmatpush1.bf16.msra.mxu0 0
        %2797 = vmatprep.subr.bf16.mxu0 0
        %2798 = vmatpush1.bf16.msra.mxu0 0
        %2799 = vmatprep.subr.bf16.mxu0 0
        %2800 = vmatpush1.bf16.msra.mxu0 0
        %2801 = vmatprep.subr.bf16.mxu0 0
        %2802 = vmatpush1.bf16.msra.mxu0 0
        %2803 = vmatprep.subr.bf16.mxu0 0
        %2804 = vmatpush1.bf16.msra.mxu0 0
        %2805 = vmatprep.subr.bf16.mxu0 0
        %2806 = vmatpush1.bf16.msra.mxu0 0
        %2807 = vmatprep.subr.bf16.mxu0 0
        %2808 = vmatpush1.bf16.msra.mxu0 0
        %2809 = vmatprep.subr.bf16.mxu0 0
        %2810 = vmatpush1.bf16.msra.mxu0 0
        %2811 = vmatprep.subr.bf16.mxu0 0
        %2812 = vmatpush1.bf16.msra.mxu0 0
        %2813 = vmatprep.subr.bf16.mxu0 0
        %2814 = vmatpush1.bf16.msra.mxu0 0
        %2815 = vmatprep.subr.bf16.mxu0 0
        %2816 = vmatpush1.bf16.msra.mxu0 0
        %2817 = vmatprep.mubr.bf16.mxu0 0
        %2818 = vmatmul.mubr.bf16.gmra.mrb[0].mxu0 %v2315
        %v2819 = vpop.f32.mrb[0].mxu0
        %v2820 = vadd.f32 %v2281, %v2819
        %v2821 = vpop.f32.mrb[0].mxu0
        %v2822 = vpop.f32.mrb[0].mxu0
        %v2823 = vpop.f32.mrb[0].mxu0
        %2824 = vdwg.mxu0
        %v2829 = vunpack.c.l.b16 %v2209
        %v2830 = vunpack.c.l.b16 %v2210
        %v2831 = vunpack.c.l.b16 %v2211
        %v2832 = vunpack.c.l.b16 %v2212
        %v2833 = vpack.c.b16 %v2830, %v2829
        %v2834 = vpack.c.b16 %v2832, %v2831
        %2837 = vmatprep.subr.bf16.mxu0 0
        %2838 = vmatpush1.bf16.msra.mxu0 %v2833
        %2839 = vmatprep.subr.bf16.mxu0 0
        %2840 = vmatpush1.bf16.msra.mxu0 %v2834
        %2841 = vmatprep.subr.bf16.mxu0 0
        %2842 = vmatpush1.bf16.msra.mxu0 0
        %2843 = vmatprep.subr.bf16.mxu0 0
        %2844 = vmatpush1.bf16.msra.mxu0 0
        %2845 = vmatprep.subr.bf16.mxu0 0
        %2846 = vmatpush1.bf16.msra.mxu0 0
        %2847 = vmatprep.subr.bf16.mxu0 0
        %2848 = vmatpush1.bf16.msra.mxu0 0
        %2849 = vmatprep.subr.bf16.mxu0 0
        %2850 = vmatpush1.bf16.msra.mxu0 0
        %2851 = vmatprep.subr.bf16.mxu0 0
        %2852 = vmatpush1.bf16.msra.mxu0 0
        %2853 = vmatprep.subr.bf16.mxu0 0
        %2854 = vmatpush1.bf16.msra.mxu0 0
        %2855 = vmatprep.subr.bf16.mxu0 0
        %2856 = vmatpush1.bf16.msra.mxu0 0
        %2857 = vmatprep.subr.bf16.mxu0 0
        %2858 = vmatpush1.bf16.msra.mxu0 0
        %2859 = vmatprep.subr.bf16.mxu0 0
        %2860 = vmatpush1.bf16.msra.mxu0 0
        %2861 = vmatprep.subr.bf16.mxu0 0
        %2862 = vmatpush1.bf16.msra.mxu0 0
        %2863 = vmatprep.subr.bf16.mxu0 0
        %2864 = vmatpush1.bf16.msra.mxu0 0
        %2865 = vmatprep.subr.bf16.mxu0 0
        %2866 = vmatpush1.bf16.msra.mxu0 0
        %2867 = vmatprep.subr.bf16.mxu0 0
        %2868 = vmatpush1.bf16.msra.mxu0 0
        %2869 = vmatprep.mubr.bf16.mxu0 0
        %2870 = vmatmul.mubr.bf16.gmra.mrb[0].mxu0 %v2315
        %v2871 = vpop.f32.mrb[0].mxu0
        %v2872 = vadd.f32 %v2285, %v2871
        %v2873 = vpop.f32.mrb[0].mxu0
        %v2874 = vpop.f32.mrb[0].mxu0
        %v2875 = vpop.f32.mrb[0].mxu0
        %2876 = vdwg.mxu0
        %v2881 = vunpack.c.l.b16 %v2213
        %v2882 = vunpack.c.l.b16 %v2214
        %v2883 = vunpack.c.l.b16 %v2215
        %v2884 = vunpack.c.l.b16 %v2216
        %v2885 = vpack.c.b16 %v2882, %v2881
        %v2886 = vpack.c.b16 %v2884, %v2883
        %2889 = vmatprep.subr.bf16.mxu0 0
        %2890 = vmatpush1.bf16.msra.mxu0 %v2885
        %2891 = vmatprep.subr.bf16.mxu0 0
        %2892 = vmatpush1.bf16.msra.mxu0 %v2886
        %2893 = vmatprep.subr.bf16.mxu0 0
        %2894 = vmatpush1.bf16.msra.mxu0 0
        %2895 = vmatprep.subr.bf16.mxu0 0
        %2896 = vmatpush1.bf16.msra.mxu0 0
        %2897 = vmatprep.subr.bf16.mxu0 0
        %2898 = vmatpush1.bf16.msra.mxu0 0
        %2899 = vmatprep.subr.bf16.mxu0 0
        %2900 = vmatpush1.bf16.msra.mxu0 0
        %2901 = vmatprep.subr.bf16.mxu0 0
        %2902 = vmatpush1.bf16.msra.mxu0 0
        %2903 = vmatprep.subr.bf16.mxu0 0
        %2904 = vmatpush1.bf16.msra.mxu0 0
        %2905 = vmatprep.subr.bf16.mxu0 0
        %2906 = vmatpush1.bf16.msra.mxu0 0
        %2907 = vmatprep.subr.bf16.mxu0 0
        %2908 = vmatpush1.bf16.msra.mxu0 0
        %2909 = vmatprep.subr.bf16.mxu0 0
        %2910 = vmatpush1.bf16.msra.mxu0 0
        %2911 = vmatprep.subr.bf16.mxu0 0
        %2912 = vmatpush1.bf16.msra.mxu0 0
        %2913 = vmatprep.subr.bf16.mxu0 0
        %2914 = vmatpush1.bf16.msra.mxu0 0
        %2915 = vmatprep.subr.bf16.mxu0 0
        %2916 = vmatpush1.bf16.msra.mxu0 0
        %2917 = vmatprep.subr.bf16.mxu0 0
        %2918 = vmatpush1.bf16.msra.mxu0 0
        %2919 = vmatprep.subr.bf16.mxu0 0
        %2920 = vmatpush1.bf16.msra.mxu0 0
        %2921 = vmatprep.mubr.bf16.mxu0 0
        %2922 = vmatmul.mubr.bf16.gmra.mrb[0].mxu0 %v2315
        %v2923 = vpop.f32.mrb[0].mxu0
        %v2924 = vadd.f32 %v2289, %v2923
        %v2925 = vpop.f32.mrb[0].mxu0
        %v2926 = vpop.f32.mrb[0].mxu0
        %v2927 = vpop.f32.mrb[0].mxu0
        %2928 = vdwg.mxu0
        %v2929 = vpack.c.bf16 %v2352, %v2352
        %v2930 = vpack.c.bf16 %v2404, %v2404
        %v2931 = vpack.c.bf16 %v2456, %v2456
        %v2932 = vpack.c.bf16 %v2508, %v2508
        %v2933 = vpack.c.bf16 %v2560, %v2560
        %v2934 = vpack.c.bf16 %v2612, %v2612
        %v2935 = vpack.c.bf16 %v2664, %v2664
        %v2936 = vpack.c.bf16 %v2716, %v2716
        %v2937 = vpack.c.bf16 %v2768, %v2768
        %v2938 = vpack.c.bf16 %v2820, %v2820
        %v2939 = vpack.c.bf16 %v2872, %v2872
        %v2940 = vpack.c.bf16 %v2924, %v2924
        %v2942 = vsel %vm1293, %v2929, 0
        %v2945 = vsel %vm1293, %v2933, 0
        %2947 = vmatprep.subr.bf16.mxu0 0
        %2948 = vmatpush1.bf16.xpose.msra.mxu0 %v2945
        %2949 = vmatprep.subr.bf16.mxu0 0
        %2950 = vmatpush1.bf16.xpose.msra.mxu0 0
        %2951 = vmatprep.subr.bf16.mxu0 0
        %2952 = vmatpush1.bf16.xpose.msra.mxu0 0
        %2953 = vmatprep.subr.bf16.mxu0 0
        %2954 = vmatpush1.bf16.xpose.msra.mxu0 0
        %2955 = vmatprep.subr.bf16.mxu0 0
        %2956 = vmatpush1.bf16.xpose.msra.mxu0 0
        %2957 = vmatprep.subr.bf16.mxu0 0
        %2958 = vmatpush1.bf16.xpose.msra.mxu0 0
        %2959 = vmatprep.subr.bf16.mxu0 0
        %2960 = vmatpush1.bf16.xpose.msra.mxu0 0
        %2961 = vmatprep.subr.bf16.mxu0 0
        %2962 = vmatpush1.bf16.xpose.msra.mxu0 0
        %2963 = vmatprep.subr.bf16.mxu0 0
        %2964 = vmatpush1.bf16.xpose.msra.mxu0 0
        %2965 = vmatprep.subr.bf16.mxu0 0
        %2966 = vmatpush1.bf16.xpose.msra.mxu0 0
        %2967 = vmatprep.subr.bf16.mxu0 0
        %2968 = vmatpush1.bf16.xpose.msra.mxu0 0
        %2969 = vmatprep.subr.bf16.mxu0 0
        %2970 = vmatpush1.bf16.xpose.msra.mxu0 0
        %2971 = vmatprep.subr.bf16.mxu0 0
        %2972 = vmatpush1.bf16.xpose.msra.mxu0 0
        %2973 = vmatprep.subr.bf16.mxu0 0
        %2974 = vmatpush1.bf16.xpose.msra.mxu0 0
        %2975 = vmatprep.subr.bf16.mxu0 0
        %2976 = vmatpush1.bf16.xpose.msra.mxu0 0
        %2977 = vmatprep.subr.bf16.mxu0 0
        %2978 = vmatpush1.bf16.xpose.msra.mxu0 0
        %2979 = vmatprep.mubr.bf16.mxu0 0
        %2980 = vmatmul.mubr.bf16.gmra.mrb[0].mxu0 %v2942
        %v2981 = vpop.f32.mrb[0].mxu0
        %v2982 = vadd.f32 0.0, %v2981
        %v2983 = vpop.f32.mrb[0].mxu0
        %v2984 = vpop.f32.mrb[0].mxu0
        %v2985 = vpop.f32.mrb[0].mxu0
        %2986 = vdwg.mxu0
        %v2988 = vsel %vm1293, %v2930, 0
        %v2991 = vsel %vm1293, %v2934, 0
        %2993 = vmatprep.subr.bf16.mxu0 0
        %2994 = vmatpush1.bf16.xpose.msra.mxu0 %v2991
        %2995 = vmatprep.subr.bf16.mxu0 0
        %2996 = vmatpush1.bf16.xpose.msra.mxu0 0
        %2997 = vmatprep.subr.bf16.mxu0 0
        %2998 = vmatpush1.bf16.xpose.msra.mxu0 0
        %2999 = vmatprep.subr.bf16.mxu0 0
        %3000 = vmatpush1.bf16.xpose.msra.mxu0 0
        %3001 = vmatprep.subr.bf16.mxu0 0
        %3002 = vmatpush1.bf16.xpose.msra.mxu0 0
        %3003 = vmatprep.subr.bf16.mxu0 0
        %3004 = vmatpush1.bf16.xpose.msra.mxu0 0
        %3005 = vmatprep.subr.bf16.mxu0 0
        %3006 = vmatpush1.bf16.xpose.msra.mxu0 0
        %3007 = vmatprep.subr.bf16.mxu0 0
        %3008 = vmatpush1.bf16.xpose.msra.mxu0 0
        %3009 = vmatprep.subr.bf16.mxu0 0
        %3010 = vmatpush1.bf16.xpose.msra.mxu0 0
        %3011 = vmatprep.subr.bf16.mxu0 0
        %3012 = vmatpush1.bf16.xpose.msra.mxu0 0
        %3013 = vmatprep.subr.bf16.mxu0 0
        %3014 = vmatpush1.bf16.xpose.msra.mxu0 0
        %3015 = vmatprep.subr.bf16.mxu0 0
        %3016 = vmatpush1.bf16.xpose.msra.mxu0 0
        %3017 = vmatprep.subr.bf16.mxu0 0
        %3018 = vmatpush1.bf16.xpose.msra.mxu0 0
        %3019 = vmatprep.subr.bf16.mxu0 0
        %3020 = vmatpush1.bf16.xpose.msra.mxu0 0
        %3021 = vmatprep.subr.bf16.mxu0 0
        %3022 = vmatpush1.bf16.xpose.msra.mxu0 0
        %3023 = vmatprep.subr.bf16.mxu0 0
        %3024 = vmatpush1.bf16.xpose.msra.mxu0 0
        %3025 = vmatprep.mubr.bf16.mxu0 0
        %3026 = vmatmul.mubr.bf16.gmra.mrb[0].mxu0 %v2988
        %v3027 = vpop.f32.mrb[0].mxu0
        %v3028 = vadd.f32 0.0, %v3027
        %v3029 = vpop.f32.mrb[0].mxu0
        %v3030 = vpop.f32.mrb[0].mxu0
        %v3031 = vpop.f32.mrb[0].mxu0
        %3032 = vdwg.mxu0
        %v3034 = vsel %vm1293, %v2931, 0
        %v3037 = vsel %vm1293, %v2935, 0
        %3039 = vmatprep.subr.bf16.mxu0 0
        %3040 = vmatpush1.bf16.xpose.msra.mxu0 %v3037
        %3041 = vmatprep.subr.bf16.mxu0 0
        %3042 = vmatpush1.bf16.xpose.msra.mxu0 0
        %3043 = vmatprep.subr.bf16.mxu0 0
        %3044 = vmatpush1.bf16.xpose.msra.mxu0 0
        %3045 = vmatprep.subr.bf16.mxu0 0
        %3046 = vmatpush1.bf16.xpose.msra.mxu0 0
        %3047 = vmatprep.subr.bf16.mxu0 0
        %3048 = vmatpush1.bf16.xpose.msra.mxu0 0
        %3049 = vmatprep.subr.bf16.mxu0 0
        %3050 = vmatpush1.bf16.xpose.msra.mxu0 0
        %3051 = vmatprep.subr.bf16.mxu0 0
        %3052 = vmatpush1.bf16.xpose.msra.mxu0 0
        %3053 = vmatprep.subr.bf16.mxu0 0
        %3054 = vmatpush1.bf16.xpose.msra.mxu0 0
        %3055 = vmatprep.subr.bf16.mxu0 0
        %3056 = vmatpush1.bf16.xpose.msra.mxu0 0
        %3057 = vmatprep.subr.bf16.mxu0 0
        %3058 = vmatpush1.bf16.xpose.msra.mxu0 0
        %3059 = vmatprep.subr.bf16.mxu0 0
        %3060 = vmatpush1.bf16.xpose.msra.mxu0 0
        %3061 = vmatprep.subr.bf16.mxu0 0
        %3062 = vmatpush1.bf16.xpose.msra.mxu0 0
        %3063 = vmatprep.subr.bf16.mxu0 0
        %3064 = vmatpush1.bf16.xpose.msra.mxu0 0
        %3065 = vmatprep.subr.bf16.mxu0 0
        %3066 = vmatpush1.bf16.xpose.msra.mxu0 0
        %3067 = vmatprep.subr.bf16.mxu0 0
        %3068 = vmatpush1.bf16.xpose.msra.mxu0 0
        %3069 = vmatprep.subr.bf16.mxu0 0
        %3070 = vmatpush1.bf16.xpose.msra.mxu0 0
        %3071 = vmatprep.mubr.bf16.mxu0 0
        %3072 = vmatmul.mubr.bf16.gmra.mrb[0].mxu0 %v3034
        %v3073 = vpop.f32.mrb[0].mxu0
        %v3074 = vadd.f32 0.0, %v3073
        %v3075 = vpop.f32.mrb[0].mxu0
        %v3076 = vpop.f32.mrb[0].mxu0
        %v3077 = vpop.f32.mrb[0].mxu0
        %3078 = vdwg.mxu0
        %v3080 = vsel %vm1293, %v2932, 0
        %v3083 = vsel %vm1293, %v2936, 0
        %3085 = vmatprep.subr.bf16.mxu0 0
        %3086 = vmatpush1.bf16.xpose.msra.mxu0 %v3083
        %3087 = vmatprep.subr.bf16.mxu0 0
        %3088 = vmatpush1.bf16.xpose.msra.mxu0 0
        %3089 = vmatprep.subr.bf16.mxu0 0
        %3090 = vmatpush1.bf16.xpose.msra.mxu0 0
        %3091 = vmatprep.subr.bf16.mxu0 0
        %3092 = vmatpush1.bf16.xpose.msra.mxu0 0
        %3093 = vmatprep.subr.bf16.mxu0 0
        %3094 = vmatpush1.bf16.xpose.msra.mxu0 0
        %3095 = vmatprep.subr.bf16.mxu0 0
        %3096 = vmatpush1.bf16.xpose.msra.mxu0 0
        %3097 = vmatprep.subr.bf16.mxu0 0
        %3098 = vmatpush1.bf16.xpose.msra.mxu0 0
        %3099 = vmatprep.subr.bf16.mxu0 0
        %3100 = vmatpush1.bf16.xpose.msra.mxu0 0
        %3101 = vmatprep.subr.bf16.mxu0 0
        %3102 = vmatpush1.bf16.xpose.msra.mxu0 0
        %3103 = vmatprep.subr.bf16.mxu0 0
        %3104 = vmatpush1.bf16.xpose.msra.mxu0 0
        %3105 = vmatprep.subr.bf16.mxu0 0
        %3106 = vmatpush1.bf16.xpose.msra.mxu0 0
        %3107 = vmatprep.subr.bf16.mxu0 0
        %3108 = vmatpush1.bf16.xpose.msra.mxu0 0
        %3109 = vmatprep.subr.bf16.mxu0 0
        %3110 = vmatpush1.bf16.xpose.msra.mxu0 0
        %3111 = vmatprep.subr.bf16.mxu0 0
        %3112 = vmatpush1.bf16.xpose.msra.mxu0 0
        %3113 = vmatprep.subr.bf16.mxu0 0
        %3114 = vmatpush1.bf16.xpose.msra.mxu0 0
        %3115 = vmatprep.subr.bf16.mxu0 0
        %3116 = vmatpush1.bf16.xpose.msra.mxu0 0
        %3117 = vmatprep.mubr.bf16.mxu0 0
        %3118 = vmatmul.mubr.bf16.gmra.mrb[0].mxu0 %v3080
        %v3119 = vpop.f32.mrb[0].mxu0
        %v3120 = vadd.f32 0.0, %v3119
        %v3121 = vpop.f32.mrb[0].mxu0
        %v3122 = vpop.f32.mrb[0].mxu0
        %v3123 = vpop.f32.mrb[0].mxu0
        %3124 = vdwg.mxu0
        %v3125 = vmul.f32 %v2982, 0.35355338
        %v3126 = vmul.f32 %v3028, 0.35355338
        %v3127 = vmul.f32 %v3074, 0.35355338
        %v3128 = vmul.f32 %v3120, 0.35355338
        %v3129 = vadd.f32 %v3125, %v519
        %v3130 = vadd.f32 %v3126, %v519
        %v3131 = vadd.f32 %v3127, %v519
        %v3132 = vadd.f32 %v3128, %v519
        %v3133 = vsel %vm1293, %v3129, -inf
        %3134 = vmax.xlane.f32.xlu0 %v3133
        %v3135 = vpop.xlane.xlu0 %3134
        %v3136 = vsel %vm1293, %v3130, -inf
        %3137 = vmax.xlane.f32.xlu0 %v3136
        %v3138 = vpop.xlane.xlu0 %3137
        %v3139 = vsel %vm1293, %v3131, -inf
        %3140 = vmax.xlane.f32.xlu0 %v3139
        %v3141 = vpop.xlane.xlu0 %3140
        %v3142 = vsel %vm1293, %v3132, -inf
        %3143 = vmax.xlane.f32.xlu0 %v3142
        %v3144 = vpop.xlane.xlu0 %3143
        %v3145 = vsub.f32 %v3129, %v3135
        %v3146 = vsub.f32 %v3130, %v3138
        %v3147 = vsub.f32 %v3131, %v3141
        %v3148 = vsub.f32 %v3132, %v3144
        %v3149 = vmul.f32 %v3145, 1.442695
        %v3150 = vpow.pop %v3149
        %v3151 = vmul.f32 %v3146, 1.442695
        %v3152 = vpow.pop %v3151
        %v3153 = vmul.f32 %v3147, 1.442695
        %v3154 = vpow.pop %v3153
        %v3155 = vmul.f32 %v3148, 1.442695
        %v3156 = vpow.pop %v3155
        %v3157 = vsel %vm1293, %v3150, 0.0
        %3158 = vadd.xlane.f32.xlu0 %v3157
        %v3159 = vpop.xlane.xlu0 %3158
        %v3160 = vsel %vm1293, %v3152, 0.0
        %3161 = vadd.xlane.f32.xlu0 %v3160
        %v3162 = vpop.xlane.xlu0 %3161
        %v3163 = vsel %vm1293, %v3154, 0.0
        %3164 = vadd.xlane.f32.xlu0 %v3163
        %v3165 = vpop.xlane.xlu0 %3164
        %v3166 = vsel %vm1293, %v3156, 0.0
        %3167 = vadd.xlane.f32.xlu0 %v3166
        %v3168 = vpop.xlane.xlu0 %3167
        %v3169 = vrcp.pop %v3159
        %v3170 = vrcp.pop %v3162
        %v3171 = vrcp.pop %v3165
        %v3172 = vrcp.pop %v3168
        %v3173 = vmul.f32 %v3150, %v3169
        %v3174 = vmul.f32 %v3152, %v3170
        %v3175 = vmul.f32 %v3154, %v3171
        %v3176 = vmul.f32 %v3156, %v3172
        %v3177 = vpack.c.bf16 %v3173, %v3173
        %v3178 = vpack.c.bf16 %v3174, %v3174
        %v3179 = vpack.c.bf16 %v3175, %v3175
        %v3180 = vpack.c.bf16 %v3176, %v3176
        %v3182 = vsel %vm1293, %v3177, 0
        %v3185 = vsel %vm1537, %v2937, 0
        %3187 = vmatprep.subr.bf16.mxu0 0
        %3188 = vmatpush1.bf16.msra.mxu0 %v3185
        %3189 = vmatprep.subr.bf16.mxu0 0
        %3190 = vmatpush1.bf16.msra.mxu0 0
        %3191 = vmatprep.subr.bf16.mxu0 0
        %3192 = vmatpush1.bf16.msra.mxu0 0
        %3193 = vmatprep.subr.bf16.mxu0 0
        %3194 = vmatpush1.bf16.msra.mxu0 0
        %3195 = vmatprep.subr.bf16.mxu0 0
        %3196 = vmatpush1.bf16.msra.mxu0 0
        %3197 = vmatprep.subr.bf16.mxu0 0
        %3198 = vmatpush1.bf16.msra.mxu0 0
        %3199 = vmatprep.subr.bf16.mxu0 0
        %3200 = vmatpush1.bf16.msra.mxu0 0
        %3201 = vmatprep.subr.bf16.mxu0 0
        %3202 = vmatpush1.bf16.msra.mxu0 0
        %3203 = vmatprep.subr.bf16.mxu0 0
        %3204 = vmatpush1.bf16.msra.mxu0 0
        %3205 = vmatprep.subr.bf16.mxu0 0
        %3206 = vmatpush1.bf16.msra.mxu0 0
        %3207 = vmatprep.subr.bf16.mxu0 0
        %3208 = vmatpush1.bf16.msra.mxu0 0
        %3209 = vmatprep.subr.bf16.mxu0 0
        %3210 = vmatpush1.bf16.msra.mxu0 0
        %3211 = vmatprep.subr.bf16.mxu0 0
        %3212 = vmatpush1.bf16.msra.mxu0 0
        %3213 = vmatprep.subr.bf16.mxu0 0
        %3214 = vmatpush1.bf16.msra.mxu0 0
        %3215 = vmatprep.subr.bf16.mxu0 0
        %3216 = vmatpush1.bf16.msra.mxu0 0
        %3217 = vmatprep.subr.bf16.mxu0 0
        %3218 = vmatpush1.bf16.msra.mxu0 0
        %3219 = vmatprep.mubr.bf16.mxu0 0
        %3220 = vmatmul.mubr.bf16.gmra.mrb[0].mxu0 %v3182
        %v3221 = vpop.f32.mrb[0].mxu0
        %v3222 = vadd.f32 0.0, %v3221
        %v3223 = vpop.f32.mrb[0].mxu0
        %v3224 = vpop.f32.mrb[0].mxu0
        %v3225 = vpop.f32.mrb[0].mxu0
        %3226 = vdwg.mxu0
        %v3228 = vsel %vm1293, %v3178, 0
        %v3231 = vsel %vm1537, %v2938, 0
        %3233 = vmatprep.subr.bf16.mxu0 0
        %3234 = vmatpush1.bf16.msra.mxu0 %v3231
        %3235 = vmatprep.subr.bf16.mxu0 0
        %3236 = vmatpush1.bf16.msra.mxu0 0
        %3237 = vmatprep.subr.bf16.mxu0 0
        %3238 = vmatpush1.bf16.msra.mxu0 0
        %3239 = vmatprep.subr.bf16.mxu0 0
        %3240 = vmatpush1.bf16.msra.mxu0 0
        %3241 = vmatprep.subr.bf16.mxu0 0
        %3242 = vmatpush1.bf16.msra.mxu0 0
        %3243 = vmatprep.subr.bf16.mxu0 0
        %3244 = vmatpush1.bf16.msra.mxu0 0
        %3245 = vmatprep.subr.bf16.mxu0 0
        %3246 = vmatpush1.bf16.msra.mxu0 0
        %3247 = vmatprep.subr.bf16.mxu0 0
        %3248 = vmatpush1.bf16.msra.mxu0 0
        %3249 = vmatprep.subr.bf16.mxu0 0
        %3250 = vmatpush1.bf16.msra.mxu0 0
        %3251 = vmatprep.subr.bf16.mxu0 0
        %3252 = vmatpush1.bf16.msra.mxu0 0
        %3253 = vmatprep.subr.bf16.mxu0 0
        %3254 = vmatpush1.bf16.msra.mxu0 0
        %3255 = vmatprep.subr.bf16.mxu0 0
        %3256 = vmatpush1.bf16.msra.mxu0 0
        %3257 = vmatprep.subr.bf16.mxu0 0
        %3258 = vmatpush1.bf16.msra.mxu0 0
        %3259 = vmatprep.subr.bf16.mxu0 0
        %3260 = vmatpush1.bf16.msra.mxu0 0
        %3261 = vmatprep.subr.bf16.mxu0 0
        %3262 = vmatpush1.bf16.msra.mxu0 0
        %3263 = vmatprep.subr.bf16.mxu0 0
        %3264 = vmatpush1.bf16.msra.mxu0 0
        %3265 = vmatprep.mubr.bf16.mxu0 0
        %3266 = vmatmul.mubr.bf16.gmra.mrb[0].mxu0 %v3228
        %v3267 = vpop.f32.mrb[0].mxu0
        %v3268 = vadd.f32 0.0, %v3267
        %v3269 = vpop.f32.mrb[0].mxu0
        %v3270 = vpop.f32.mrb[0].mxu0
        %v3271 = vpop.f32.mrb[0].mxu0
        %3272 = vdwg.mxu0
        %v3274 = vsel %vm1293, %v3179, 0
        %v3277 = vsel %vm1537, %v2939, 0
        %3279 = vmatprep.subr.bf16.mxu0 0
        %3280 = vmatpush1.bf16.msra.mxu0 %v3277
        %3281 = vmatprep.subr.bf16.mxu0 0
        %3282 = vmatpush1.bf16.msra.mxu0 0
        %3283 = vmatprep.subr.bf16.mxu0 0
        %3284 = vmatpush1.bf16.msra.mxu0 0
        %3285 = vmatprep.subr.bf16.mxu0 0
        %3286 = vmatpush1.bf16.msra.mxu0 0
        %3287 = vmatprep.subr.bf16.mxu0 0
        %3288 = vmatpush1.bf16.msra.mxu0 0
        %3289 = vmatprep.subr.bf16.mxu0 0
        %3290 = vmatpush1.bf16.msra.mxu0 0
        %3291 = vmatprep.subr.bf16.mxu0 0
        %3292 = vmatpush1.bf16.msra.mxu0 0
        %3293 = vmatprep.subr.bf16.mxu0 0
        %3294 = vmatpush1.bf16.msra.mxu0 0
        %3295 = vmatprep.subr.bf16.mxu0 0
        %3296 = vmatpush1.bf16.msra.mxu0 0
        %3297 = vmatprep.subr.bf16.mxu0 0
        %3298 = vmatpush1.bf16.msra.mxu0 0
        %3299 = vmatprep.subr.bf16.mxu0 0
        %3300 = vmatpush1.bf16.msra.mxu0 0
        %3301 = vmatprep.subr.bf16.mxu0 0
        %3302 = vmatpush1.bf16.msra.mxu0 0
        %3303 = vmatprep.subr.bf16.mxu0 0
        %3304 = vmatpush1.bf16.msra.mxu0 0
        %3305 = vmatprep.subr.bf16.mxu0 0
        %3306 = vmatpush1.bf16.msra.mxu0 0
        %3307 = vmatprep.subr.bf16.mxu0 0
        %3308 = vmatpush1.bf16.msra.mxu0 0
        %3309 = vmatprep.subr.bf16.mxu0 0
        %3310 = vmatpush1.bf16.msra.mxu0 0
        %3311 = vmatprep.mubr.bf16.mxu0 0
        %3312 = vmatmul.mubr.bf16.gmra.mrb[0].mxu0 %v3274
        %v3313 = vpop.f32.mrb[0].mxu0
        %v3314 = vadd.f32 0.0, %v3313
        %v3315 = vpop.f32.mrb[0].mxu0
        %v3316 = vpop.f32.mrb[0].mxu0
        %v3317 = vpop.f32.mrb[0].mxu0
        %3318 = vdwg.mxu0
        %v3320 = vsel %vm1293, %v3180, 0
        %v3323 = vsel %vm1537, %v2940, 0
        %3325 = vmatprep.subr.bf16.mxu0 0
        %3326 = vmatpush1.bf16.msra.mxu0 %v3323
        %3327 = vmatprep.subr.bf16.mxu0 0
        %3328 = vmatpush1.bf16.msra.mxu0 0
        %3329 = vmatprep.subr.bf16.mxu0 0
        %3330 = vmatpush1.bf16.msra.mxu0 0
        %3331 = vmatprep.subr.bf16.mxu0 0
        %3332 = vmatpush1.bf16.msra.mxu0 0
        %3333 = vmatprep.subr.bf16.mxu0 0
        %3334 = vmatpush1.bf16.msra.mxu0 0
        %3335 = vmatprep.subr.bf16.mxu0 0
        %3336 = vmatpush1.bf16.msra.mxu0 0
        %3337 = vmatprep.subr.bf16.mxu0 0
        %3338 = vmatpush1.bf16.msra.mxu0 0
        %3339 = vmatprep.subr.bf16.mxu0 0
        %3340 = vmatpush1.bf16.msra.mxu0 0
        %3341 = vmatprep.subr.bf16.mxu0 0
        %3342 = vmatpush1.bf16.msra.mxu0 0
        %3343 = vmatprep.subr.bf16.mxu0 0
        %3344 = vmatpush1.bf16.msra.mxu0 0
        %3345 = vmatprep.subr.bf16.mxu0 0
        %3346 = vmatpush1.bf16.msra.mxu0 0
        %3347 = vmatprep.subr.bf16.mxu0 0
        %3348 = vmatpush1.bf16.msra.mxu0 0
        %3349 = vmatprep.subr.bf16.mxu0 0
        %3350 = vmatpush1.bf16.msra.mxu0 0
        %3351 = vmatprep.subr.bf16.mxu0 0
        %3352 = vmatpush1.bf16.msra.mxu0 0
        %3353 = vmatprep.subr.bf16.mxu0 0
        %3354 = vmatpush1.bf16.msra.mxu0 0
        %3355 = vmatprep.subr.bf16.mxu0 0
        %3356 = vmatpush1.bf16.msra.mxu0 0
        %3357 = vmatprep.mubr.bf16.mxu0 0
        %3358 = vmatmul.mubr.bf16.gmra.mrb[0].mxu0 %v3320
        %v3359 = vpop.f32.mrb[0].mxu0
        %v3360 = vadd.f32 0.0, %v3359
        %v3361 = vpop.f32.mrb[0].mxu0
        %v3362 = vpop.f32.mrb[0].mxu0
        %v3363 = vpop.f32.mrb[0].mxu0
        %3364 = vdwg.mxu0
        %v3365 = vpack.c.bf16 %v3222, %v3222
        %v3366 = vpack.c.bf16 %v3268, %v3268
        %v3367 = vpack.c.bf16 %v3314, %v3314
        %v3368 = vpack.c.bf16 %v3360, %v3360
        %s3369 = scalar_lea.vmem %s4, 16
        %v3370 = vld [vmem:[%s3369] sm:$0xf]
        %v3371 = vld [vmem:[%s3369 + $0x4] sm:$0xf]
        %v3372 = vld [vmem:[%s3369 + $0x8] sm:$0xf]
        %v3373 = vld [vmem:[%s3369 + $0xc] sm:$0xf]
        %v3375 = vsel %vm1293, %v3365, 0
        %v3378 = vsel %vm1537, %v3370, 0
        %3380 = vmatprep.subr.bf16.mxu0 0
        %3381 = vmatpush1.bf16.msra.mxu0 %v3378
        %3382 = vmatprep.subr.bf16.mxu0 0
        %3383 = vmatpush1.bf16.msra.mxu0 0
        %3384 = vmatprep.subr.bf16.mxu0 0
        %3385 = vmatpush1.bf16.msra.mxu0 0
        %3386 = vmatprep.subr.bf16.mxu0 0
        %3387 = vmatpush1.bf16.msra.mxu0 0
        %3388 = vmatprep.subr.bf16.mxu0 0
        %3389 = vmatpush1.bf16.msra.mxu0 0
        %3390 = vmatprep.subr.bf16.mxu0 0
        %3391 = vmatpush1.bf16.msra.mxu0 0
        %3392 = vmatprep.subr.bf16.mxu0 0
        %3393 = vmatpush1.bf16.msra.mxu0 0
        %3394 = vmatprep.subr.bf16.mxu0 0
        %3395 = vmatpush1.bf16.msra.mxu0 0
        %3396 = vmatprep.subr.bf16.mxu0 0
        %3397 = vmatpush1.bf16.msra.mxu0 0
        %3398 = vmatprep.subr.bf16.mxu0 0
        %3399 = vmatpush1.bf16.msra.mxu0 0
        %3400 = vmatprep.subr.bf16.mxu0 0
        %3401 = vmatpush1.bf16.msra.mxu0 0
        %3402 = vmatprep.subr.bf16.mxu0 0
        %3403 = vmatpush1.bf16.msra.mxu0 0
        %3404 = vmatprep.subr.bf16.mxu0 0
        %3405 = vmatpush1.bf16.msra.mxu0 0
        %3406 = vmatprep.subr.bf16.mxu0 0
        %3407 = vmatpush1.bf16.msra.mxu0 0
        %3408 = vmatprep.subr.bf16.mxu0 0
        %3409 = vmatpush1.bf16.msra.mxu0 0
        %3410 = vmatprep.subr.bf16.mxu0 0
        %3411 = vmatpush1.bf16.msra.mxu0 0
        %3412 = vmatprep.mubr.bf16.mxu0 0
        %3413 = vmatmul.mubr.bf16.gmra.mrb[0].mxu0 %v3375
        %v3414 = vpop.f32.mrb[0].mxu0
        %v3415 = vadd.f32 0.0, %v3414
        %v3416 = vpop.f32.mrb[0].mxu0
        %v3417 = vpop.f32.mrb[0].mxu0
        %v3418 = vpop.f32.mrb[0].mxu0
        %3419 = vdwg.mxu0
        %v3421 = vsel %vm1293, %v3366, 0
        %v3424 = vsel %vm1537, %v3371, 0
        %3426 = vmatprep.subr.bf16.mxu0 0
        %3427 = vmatpush1.bf16.msra.mxu0 %v3424
        %3428 = vmatprep.subr.bf16.mxu0 0
        %3429 = vmatpush1.bf16.msra.mxu0 0
        %3430 = vmatprep.subr.bf16.mxu0 0
        %3431 = vmatpush1.bf16.msra.mxu0 0
        %3432 = vmatprep.subr.bf16.mxu0 0
        %3433 = vmatpush1.bf16.msra.mxu0 0
        %3434 = vmatprep.subr.bf16.mxu0 0
        %3435 = vmatpush1.bf16.msra.mxu0 0
        %3436 = vmatprep.subr.bf16.mxu0 0
        %3437 = vmatpush1.bf16.msra.mxu0 0
        %3438 = vmatprep.subr.bf16.mxu0 0
        %3439 = vmatpush1.bf16.msra.mxu0 0
        %3440 = vmatprep.subr.bf16.mxu0 0
        %3441 = vmatpush1.bf16.msra.mxu0 0
        %3442 = vmatprep.subr.bf16.mxu0 0
        %3443 = vmatpush1.bf16.msra.mxu0 0
        %3444 = vmatprep.subr.bf16.mxu0 0
        %3445 = vmatpush1.bf16.msra.mxu0 0
        %3446 = vmatprep.subr.bf16.mxu0 0
        %3447 = vmatpush1.bf16.msra.mxu0 0
        %3448 = vmatprep.subr.bf16.mxu0 0
        %3449 = vmatpush1.bf16.msra.mxu0 0
        %3450 = vmatprep.subr.bf16.mxu0 0
        %3451 = vmatpush1.bf16.msra.mxu0 0
        %3452 = vmatprep.subr.bf16.mxu0 0
        %3453 = vmatpush1.bf16.msra.mxu0 0
        %3454 = vmatprep.subr.bf16.mxu0 0
        %3455 = vmatpush1.bf16.msra.mxu0 0
        %3456 = vmatprep.subr.bf16.mxu0 0
        %3457 = vmatpush1.bf16.msra.mxu0 0
        %3458 = vmatprep.mubr.bf16.mxu0 0
        %3459 = vmatmul.mubr.bf16.gmra.mrb[0].mxu0 %v3421
        %v3460 = vpop.f32.mrb[0].mxu0
        %v3461 = vadd.f32 0.0, %v3460
        %v3462 = vpop.f32.mrb[0].mxu0
        %v3463 = vpop.f32.mrb[0].mxu0
        %v3464 = vpop.f32.mrb[0].mxu0
        %3465 = vdwg.mxu0
        %v3467 = vsel %vm1293, %v3367, 0
        %v3470 = vsel %vm1537, %v3372, 0
        %3472 = vmatprep.subr.bf16.mxu0 0
        %3473 = vmatpush1.bf16.msra.mxu0 %v3470
        %3474 = vmatprep.subr.bf16.mxu0 0
        %3475 = vmatpush1.bf16.msra.mxu0 0
        %3476 = vmatprep.subr.bf16.mxu0 0
        %3477 = vmatpush1.bf16.msra.mxu0 0
        %3478 = vmatprep.subr.bf16.mxu0 0
        %3479 = vmatpush1.bf16.msra.mxu0 0
        %3480 = vmatprep.subr.bf16.mxu0 0
        %3481 = vmatpush1.bf16.msra.mxu0 0
        %3482 = vmatprep.subr.bf16.mxu0 0
        %3483 = vmatpush1.bf16.msra.mxu0 0
        %3484 = vmatprep.subr.bf16.mxu0 0
        %3485 = vmatpush1.bf16.msra.mxu0 0
        %3486 = vmatprep.subr.bf16.mxu0 0
        %3487 = vmatpush1.bf16.msra.mxu0 0
        %3488 = vmatprep.subr.bf16.mxu0 0
        %3489 = vmatpush1.bf16.msra.mxu0 0
        %3490 = vmatprep.subr.bf16.mxu0 0
        %3491 = vmatpush1.bf16.msra.mxu0 0
        %3492 = vmatprep.subr.bf16.mxu0 0
        %3493 = vmatpush1.bf16.msra.mxu0 0
        %3494 = vmatprep.subr.bf16.mxu0 0
        %3495 = vmatpush1.bf16.msra.mxu0 0
        %3496 = vmatprep.subr.bf16.mxu0 0
        %3497 = vmatpush1.bf16.msra.mxu0 0
        %3498 = vmatprep.subr.bf16.mxu0 0
        %3499 = vmatpush1.bf16.msra.mxu0 0
        %3500 = vmatprep.subr.bf16.mxu0 0
        %3501 = vmatpush1.bf16.msra.mxu0 0
        %3502 = vmatprep.subr.bf16.mxu0 0
        %3503 = vmatpush1.bf16.msra.mxu0 0
        %3504 = vmatprep.mubr.bf16.mxu0 0
        %3505 = vmatmul.mubr.bf16.gmra.mrb[0].mxu0 %v3467
        %v3506 = vpop.f32.mrb[0].mxu0
        %v3507 = vadd.f32 0.0, %v3506
        %v3508 = vpop.f32.mrb[0].mxu0
        %v3509 = vpop.f32.mrb[0].mxu0
        %v3510 = vpop.f32.mrb[0].mxu0
        %3511 = vdwg.mxu0
        %v3513 = vsel %vm1293, %v3368, 0
        %v3516 = vsel %vm1537, %v3373, 0
        %3518 = vmatprep.subr.bf16.mxu0 0
        %3519 = vmatpush1.bf16.msra.mxu0 %v3516
        %3520 = vmatprep.subr.bf16.mxu0 0
        %3521 = vmatpush1.bf16.msra.mxu0 0
        %3522 = vmatprep.subr.bf16.mxu0 0
        %3523 = vmatpush1.bf16.msra.mxu0 0
        %3524 = vmatprep.subr.bf16.mxu0 0
        %3525 = vmatpush1.bf16.msra.mxu0 0
        %3526 = vmatprep.subr.bf16.mxu0 0
        %3527 = vmatpush1.bf16.msra.mxu0 0
        %3528 = vmatprep.subr.bf16.mxu0 0
        %3529 = vmatpush1.bf16.msra.mxu0 0
        %3530 = vmatprep.subr.bf16.mxu0 0
        %3531 = vmatpush1.bf16.msra.mxu0 0
        %3532 = vmatprep.subr.bf16.mxu0 0
        %3533 = vmatpush1.bf16.msra.mxu0 0
        %3534 = vmatprep.subr.bf16.mxu0 0
        %3535 = vmatpush1.bf16.msra.mxu0 0
        %3536 = vmatprep.subr.bf16.mxu0 0
        %3537 = vmatpush1.bf16.msra.mxu0 0
        %3538 = vmatprep.subr.bf16.mxu0 0
        %3539 = vmatpush1.bf16.msra.mxu0 0
        %3540 = vmatprep.subr.bf16.mxu0 0
        %3541 = vmatpush1.bf16.msra.mxu0 0
        %3542 = vmatprep.subr.bf16.mxu0 0
        %3543 = vmatpush1.bf16.msra.mxu0 0
        %3544 = vmatprep.subr.bf16.mxu0 0
        %3545 = vmatpush1.bf16.msra.mxu0 0
        %3546 = vmatprep.subr.bf16.mxu0 0
        %3547 = vmatpush1.bf16.msra.mxu0 0
        %3548 = vmatprep.subr.bf16.mxu0 0
        %3549 = vmatpush1.bf16.msra.mxu0 0
        %3550 = vmatprep.mubr.bf16.mxu0 0
        %3551 = vmatmul.mubr.bf16.gmra.mrb[0].mxu0 %v3513
        %v3552 = vpop.f32.mrb[0].mxu0
        %v3553 = vadd.f32 0.0, %v3552
        %v3554 = vpop.f32.mrb[0].mxu0
        %v3555 = vpop.f32.mrb[0].mxu0
        %v3556 = vpop.f32.mrb[0].mxu0
        %3557 = vdwg.mxu0
        %v3558 = vsel %vm665, %v3415, 0.0
        %v3559 = vsel %vm665, %v3461, 0.0
        %v3560 = vadd.f32 %v3558, %v3559
        %v3561 = vsel %vm665, %v3507, 0.0
        %v3562 = vadd.f32 %v3560, %v3561
        %v3563 = vsel %vm665, %v3553, 0.0
        %v3564 = vadd.f32 %v3562, %v3563
        %s3565 = scalar_lea.vmem %s5, 1
        %v3566 = vld [vmem:[%s3565] sm:$0x1]
        %v3568 = vlaneseq
        %v3569 = vshrl.u32 %v3568, 7
        %v3570 = vsub.s32 0, %v3569
        %v3571 = vrot.slane %v3566, %v3570
        %v3573 = vadd.f32 %v3564, %v3571
        %v3574 = vadd.f32 %v2166, %v3573
        %s3575 = scalar_lea.vmem %s6, 1
        %v3576 = vld [vmem:[%s3575] sm:$0x1]
        %s3577 = scalar_lea.vmem %s7, 1
        %v3578 = vld [vmem:[%s3577] sm:$0x1]
        %v3579 = vsel %vm665, %v3574, 0.0
        %3580 = vadd.xlane.f32.xlu0 %v3579
        %v3581 = vpop.xlane.xlu0 %3580
        %v3582 = vmul.f32 %v3581, %v1932
        %v3583 = vsub.f32 %v3574, %v3582
        %v3584 = vmul.f32 %v3583, %v3583
        %v3585 = vsel %vm665, %v3584, 0.0
        %3586 = vadd.xlane.f32.xlu0 %v3585
        %v3587 = vpop.xlane.xlu0 %3586
        %v3588 = vmul.f32 %v3587, %v1932
        %v3589 = vadd.f32 %v3588, 1e-05
        %v3590 = vrsqrt.pop %v3589
        %v3591 = vmul.f32 %v3583, %v3590
        %v3593 = vlaneseq
        %v3594 = vshrl.u32 %v3593, 7
        %v3595 = vsub.s32 0, %v3594
        %v3596 = vrot.slane %v3576, %v3595
        %v3598 = vmul.f32 %v3591, %v3596
        %v3600 = vlaneseq
        %v3601 = vshrl.u32 %v3600, 7
        %v3602 = vsub.s32 0, %v3601
        %v3603 = vrot.slane %v3578, %v3602
        %v3605 = vadd.f32 %v3598, %v3603
        %v3606 = vpack.c.bf16 %v3605, %v3605
        %s3607 = scalar_lea.vmem %s8, 16
        %v3608 = vld [vmem:[%s3607] sm:$0xf]
        %v3609 = vld [vmem:[%s3607 + $0x4] sm:$0xf]
        %v3610 = vld [vmem:[%s3607 + $0x8] sm:$0xf]
        %v3611 = vld [vmem:[%s3607 + $0xc] sm:$0xf]
        %s3612 = scalar_lea.vmem %s9, 1
        %v3613 = vld [vmem:[%s3612] sm:$0x1]
        %v3615 = vlaneseq
        %v3616 = vshrl.u32 %v3615, 7
        %v3617 = vsub.s32 0, %v3616
        %v3618 = vrot.slane %v3613, %v3617
        %v3624 = vunpack.c.l.b16 %v3608
        %v3625 = vunpack.c.l.b16 %v3609
        %v3626 = vunpack.c.l.b16 %v3610
        %v3627 = vunpack.c.l.b16 %v3611
        %v3628 = vpack.c.b16 %v3625, %v3624
        %v3629 = vpack.c.b16 %v3627, %v3626
        %v3633 = vsel %vm665, %v3606, 0
        %3635 = vmatprep.subr.bf16.mxu0 0
        %3636 = vmatpush1.bf16.msra.mxu0 %v3628
        %3637 = vmatprep.subr.bf16.mxu0 0
        %3638 = vmatpush1.bf16.msra.mxu0 %v3629
        %3639 = vmatprep.subr.bf16.mxu0 0
        %3640 = vmatpush1.bf16.msra.mxu0 0
        %3641 = vmatprep.subr.bf16.mxu0 0
        %3642 = vmatpush1.bf16.msra.mxu0 0
        %3643 = vmatprep.subr.bf16.mxu0 0
        %3644 = vmatpush1.bf16.msra.mxu0 0
        %3645 = vmatprep.subr.bf16.mxu0 0
        %3646 = vmatpush1.bf16.msra.mxu0 0
        %3647 = vmatprep.subr.bf16.mxu0 0
        %3648 = vmatpush1.bf16.msra.mxu0 0
        %3649 = vmatprep.subr.bf16.mxu0 0
        %3650 = vmatpush1.bf16.msra.mxu0 0
        %3651 = vmatprep.subr.bf16.mxu0 0
        %3652 = vmatpush1.bf16.msra.mxu0 0
        %3653 = vmatprep.subr.bf16.mxu0 0
        %3654 = vmatpush1.bf16.msra.mxu0 0
        %3655 = vmatprep.subr.bf16.mxu0 0
        %3656 = vmatpush1.bf16.msra.mxu0 0
        %3657 = vmatprep.subr.bf16.mxu0 0
        %3658 = vmatpush1.bf16.msra.mxu0 0
        %3659 = vmatprep.subr.bf16.mxu0 0
        %3660 = vmatpush1.bf16.msra.mxu0 0
        %3661 = vmatprep.subr.bf16.mxu0 0
        %3662 = vmatpush1.bf16.msra.mxu0 0
        %3663 = vmatprep.subr.bf16.mxu0 0
        %3664 = vmatpush1.bf16.msra.mxu0 0
        %3665 = vmatprep.subr.bf16.mxu0 0
        %3666 = vmatpush1.bf16.msra.mxu0 0
        %3667 = vmatprep.mubr.bf16.mxu0 0
        %3668 = vmatmul.mubr.bf16.gmra.mrb[0].mxu0 %v3633
        %v3669 = vpop.f32.mrb[0].mxu0
        %v3670 = vadd.f32 %v3618, %v3669
        %v3671 = vpop.f32.mrb[0].mxu0
        %v3672 = vpop.f32.mrb[0].mxu0
        %v3673 = vpop.f32.mrb[0].mxu0
        %3674 = vdwg.mxu0
        %v3675 = vmax.f32 %v3670, 0.0
        %v3676 = vpack.c.bf16 %v3675, %v3675
        %s3677 = scalar_lea.vmem %s10, 64
        %v3678 = vld [vmem:[%s3677] sm:$0xf]
        %v3679 = vld [vmem:[%s3677 + $0x4] sm:$0xf]
        %v3680 = vld [vmem:[%s3677 + $0x8] sm:$0xf]
        %v3681 = vld [vmem:[%s3677 + $0xc] sm:$0xf]
        %v3682 = vld [vmem:[%s3677 + $0x10] sm:$0xf]
        %v3683 = vld [vmem:[%s3677 + $0x14] sm:$0xf]
        %v3684 = vld [vmem:[%s3677 + $0x18] sm:$0xf]
        %v3685 = vld [vmem:[%s3677 + $0x1c] sm:$0xf]
        %v3686 = vld [vmem:[%s3677 + $0x20] sm:$0xf]
        %v3687 = vld [vmem:[%s3677 + $0x24] sm:$0xf]
        %v3688 = vld [vmem:[%s3677 + $0x28] sm:$0xf]
        %v3689 = vld [vmem:[%s3677 + $0x2c] sm:$0xf]
        %v3690 = vld [vmem:[%s3677 + $0x30] sm:$0xf]
        %v3691 = vld [vmem:[%s3677 + $0x34] sm:$0xf]
        %v3692 = vld [vmem:[%s3677 + $0x38] sm:$0xf]
        %v3693 = vld [vmem:[%s3677 + $0x3c] sm:$0xf]
        %s3694 = scalar_lea.vmem %s11, 1
        %v3695 = vld [vmem:[%s3694] sm:$0x1]
        %v3697 = vlaneseq
        %v3698 = vshrl.u32 %v3697, 7
        %v3699 = vsub.s32 0, %v3698
        %v3700 = vrot.slane %v3695, %v3699
        %v3718 = vunpack.c.l.b16 %v3678
        %v3719 = vunpack.c.l.b16 %v3679
        %v3720 = vunpack.c.l.b16 %v3680
        %v3721 = vunpack.c.l.b16 %v3681
        %v3722 = vunpack.c.l.b16 %v3682
        %v3723 = vunpack.c.l.b16 %v3683
        %v3724 = vunpack.c.l.b16 %v3684
        %v3725 = vunpack.c.l.b16 %v3685
        %v3726 = vunpack.c.l.b16 %v3686
        %v3727 = vunpack.c.l.b16 %v3687
        %v3728 = vunpack.c.l.b16 %v3688
        %v3729 = vunpack.c.l.b16 %v3689
        %v3730 = vunpack.c.l.b16 %v3690
        %v3731 = vunpack.c.l.b16 %v3691
        %v3732 = vunpack.c.l.b16 %v3692
        %v3733 = vunpack.c.l.b16 %v3693
        %v3734 = vpack.c.b16 %v3719, %v3718
        %v3735 = vpack.c.b16 %v3721, %v3720
        %v3736 = vpack.c.b16 %v3723, %v3722
        %v3737 = vpack.c.b16 %v3725, %v3724
        %v3738 = vpack.c.b16 %v3727, %v3726
        %v3739 = vpack.c.b16 %v3729, %v3728
        %v3740 = vpack.c.b16 %v3731, %v3730
        %v3741 = vpack.c.b16 %v3733, %v3732
        %3750 = vmatprep.subr.bf16.mxu0 0
        %3751 = vmatpush1.bf16.msra.mxu0 %v3734
        %3752 = vmatprep.subr.bf16.mxu0 0
        %3753 = vmatpush1.bf16.msra.mxu0 %v3735
        %3754 = vmatprep.subr.bf16.mxu0 0
        %3755 = vmatpush1.bf16.msra.mxu0 %v3736
        %3756 = vmatprep.subr.bf16.mxu0 0
        %3757 = vmatpush1.bf16.msra.mxu0 %v3737
        %3758 = vmatprep.subr.bf16.mxu0 0
        %3759 = vmatpush1.bf16.msra.mxu0 %v3738
        %3760 = vmatprep.subr.bf16.mxu0 0
        %3761 = vmatpush1.bf16.msra.mxu0 %v3739
        %3762 = vmatprep.subr.bf16.mxu0 0
        %3763 = vmatpush1.bf16.msra.mxu0 %v3740
        %3764 = vmatprep.subr.bf16.mxu0 0
        %3765 = vmatpush1.bf16.msra.mxu0 %v3741
        %3766 = vmatprep.subr.bf16.mxu0 0
        %3767 = vmatpush1.bf16.msra.mxu0 0
        %3768 = vmatprep.subr.bf16.mxu0 0
        %3769 = vmatpush1.bf16.msra.mxu0 0
        %3770 = vmatprep.subr.bf16.mxu0 0
        %3771 = vmatpush1.bf16.msra.mxu0 0
        %3772 = vmatprep.subr.bf16.mxu0 0
        %3773 = vmatpush1.bf16.msra.mxu0 0
        %3774 = vmatprep.subr.bf16.mxu0 0
        %3775 = vmatpush1.bf16.msra.mxu0 0
        %3776 = vmatprep.subr.bf16.mxu0 0
        %3777 = vmatpush1.bf16.msra.mxu0 0
        %3778 = vmatprep.subr.bf16.mxu0 0
        %3779 = vmatpush1.bf16.msra.mxu0 0
        %3780 = vmatprep.subr.bf16.mxu0 0
        %3781 = vmatpush1.bf16.msra.mxu0 0
        %3782 = vmatprep.mubr.bf16.mxu0 0
        %3783 = vmatmul.mubr.bf16.gmra.mrb[0].mxu0 %v3676
        %v3784 = vpop.f32.mrb[0].mxu0
        %v3785 = vadd.f32 %v3700, %v3784
        %v3786 = vpop.f32.mrb[0].mxu0
        %v3787 = vpop.f32.mrb[0].mxu0
        %v3788 = vpop.f32.mrb[0].mxu0
        %3789 = vdwg.mxu0
        %v3790 = vadd.f32 %v3605, %v3785
        %s3791 = scalar_lea.vmem %s12, 1
        %v3792 = vld [vmem:[%s3791] sm:$0x1]
        %s3793 = scalar_lea.vmem %s13, 1
        %v3794 = vld [vmem:[%s3793] sm:$0x1]
        %v3795 = vsel %vm665, %v3790, 0.0
        %3796 = vadd.xlane.f32.xlu0 %v3795
        %v3797 = vpop.xlane.xlu0 %3796
        %v3798 = vmul.f32 %v3797, %v1932
        %v3799 = vsub.f32 %v3790, %v3798
        %v3800 = vmul.f32 %v3799, %v3799
        %v3801 = vsel %vm665, %v3800, 0.0
        %3802 = vadd.xlane.f32.xlu0 %v3801
        %v3803 = vpop.xlane.xlu0 %3802
        %v3804 = vmul.f32 %v3803, %v1932
        %v3805 = vadd.f32 %v3804, 1e-05
        %v3806 = vrsqrt.pop %v3805
        %v3807 = vmul.f32 %v3799, %v3806
        %v3809 = vlaneseq
        %v3810 = vshrl.u32 %v3809, 7
        %v3811 = vsub.s32 0, %v3810
        %v3812 = vrot.slane %v3792, %v3811
        %v3814 = vmul.f32 %v3807, %v3812
        %v3816 = vlaneseq
        %v3817 = vshrl.u32 %v3816, 7
        %v3818 = vsub.s32 0, %v3817
        %v3819 = vrot.slane %v3794, %v3818
        %v3821 = vadd.f32 %v3814, %v3819
        %v3822 = vpack.c.bf16 %v3821, %v3821
        %v3823 = vld [vmem:[%s14] sm:$0xf]
        %v3824 = vld [vmem:[%s14 + $0x4] sm:$0xf]
        %v3825 = vld [vmem:[%s14 + $0x8] sm:$0xf]
        %v3826 = vld [vmem:[%s14 + $0xc] sm:$0xf]
        %v3827 = vld [vmem:[%s15] sm:$0x1]
        %v3829 = vlaneseq
        %v3830 = vshrl.u32 %v3829, 7
        %v3831 = vsub.s32 0, %v3830
        %v3832 = vrot.slane %v3827, %v3831
        %v3838 = vunpack.c.l.b16 %v3823
        %v3839 = vunpack.c.l.b16 %v3824
        %v3840 = vunpack.c.l.b16 %v3825
        %v3841 = vunpack.c.l.b16 %v3826
        %v3842 = vpack.c.b16 %v3839, %v3838
        %v3843 = vpack.c.b16 %v3841, %v3840
        %v3847 = vsel %vm665, %v3822, 0
        %3849 = vmatprep.subr.bf16.mxu0 0
        %3850 = vmatpush1.bf16.msra.mxu0 %v3842
        %3851 = vmatprep.subr.bf16.mxu0 0
        %3852 = vmatpush1.bf16.msra.mxu0 %v3843
        %3853 = vmatprep.subr.bf16.mxu0 0
        %3854 = vmatpush1.bf16.msra.mxu0 0
        %3855 = vmatprep.subr.bf16.mxu0 0
        %3856 = vmatpush1.bf16.msra.mxu0 0
        %3857 = vmatprep.subr.bf16.mxu0 0
        %3858 = vmatpush1.bf16.msra.mxu0 0
        %3859 = vmatprep.subr.bf16.mxu0 0
        %3860 = vmatpush1.bf16.msra.mxu0 0
        %3861 = vmatprep.subr.bf16.mxu0 0
        %3862 = vmatpush1.bf16.msra.mxu0 0
        %3863 = vmatprep.subr.bf16.mxu0 0
        %3864 = vmatpush1.bf16.msra.mxu0 0
        %3865 = vmatprep.subr.bf16.mxu0 0
        %3866 = vmatpush1.bf16.msra.mxu0 0
        %3867 = vmatprep.subr.bf16.mxu0 0
        %3868 = vmatpush1.bf16.msra.mxu0 0
        %3869 = vmatprep.subr.bf16.mxu0 0
        %3870 = vmatpush1.bf16.msra.mxu0 0
        %3871 = vmatprep.subr.bf16.mxu0 0
        %3872 = vmatpush1.bf16.msra.mxu0 0
        %3873 = vmatprep.subr.bf16.mxu0 0
        %3874 = vmatpush1.bf16.msra.mxu0 0
        %3875 = vmatprep.subr.bf16.mxu0 0
        %3876 = vmatpush1.bf16.msra.mxu0 0
        %3877 = vmatprep.subr.bf16.mxu0 0
        %3878 = vmatpush1.bf16.msra.mxu0 0
        %3879 = vmatprep.subr.bf16.mxu0 0
        %3880 = vmatpush1.bf16.msra.mxu0 0
        %3881 = vmatprep.mubr.bf16.mxu0 0
        %3882 = vmatmul.mubr.bf16.gmra.mrb[0].mxu0 %v3847
        %v3883 = vpop.f32.mrb[0].mxu0
        %v3884 = vadd.f32 %v3832, %v3883
        %v3885 = vpop.f32.mrb[0].mxu0
        %v3886 = vpop.f32.mrb[0].mxu0
        %v3887 = vpop.f32.mrb[0].mxu0
        %3888 = vdwg.mxu0
        %3889 = vmax.xlane.f32.xlu0 %v3884
        %v3890 = vpop.xlane.xlu0 %3889
        %v3891 = vsub.f32 %v3884, %v3890
        %v3892 = vmul.f32 %v3891, 1.442695
        %v3893 = vpow.pop %v3892
        %3894 = vadd.xlane.f32.xlu0 %v3893
        %v3895 = vpop.xlane.xlu0 %3894
        %v3896 = vlog2.pop %v3895
        %v3897 = vmul.f32 %v3896, 0.6931472
        %v3898 = vsub.f32 %v3891, %v3897
        %3899 = vst [vmem:[%s512] sm:$0xff] %v3898
        %s3900 = sand.u32 %s379, 1
        %s3901 = scalar_lea.sflag [#allocation3], %s3900
        %s3902 = sand.u32 %s379, 1
        %s3903 = smul.addr %s3902, 8
        %s3904 = scalar_lea.vmem [#allocation2], %s3903
        // Predicated region
        $region85: #{tpu_custom_call.1} parent=83 // pred_check
          %p3905 = pneg %p389
        $region86: #{tpu_custom_call.1} parent=83 // pred_check_branch
          %3907 = sbr.rel (%p3905) target = $region88
        $region87: #{tpu_custom_call.1} parent=83 // pred_region
          %s3909 = ssub.s32 128, 128
          %3910 = vsyncadd %s3901, %s3909
          %s3911 = smul.addr %s30, 128
          %s3912 = scalar_lea.hbm %s16, %s3911
          %s3914 = sshll.u32 %s3904, 4
          %s3915 = int_to_ptr.vmem [resolvable:$true] %s3914
          %3917 = dma.vmem_to_hbm [thread:$0]  %s3915, 128, %s3912, %s3901
        $region88: #{tpu_custom_call.1} parent=83 // pred_fallthru
          _
      $region84: #{tpu_custom_call.1} parent=5 // pred_fallthru
        _
      %p3918 = scmp.le.s32.totalorder 2, %s25
      // Predicated region
      $region89: #{tpu_custom_call.1} parent=5 // pred_check
        %p3919 = pneg %p3918
      $region90: #{tpu_custom_call.1} parent=5 // pred_check_branch
        %3921 = sbr.rel (%p3919) target = $region92
      $region91: #{tpu_custom_call.1} parent=5 // pred_region
        %s3922 = ssub.s32 %s25, 2
        // Predicated region
        $region93: #{tpu_custom_call.1} parent=91 // pred_check
          %p3923 = pneg %p395
        $region94: #{tpu_custom_call.1} parent=91 // pred_check_branch
          %3925 = sbr.rel (%p3923) target = $region96
        $region95: #{tpu_custom_call.1} parent=91 // pred_region
          %s3926 = sand.u32 %s380, 1
          %s3927 = scalar_lea.sflag [#allocation3], %s3926
          %s3928 = sand.u32 %s380, 1
          %s3929 = smul.addr %s3928, 8
          %s3930 = scalar_lea.vmem [#allocation2], %s3929
          %3931 = dma.done %s3927, 128
        $region96: #{tpu_custom_call.1} parent=91 // pred_fallthru
          _
      $region92: #{tpu_custom_call.1} parent=5 // pred_fallthru
        _
    $region6: #{tpu_custom_call.1} parent=1 // loop_footer
      %s29 = sadd.s32 1, %s25
    $region7: #{tpu_custom_call.1} parent=1 // loop_footer_branch
      %24 = sbr.rel target = $region3
    $region8: #{tpu_custom_call.1} parent=1 // loop_exit
      _
    %3932 = vsyncpa [#allocation3], 1
    %s3933 = scalar_lea.sflag [#allocation3], 1
    %3934 = vsyncpa %s3933, 1

</llo_original>
